<compile_context>
chip_gen: v7x
topology: tpu7x:2x2x1
jax: 0.10.0
libtpu: 0.0.40
codegen_flags: <defaults>
</compile_context>

<pallas_src>
import functools

import jax
import jax.numpy as jnp
from jax.experimental import pallas as pl
from jax.experimental.pallas import tpu as pltpu

LANES = 128


def _round_up(x, m):
    return ((x + m - 1) // m) * m


# ----------------------------------------------------------------- pass 1 ----
# 3x3 conv (stride 1, pad 1 via pre-haloed input) + per-image BN partial stats.
#   x_ref : (1, H+2, W+2, CIN_P) bf16   haloed, lane-dense image (CIN_P = k*128)
#   w_ref : (9*CIN_P, CP)        bf16   tap-major flattened weights
#   y_ref : (1, H*W, CP)         f32    conv output tile (streamed to HBM)
#   s_ref : (1, 1, CP)           f32    per-image per-channel sum
#   q_ref : (1, 1, CP)           f32    per-image per-channel sum of squares
def _conv_stats_kernel(x_ref, w_ref, y_ref, s_ref, q_ref, *, H, W, CIN_P):
    xb = x_ref[0]                                           # (H+2, W+2, CIN_P)

    # Build the im2col patch matrix once, in VMEM: 9 lane-aligned shifted
    # windows concatenated along the channel axis -> single MXU contraction
    # with K = 9*CIN_P (full MXU depth) instead of 9 shallow matmuls.
    windows = [xb[dy:dy + H, dx:dx + W, :]
               for dy in range(3) for dx in range(3)]       # each (H, W, CIN_P)
    patches = jnp.concatenate(windows, axis=-1)             # (H, W, 9*CIN_P)
    patches = patches.reshape(H * W, 9 * CIN_P)             # lane dim stays 128k

    y = jnp.dot(patches, w_ref[...],
                preferred_element_type=jnp.float32)         # (H*W, CP) f32
    y_ref[0] = y

    # BN batch statistics from the f32 accumulator (never from a downcast).
    s_ref[0] = jnp.sum(y, axis=0, keepdims=True)
    q_ref[0] = jnp.sum(y * y, axis=0, keepdims=True)


# ----------------------------------------------------------------- pass 2 ----
# Elementwise train-mode BatchNorm (precomputed scale/shift) + ReLU.
def _bn_relu_kernel(y_ref, scale_ref, shift_ref, o_ref):
    z = y_ref[0] * scale_ref[...] + shift_ref[...]          # (H*W, CP) f32
    o_ref[0] = jnp.maximum(z, 0.0).astype(o_ref.dtype)      # lane-dense store


# ---------------------------------------------------------------- wrappers ----

def conv3x3_bn_relu(x_nhwc, w_hwio, gamma, beta, *, out_dtype, eps=1e-5):
    """Conv3x3(pad=1, bias=False) + BatchNorm2d(train-mode) + ReLU.

    `x_nhwc` must already be lane-dense: channels zero-padded to a multiple of
    128 lanes, bf16. Returns (N, H*W, CP) with CP = round_up(Cout, 128); the
    padded output channels are exactly zero (safe to carry into the next conv).
    """
    N, H, W, CIN_P = x_nhwc.shape
    assert CIN_P % LANES == 0
    Cin, Cout = w_hwio.shape[2], w_hwio.shape[3]
    CP = _round_up(Cout, LANES)

    # Boundary prep: +1 spatial halo only (channels already lane-dense).
    # TODO(synk): the halo could be absorbed into the kernel (masked border
    # taps) to save one input HBM round trip; kept as a wrapper pad for now.
    xp = jnp.pad(x_nhwc, ((0, 0), (1, 1), (1, 1), (0, 0)))
    # Tap-major flattened weights; zero-pad both channel dims so padded input
    # lanes contribute nothing and padded output lanes stay exactly zero.
    w = jnp.pad(w_hwio.astype(jnp.bfloat16),
                ((0, 0), (0, 0), (0, CIN_P - Cin), (0, CP - Cout)))
    w = w.reshape(9 * CIN_P, CP)

    # Explicit per-step VMEM budget: double-buffered blocks + patch matrix.
    est = (2 * ((H + 2) * (W + 2) * CIN_P * 2        # haloed input block (bf16)
                + 9 * CIN_P * CP * 2                 # weights (bf16)
                + H * W * CP * 4)                    # conv output block (f32)
           + H * W * 9 * CIN_P * 2                   # patch matrix (bf16)
           + H * W * CP * 4)                         # f32 dot result
    vmem_lim = int(min(max(2 * est, 16 * 2 ** 20), 48 * 2 ** 20))

    kernel = functools.partial(_conv_stats_kernel, H=H, W=W, CIN_P=CIN_P)
    y, s_p, q_p = pl.pallas_call(
        kernel,
        out_shape=(
            jax.ShapeDtypeStruct((N, H * W, CP), jnp.float32),
            jax.ShapeDtypeStruct((N, 1, CP), jnp.float32),
            jax.ShapeDtypeStruct((N, 1, CP), jnp.float32),
        ),
        grid_spec=pltpu.PrefetchScalarGridSpec(
            num_scalar_prefetch=0,
            grid=(N,),
            in_specs=[
                pl.BlockSpec((1, H + 2, W + 2, CIN_P), lambda n: (n, 0, 0, 0)),
                pl.BlockSpec((9 * CIN_P, CP), lambda n: (0, 0)),
            ],
            out_specs=[
                pl.BlockSpec((1, H * W, CP), lambda n: (n, 0, 0)),
                pl.BlockSpec((1, 1, CP), lambda n: (n, 0, 0)),
                pl.BlockSpec((1, 1, CP), lambda n: (n, 0, 0)),
            ],
        ),
        compiler_params=pltpu.CompilerParams(
            # Per-step partial stats -> no cross-step carry -> fully parallel
            # batch axis (both v7x TensorCores usable).
            dimension_semantics=("parallel",),
            vmem_limit_bytes=vmem_lim,
        ),
    )(xp, w)

    # Tiny (CP-sized) stats finalize in XLA: biased (train-mode) variance.
    cnt = float(N * H * W)
    s = jnp.sum(s_p, axis=0).reshape(CP)
    q = jnp.sum(q_p, axis=0).reshape(CP)
    mean = s / cnt
    # TODO(synk): E[y^2]-E[y]^2 in f32 can cancel when |mean| >> std; switch to
    # a shifted/Welford accumulation if tighter tolerances are ever needed.
    var = jnp.maximum(q / cnt - mean * mean, 0.0)
    g = jnp.pad(gamma.astype(jnp.float32), (0, CP - Cout))   # padded gamma = 0
    b = jnp.pad(beta.astype(jnp.float32), (0, CP - Cout))    # padded beta  = 0
    scale_v = g * jax.lax.rsqrt(var + eps)
    shift_v = b - mean * scale_v
    scale = scale_v.reshape(1, CP)
    shift = shift_v.reshape(1, CP)

    out = pl.pallas_call(
        _bn_relu_kernel,
        out_shape=jax.ShapeDtypeStruct((N, H * W, CP), out_dtype),
        grid_spec=pltpu.PrefetchScalarGridSpec(
            num_scalar_prefetch=0,
            grid=(N,),
            in_specs=[
                pl.BlockSpec((1, H * W, CP), lambda n: (n, 0, 0)),
                pl.BlockSpec((1, CP), lambda n: (0, 0)),
                pl.BlockSpec((1, CP), lambda n: (0, 0)),
            ],
            out_specs=pl.BlockSpec((1, H * W, CP), lambda n: (n, 0, 0)),
        ),
        compiler_params=pltpu.CompilerParams(
            dimension_semantics=("parallel",),
        ),
    )(y, scale, shift)
    return out  # (N, H*W, CP)


def double_conv_forward(x_nchw, params, eps=1e-5):
    """Equivalent of DoubleConv.forward on an NCHW input."""
    N, Cin, H, W = x_nchw.shape
    Cmid = params["w1"].shape[-1]
    Cout = params["w2"].shape[-1]
    CIN_P = _round_up(Cin, LANES)
    CPm = _round_up(Cmid, LANES)
    CPo = _round_up(Cout, LANES)

    # NCHW -> lane-dense NHWC bf16; channels zero-padded to 128 lanes so every
    # vreg lane is used and all kernel loads/stores are full-lane.
    x = jnp.transpose(x_nchw, (0, 2, 3, 1)).astype(jnp.bfloat16)
    x = jnp.pad(x, ((0, 0), (0, 0), (0, 0), (0, CIN_P - Cin)))

    h = conv3x3_bn_relu(x, params["w1"], params["g1"], params["b1"],
                        out_dtype=jnp.bfloat16, eps=eps)      # (N, H*W, CPm) bf16
    # Carry the lane-padded channel layout straight into the second conv:
    # no [..., :Cmid] slice; w2's input channels are zero-padded to CPm, so
    # block 2's contraction is K = 9*CPm = 1152 (full MXU depth).
    h = h.reshape(N, H, W, CPm)

    z = conv3x3_bn_relu(h, params["w2"], params["g2"], params["b2"],
                        out_dtype=jnp.float32, eps=eps)       # (N, H*W, CPo) f32
    z = z.reshape(N, H, W, CPo)[..., :Cout]
    return jnp.transpose(z, (0, 3, 1, 2))                     # NHWC -> NCHW


# --------------------------------------------------------- pure-JAX reference

def _ref_forward(x_nchw, params, eps=1e-5):
    def block(x, w_hwio, g, b):
        y = jax.lax.conv_general_dilated(
            x, w_hwio, window_strides=(1, 1), padding="SAME",
            dimension_numbers=("NCHW", "HWIO", "NCHW"))
        mean = jnp.mean(y, axis=(0, 2, 3), keepdims=True)
        var = jnp.var(y, axis=(0, 2, 3), keepdims=True)
        yhat = (y - mean) * jax.lax.rsqrt(var + eps)
        return jnp.maximum(
            yhat * g.reshape(1, -1, 1, 1) + b.reshape(1, -1, 1, 1), 0.0)

    h = block(x_nchw, params["w1"], params["g1"], params["b1"])
    return block(h, params["w2"], params["g2"], params["b2"])


# ------------------------------------------------------------------- main ----

if __name__ == "__main__":
    # DoubleConv(in_channels=4, out_channels=8)  ->  mid_channels = 8
    N, Cin, H, W = 2, 4, 16, 16
    Cmid, Cout = 8, 8

    key = jax.random.PRNGKey(0)
    k1, k2, k3, k4, k5, k6, kx = jax.random.split(key, 7)

    params = {
        # Conv2d weights, HWIO layout, bias=False as in the module.
        "w1": jax.random.normal(k1, (3, 3, Cin, Cmid), jnp.float32) * 0.1,
        "w2": jax.random.normal(k2, (3, 3, Cmid, Cout), jnp.float32) * 0.1,
        # BatchNorm2d affine params (gamma, beta); deterministic.
        "g1": 1.0 + 0.1 * jax.random.normal(k3, (Cmid,), jnp.float32),
        "b1": 0.1 * jax.random.normal(k4, (Cmid,), jnp.float32),
        "g2": 1.0 + 0.1 * jax.random.normal(k5, (Cout,), jnp.float32),
        "b2": 0.1 * jax.random.normal(k6, (Cout,), jnp.float32),
    }

    x = jax.random.normal(kx, (N, Cin, H, W), jnp.float32)

    fwd = jax.jit(double_conv_forward)
    out = jax.block_until_ready(fwd(x, params))
    ref = jax.block_until_ready(_ref_forward(x, params))

    assert out.shape == (N, Cout, H, W), out.shape
    # bf16 MXU operands + bf16 inter-block activation -> bf16-appropriate
    # tolerance against the f32 reference.
    max_err = float(jnp.max(jnp.abs(out - ref)))
    assert jnp.allclose(out, ref, atol=5e-2, rtol=5e-2), max_err

    print("KERNEL_OK")
</pallas_src>

<mosaic_0001>
module attributes {stable_mosaic.version = 11 : i64} {
  func.func @_bn_relu_kernel(%arg0: i32, %arg1: memref<1x256x128xf32, #tpu.memory_space<vmem>>, %arg2: memref<1x128xf32, #tpu.memory_space<vmem>>, %arg3: memref<1x128xf32, #tpu.memory_space<vmem>>, %arg4: memref<1x256x128xbf16, #tpu.memory_space<vmem>>) attributes {dimension_semantics = [#tpu.dimension_semantics<parallel>], iteration_bounds = array<i64: 2>, scalar_prefetch = 0 : i64, scratch_operands = 0 : i64, tpu.core_type = #tpu.core_type<tc>, window_params = [{transform_indices = @transform_0, window_bounds = array<i64: 1, 256, 128>}, {pipeline_mode = #tpu.pipeline_mode<synchronous>, transform_indices = @transform_1, window_bounds = array<i64: 1, 128>}, {pipeline_mode = #tpu.pipeline_mode<synchronous>, transform_indices = @transform_2, window_bounds = array<i64: 1, 128>}, {transform_indices = @transform_3, window_bounds = array<i64: 1, 256, 128>}]} {
    %c0 = arith.constant 0 : index
    %c0_0 = arith.constant 0 : index
    %c0_1 = arith.constant 0 : index
    %0 = vector.load %arg1[%c0, %c0_0, %c0_1] : memref<1x256x128xf32, #tpu.memory_space<vmem>>, vector<1x256x128xf32>
    %1 = vector.shape_cast %0 : vector<1x256x128xf32> to vector<256x128xf32>
    %c0_2 = arith.constant 0 : index
    %c0_3 = arith.constant 0 : index
    %2 = vector.load %arg2[%c0_2, %c0_3] : memref<1x128xf32, #tpu.memory_space<vmem>>, vector<1x128xf32>
    %3 = vector.broadcast %2 : vector<1x128xf32> to vector<256x128xf32>
    %4 = arith.mulf %1, %3 : vector<256x128xf32>
    %c0_4 = arith.constant 0 : index
    %c0_5 = arith.constant 0 : index
    %5 = vector.load %arg3[%c0_4, %c0_5] : memref<1x128xf32, #tpu.memory_space<vmem>>, vector<1x128xf32>
    %6 = vector.broadcast %5 : vector<1x128xf32> to vector<256x128xf32>
    %7 = arith.addf %4, %6 : vector<256x128xf32>
    %cst = arith.constant 0.000000e+00 : f32
    %8 = vector.broadcast %cst : f32 to vector<256x128xf32>
    %9 = arith.maximumf %7, %8 : vector<256x128xf32>
    %10 = arith.truncf %9 : vector<256x128xf32> to vector<256x128xbf16>
    %c0_6 = arith.constant 0 : index
    %c0_7 = arith.constant 0 : index
    %c0_8 = arith.constant 0 : index
    %11 = vector.load %arg4[%c0_6, %c0_7, %c0_8] : memref<1x256x128xbf16, #tpu.memory_space<vmem>>, vector<1x256x128xbf16>
    %12 = vector.shape_cast %11 : vector<1x256x128xbf16> to vector<256x128xbf16>
    %13 = vector.shape_cast %10 : vector<256x128xbf16> to vector<1x256x128xbf16>
    tpu.vector_store %arg4[%c0_6, %c0_7, %c0_8], %13 {strides = array<i32>} : memref<1x256x128xbf16, #tpu.memory_space<vmem>>, vector<1x256x128xbf16>,
    return
  }
  func.func @transform_0(%arg0: i32) -> (i32, i32, i32) {
    %c0_i32 = arith.constant 0 : i32
    %c0_i32_0 = arith.constant 0 : i32
    %c0_i32_1 = arith.constant 0 : i32
    return %arg0, %c0_i32, %c0_i32_0 : i32, i32, i32
  }
  func.func @transform_1(%arg0: i32) -> (i32, i32) {
    %c0_i32 = arith.constant 0 : i32
    %c0_i32_0 = arith.constant 0 : i32
    %c0_i32_1 = arith.constant 0 : i32
    return %c0_i32, %c0_i32_0 : i32, i32
  }
  func.func @transform_2(%arg0: i32) -> (i32, i32) {
    %c0_i32 = arith.constant 0 : i32
    %c0_i32_0 = arith.constant 0 : i32
    %c0_i32_1 = arith.constant 0 : i32
    return %c0_i32, %c0_i32_0 : i32, i32
  }
  func.func @transform_3(%arg0: i32) -> (i32, i32, i32) {
    %c0_i32 = arith.constant 0 : i32
    %c0_i32_0 = arith.constant 0 : i32
    %c0_i32_1 = arith.constant 0 : i32
    return %arg0, %c0_i32, %c0_i32_0 : i32, i32, i32
  }
}

module attributes {stable_mosaic.version = 11 : i64} {
  func.func @_conv_stats_kernel(%arg0: i32, %arg1: memref<1x18x18x128xbf16, #tpu.memory_space<vmem>>, %arg2: memref<1152x128xbf16, #tpu.memory_space<vmem>>, %arg3: memref<1x256x128xf32, #tpu.memory_space<vmem>>, %arg4: memref<1x1x128xf32, #tpu.memory_space<vmem>>, %arg5: memref<1x1x128xf32, #tpu.memory_space<vmem>>) attributes {dimension_semantics = [#tpu.dimension_semantics<parallel>], iteration_bounds = array<i64: 2>, scalar_prefetch = 0 : i64, scratch_operands = 0 : i64, tpu.core_type = #tpu.core_type<tc>, window_params = [{transform_indices = @transform_0, window_bounds = array<i64: 1, 18, 18, 128>}, {pipeline_mode = #tpu.pipeline_mode<synchronous>, transform_indices = @transform_1, window_bounds = array<i64: 1152, 128>}, {transform_indices = @transform_2, window_bounds = array<i64: 1, 256, 128>}, {transform_indices = @transform_3, window_bounds = array<i64: 1, 1, 128>}, {transform_indices = @transform_4, window_bounds = array<i64: 1, 1, 128>}]} {
    %c0 = arith.constant 0 : index
    %c0_0 = arith.constant 0 : index
    %c0_1 = arith.constant 0 : index
    %c0_2 = arith.constant 0 : index
    %0 = vector.load %arg1[%c0, %c0_0, %c0_1, %c0_2] : memref<1x18x18x128xbf16, #tpu.memory_space<vmem>>, vector<1x18x18x128xbf16>
    %1 = vector.shape_cast %0 : vector<1x18x18x128xbf16> to vector<18x18x128xbf16>
    %2 = vector.extract_strided_slice %1 {offsets = [0, 0, 0], sizes = [16, 16, 128], strides = [1, 1, 1]} : vector<18x18x128xbf16> to vector<16x16x128xbf16>
    %3 = vector.extract_strided_slice %1 {offsets = [0, 1, 0], sizes = [16, 16, 128], strides = [1, 1, 1]} : vector<18x18x128xbf16> to vector<16x16x128xbf16>
    %4 = vector.extract_strided_slice %1 {offsets = [0, 2, 0], sizes = [16, 16, 128], strides = [1, 1, 1]} : vector<18x18x128xbf16> to vector<16x16x128xbf16>
    %5 = vector.extract_strided_slice %1 {offsets = [1, 0, 0], sizes = [16, 16, 128], strides = [1, 1, 1]} : vector<18x18x128xbf16> to vector<16x16x128xbf16>
    %6 = vector.extract_strided_slice %1 {offsets = [1, 1, 0], sizes = [16, 16, 128], strides = [1, 1, 1]} : vector<18x18x128xbf16> to vector<16x16x128xbf16>
    %7 = vector.extract_strided_slice %1 {offsets = [1, 2, 0], sizes = [16, 16, 128], strides = [1, 1, 1]} : vector<18x18x128xbf16> to vector<16x16x128xbf16>
    %8 = vector.extract_strided_slice %1 {offsets = [2, 0, 0], sizes = [16, 16, 128], strides = [1, 1, 1]} : vector<18x18x128xbf16> to vector<16x16x128xbf16>
    %9 = vector.extract_strided_slice %1 {offsets = [2, 1, 0], sizes = [16, 16, 128], strides = [1, 1, 1]} : vector<18x18x128xbf16> to vector<16x16x128xbf16>
    %10 = vector.extract_strided_slice %1 {offsets = [2, 2, 0], sizes = [16, 16, 128], strides = [1, 1, 1]} : vector<18x18x128xbf16> to vector<16x16x128xbf16>
    %11 = tpu.concatenate %2, %3, %4, %5, %6, %7, %8, %9, %10 in 2 : vector<16x16x128xbf16>, vector<16x16x128xbf16>, vector<16x16x128xbf16>, vector<16x16x128xbf16>, vector<16x16x128xbf16>, vector<16x16x128xbf16>, vector<16x16x128xbf16>, vector<16x16x128xbf16>, vector<16x16x128xbf16> -> vector<16x16x1152xbf16>
    %12 = vector.shape_cast %11 : vector<16x16x1152xbf16> to vector<256x1152xbf16>
    %c0_3 = arith.constant 0 : index
    %c0_4 = arith.constant 0 : index
    %13 = vector.load %arg2[%c0_3, %c0_4] : memref<1152x128xbf16, #tpu.memory_space<vmem>>, vector<1152x128xbf16>
    %cst = arith.constant dense<0.000000e+00> : vector<256x128xf32>
    %14 = tpu.matmul %12, %13, %cst {dimension_numbers = #tpu.dot_dimension_numbers<[1], [0], [0], [1], [0, 0, 1, 1], [], []>} : vector<256x1152xbf16>, vector<1152x128xbf16>, vector<256x128xf32> -> vector<256x128xf32>
    %c0_5 = arith.constant 0 : index
    %c0_6 = arith.constant 0 : index
    %c0_7 = arith.constant 0 : index
    %15 = vector.load %arg3[%c0_5, %c0_6, %c0_7] : memref<1x256x128xf32, #tpu.memory_space<vmem>>, vector<1x256x128xf32>
    %16 = vector.shape_cast %15 : vector<1x256x128xf32> to vector<256x128xf32>
    %17 = vector.shape_cast %14 : vector<256x128xf32> to vector<1x256x128xf32>
    tpu.vector_store %arg3[%c0_5, %c0_6, %c0_7], %17 {strides = array<i32>} : memref<1x256x128xf32, #tpu.memory_space<vmem>>, vector<1x256x128xf32>,
    %cst_8 = arith.constant dense<0.000000e+00> : vector<128xf32>
    %18 = vector.multi_reduction <add>, %14, %cst_8 [0] : vector<256x128xf32> to vector<128xf32>
    %19 = vector.shape_cast %18 : vector<128xf32> to vector<1x128xf32>
    %c0_9 = arith.constant 0 : index
    %c0_10 = arith.constant 0 : index
    %c0_11 = arith.constant 0 : index
    %20 = vector.load %arg4[%c0_9, %c0_10, %c0_11] : memref<1x1x128xf32, #tpu.memory_space<vmem>>, vector<1x1x128xf32>
    %21 = vector.shape_cast %20 : vector<1x1x128xf32> to vector<1x128xf32>
    %22 = vector.shape_cast %19 : vector<1x128xf32> to vector<1x1x128xf32>
    tpu.vector_store %arg4[%c0_9, %c0_10, %c0_11], %22 {strides = array<i32>} : memref<1x1x128xf32, #tpu.memory_space<vmem>>, vector<1x1x128xf32>,
    %23 = arith.mulf %14, %14 : vector<256x128xf32>
    %cst_12 = arith.constant dense<0.000000e+00> : vector<128xf32>
    %24 = vector.multi_reduction <add>, %23, %cst_12 [0] : vector<256x128xf32> to vector<128xf32>
    %25 = vector.shape_cast %24 : vector<128xf32> to vector<1x128xf32>
    %c0_13 = arith.constant 0 : index
    %c0_14 = arith.constant 0 : index
    %c0_15 = arith.constant 0 : index
    %26 = vector.load %arg5[%c0_13, %c0_14, %c0_15] : memref<1x1x128xf32, #tpu.memory_space<vmem>>, vector<1x1x128xf32>
    %27 = vector.shape_cast %26 : vector<1x1x128xf32> to vector<1x128xf32>
    %28 = vector.shape_cast %25 : vector<1x128xf32> to vector<1x1x128xf32>
    tpu.vector_store %arg5[%c0_13, %c0_14, %c0_15], %28 {strides = array<i32>} : memref<1x1x128xf32, #tpu.memory_space<vmem>>, vector<1x1x128xf32>,
    return
  }
  func.func @transform_0(%arg0: i32) -> (i32, i32, i32, i32) {
    %c0_i32 = arith.constant 0 : i32
    %c0_i32_0 = arith.constant 0 : i32
    %c0_i32_1 = arith.constant 0 : i32
    %c0_i32_2 = arith.constant 0 : i32
    return %arg0, %c0_i32, %c0_i32_0, %c0_i32_1 : i32, i32, i32, i32
  }
  func.func @transform_1(%arg0: i32) -> (i32, i32) {
    %c0_i32 = arith.constant 0 : i32
    %c0_i32_0 = arith.constant 0 : i32
    %c0_i32_1 = arith.constant 0 : i32
    return %c0_i32, %c0_i32_0 : i32, i32
  }
  func.func @transform_2(%arg0: i32) -> (i32, i32, i32) {
    %c0_i32 = arith.constant 0 : i32
    %c0_i32_0 = arith.constant 0 : i32
    %c0_i32_1 = arith.constant 0 : i32
    return %arg0, %c0_i32, %c0_i32_0 : i32, i32, i32
  }
  func.func @transform_3(%arg0: i32) -> (i32, i32, i32) {
    %c0_i32 = arith.constant 0 : i32
    %c0_i32_0 = arith.constant 0 : i32
    %c0_i32_1 = arith.constant 0 : i32
    return %arg0, %c0_i32, %c0_i32_0 : i32, i32, i32
  }
  func.func @transform_4(%arg0: i32) -> (i32, i32, i32) {
    %c0_i32 = arith.constant 0 : i32
    %c0_i32_0 = arith.constant 0 : i32
    %c0_i32_1 = arith.constant 0 : i32
    return %arg0, %c0_i32, %c0_i32_0 : i32, i32, i32
  }
}

module attributes {stable_mosaic.version = 11 : i64} {
  func.func @_bn_relu_kernel(%arg0: i32, %arg1: memref<1x256x128xf32, #tpu.memory_space<vmem>>, %arg2: memref<1x128xf32, #tpu.memory_space<vmem>>, %arg3: memref<1x128xf32, #tpu.memory_space<vmem>>, %arg4: memref<1x256x128xf32, #tpu.memory_space<vmem>>) attributes {dimension_semantics = [#tpu.dimension_semantics<parallel>], iteration_bounds = array<i64: 2>, scalar_prefetch = 0 : i64, scratch_operands = 0 : i64, tpu.core_type = #tpu.core_type<tc>, window_params = [{transform_indices = @transform_0, window_bounds = array<i64: 1, 256, 128>}, {pipeline_mode = #tpu.pipeline_mode<synchronous>, transform_indices = @transform_1, window_bounds = array<i64: 1, 128>}, {pipeline_mode = #tpu.pipeline_mode<synchronous>, transform_indices = @transform_2, window_bounds = array<i64: 1, 128>}, {transform_indices = @transform_3, window_bounds = array<i64: 1, 256, 128>}]} {
    %c0 = arith.constant 0 : index
    %c0_0 = arith.constant 0 : index
    %c0_1 = arith.constant 0 : index
    %0 = vector.load %arg1[%c0, %c0_0, %c0_1] : memref<1x256x128xf32, #tpu.memory_space<vmem>>, vector<1x256x128xf32>
    %1 = vector.shape_cast %0 : vector<1x256x128xf32> to vector<256x128xf32>
    %c0_2 = arith.constant 0 : index
    %c0_3 = arith.constant 0 : index
    %2 = vector.load %arg2[%c0_2, %c0_3] : memref<1x128xf32, #tpu.memory_space<vmem>>, vector<1x128xf32>
    %3 = vector.broadcast %2 : vector<1x128xf32> to vector<256x128xf32>
    %4 = arith.mulf %1, %3 : vector<256x128xf32>
    %c0_4 = arith.constant 0 : index
    %c0_5 = arith.constant 0 : index
    %5 = vector.load %arg3[%c0_4, %c0_5] : memref<1x128xf32, #tpu.memory_space<vmem>>, vector<1x128xf32>
    %6 = vector.broadcast %5 : vector<1x128xf32> to vector<256x128xf32>
    %7 = arith.addf %4, %6 : vector<256x128xf32>
    %cst = arith.constant 0.000000e+00 : f32
    %8 = vector.broadcast %cst : f32 to vector<256x128xf32>
    %9 = arith.maximumf %7, %8 : vector<256x128xf32>
    %c0_6 = arith.constant 0 : index
    %c0_7 = arith.constant 0 : index
    %c0_8 = arith.constant 0 : index
    %10 = vector.load %arg4[%c0_6, %c0_7, %c0_8] : memref<1x256x128xf32, #tpu.memory_space<vmem>>, vector<1x256x128xf32>
    %11 = vector.shape_cast %10 : vector<1x256x128xf32> to vector<256x128xf32>
    %12 = vector.shape_cast %9 : vector<256x128xf32> to vector<1x256x128xf32>
    tpu.vector_store %arg4[%c0_6, %c0_7, %c0_8], %12 {strides = array<i32>} : memref<1x256x128xf32, #tpu.memory_space<vmem>>, vector<1x256x128xf32>,
    return
  }
  func.func @transform_0(%arg0: i32) -> (i32, i32, i32) {
    %c0_i32 = arith.constant 0 : i32
    %c0_i32_0 = arith.constant 0 : i32
    %c0_i32_1 = arith.constant 0 : i32
    return %arg0, %c0_i32, %c0_i32_0 : i32, i32, i32
  }
  func.func @transform_1(%arg0: i32) -> (i32, i32) {
    %c0_i32 = arith.constant 0 : i32
    %c0_i32_0 = arith.constant 0 : i32
    %c0_i32_1 = arith.constant 0 : i32
    return %c0_i32, %c0_i32_0 : i32, i32
  }
  func.func @transform_2(%arg0: i32) -> (i32, i32) {
    %c0_i32 = arith.constant 0 : i32
    %c0_i32_0 = arith.constant 0 : i32
    %c0_i32_1 = arith.constant 0 : i32
    return %c0_i32, %c0_i32_0 : i32, i32
  }
  func.func @transform_3(%arg0: i32) -> (i32, i32, i32) {
    %c0_i32 = arith.constant 0 : i32
    %c0_i32_0 = arith.constant 0 : i32
    %c0_i32_1 = arith.constant 0 : i32
    return %arg0, %c0_i32, %c0_i32_0 : i32, i32, i32
  }
}

</mosaic_0001>

<llo_original>
// kernel: double_conv_forward.7
$region0: #{double_conv_forward.7}
  #allocation0 [shape = 'u32[]', space=smem, size = 0x4, offset = 0x4, fixed_abs, tag = 'smem constant byte address 0x4 - core index']
  #allocation1 [shape = 'u32[144,128]{1,0:T(1,128)}', space=vmem, size = 0x12000, scoped, tag = 'internal scratch']
  %s0 = inlined_call_operand.vmem [shape: f32[2,256,128], index: 0, kind: input, shape index: {}]
  %s1 = inlined_call_operand.vmem [shape: f32[1,128], index: 1, kind: input, shape index: {}]
  %s2 = inlined_call_operand.vmem [shape: f32[1,128], index: 2, kind: input, shape index: {}]
  %s3 = inlined_call_operand.vmem [shape: f32[2,256,128], index: 3, kind: output, shape index: {}]
  %s4 = sld [smem:[#allocation0]]
  $region45: #{double_conv_forward.7} parent=0
    _
  %s6 = ssub.s32 1, %s4
  %s7 = scalar_select 0, %s6, %s4
  loop: start=0, step=1, limit=4
  $region2: #{double_conv_forward.7} parent=0 // loop_pre_header
    _
  $region3: #{double_conv_forward.7} parent=0 // loop_header
    %s9 = sphi 0, %s13
    %p10 = scmp.ge.s32.totalorder %s9, 4
    %s19 = sphi 0, %s21
    %s22 = sphi 0, %s19
    %s23 = sphi 0, %s22
    %s39 = sphi 0, %s23
    %s43 = sphi 0, %s43
    %s45 = sphi 0, %s43
    %s46 = sphi 0, %s45
    %s60 = sphi 0, %s46
    %s64 = sphi 0, %s64
    %s66 = sphi 0, %s64
    %s67 = sphi 0, %s66
    %s81 = sphi 0, %s67
    %s87 = sphi 0, %s89
    %s90 = sphi 0, %s87
    %s91 = sphi 0, %s90
    %s107 = sphi 0, %s91
  $region4: #{double_conv_forward.7} parent=0 // loop_header_branch
    %12 = sbr.rel (%p10) target = $region8
  $region5: #{double_conv_forward.7} parent=0 // loop_body
    %s14 = ssub.s32 %s9, 1
    %s15 = ssub.s32 %s9, 2
    %s16 = sadd.s32 %s9, 1
    %s17 = ssub.s32 %s9, %s16
    %p18 = scmp.eq.s32.totalorder %s17, 0
    %s20 = sadd.s32 %s19, 1
    %s21 = scalar_select %p18, %s19, %s20
    %p24 = pneg %p18
    %p25 = scmp.eq.s32.totalorder %s9, 1
    %p26 = por %p24, %p25
    %p27 = scmp.ne.s32.totalorder %s19, %s22
    %p28 = scmp.eq.s32.totalorder %s9, 0
    %p29 = por %p27, %p28
    %p30 = scmp.ne.s32.totalorder %s19, %s22
    %p31 = scmp.eq.s32.totalorder %s14, 1
    %p32 = por %p30, %p31
    %p33 = scmp.ne.s32.totalorder %s22, %s23
    %p34 = scmp.eq.s32.totalorder %s14, 0
    %p35 = por %p33, %p34
    %p36 = scmp.ne.s32.totalorder %s22, %s23
    %p37 = scmp.eq.s32.totalorder %s15, 1
    %p38 = por %p36, %p37
    %p40 = scmp.ne.s32.totalorder %s23, %s39
    %p41 = scmp.eq.s32.totalorder %s15, 0
    %p42 = por %p40, %p41
    %s44 = sadd.s32 %s43, 1
    %p47 = scmp.eq.s32.totalorder %s9, 1
    %p48 = scmp.ne.s32.totalorder %s43, %s45
    %p49 = scmp.eq.s32.totalorder %s9, 0
    %p50 = por %p48, %p49
    %p51 = scmp.ne.s32.totalorder %s43, %s45
    %p52 = scmp.eq.s32.totalorder %s14, 1
    %p53 = por %p51, %p52
    %p54 = scmp.ne.s32.totalorder %s45, %s46
    %p55 = scmp.eq.s32.totalorder %s14, 0
    %p56 = por %p54, %p55
    %p57 = scmp.ne.s32.totalorder %s45, %s46
    %p58 = scmp.eq.s32.totalorder %s15, 1
    %p59 = por %p57, %p58
    %p61 = scmp.ne.s32.totalorder %s46, %s60
    %p62 = scmp.eq.s32.totalorder %s15, 0
    %p63 = por %p61, %p62
    %s65 = sadd.s32 %s64, 1
    %p68 = scmp.eq.s32.totalorder %s9, 1
    %p69 = scmp.ne.s32.totalorder %s64, %s66
    %p70 = scmp.eq.s32.totalorder %s9, 0
    %p71 = por %p69, %p70
    %p72 = scmp.ne.s32.totalorder %s64, %s66
    %p73 = scmp.eq.s32.totalorder %s14, 1
    %p74 = por %p72, %p73
    %p75 = scmp.ne.s32.totalorder %s66, %s67
    %p76 = scmp.eq.s32.totalorder %s14, 0
    %p77 = por %p75, %p76
    %p78 = scmp.ne.s32.totalorder %s66, %s67
    %p79 = scmp.eq.s32.totalorder %s15, 1
    %p80 = por %p78, %p79
    %p82 = scmp.ne.s32.totalorder %s67, %s81
    %p83 = scmp.eq.s32.totalorder %s15, 0
    %p84 = por %p82, %p83
    %s85 = ssub.s32 %s9, %s16
    %p86 = scmp.eq.s32.totalorder %s85, 0
    %s88 = sadd.s32 %s87, 1
    %s89 = scalar_select %p86, %s87, %s88
    %p92 = pneg %p86
    %p93 = scmp.eq.s32.totalorder %s9, 1
    %p94 = por %p92, %p93
    %p95 = scmp.ne.s32.totalorder %s87, %s90
    %p96 = scmp.eq.s32.totalorder %s9, 0
    %p97 = por %p95, %p96
    %p98 = scmp.ne.s32.totalorder %s87, %s90
    %p99 = scmp.eq.s32.totalorder %s14, 1
    %p100 = por %p98, %p99
    %p101 = scmp.ne.s32.totalorder %s90, %s91
    %p102 = scmp.eq.s32.totalorder %s14, 0
    %p103 = por %p101, %p102
    %p104 = scmp.ne.s32.totalorder %s90, %s91
    %p105 = scmp.eq.s32.totalorder %s15, 1
    %p106 = por %p104, %p105
    %p108 = scmp.ne.s32.totalorder %s91, %s107
    %p109 = scmp.eq.s32.totalorder %s15, 0
    %p110 = por %p108, %p109
    %p111 = scmp.le.s32.totalorder 1, %s9
    %p112 = scmp.lt.s32.totalorder %s9, 3
    %p113 = pnand %p111, %p112
    %p114 = pneg %p113
    // Predicated region
    $region9: #{double_conv_forward.7} parent=5 // pred_check
      _
    $region10: #{double_conv_forward.7} parent=5 // pred_check_branch
      %116 = sbr.rel (%p113) target = $region12
    $region11: #{double_conv_forward.7} parent=5 // pred_region
      %s117 = ssub.s32 %s9, 1
      // Predicated region
      $region13: #{double_conv_forward.7} parent=11 // pred_check
        %p118 = pneg %p56
      $region14: #{double_conv_forward.7} parent=11 // pred_check_branch
        %120 = sbr.rel (%p118) target = $region16
      $region15: #{double_conv_forward.7} parent=11 // pred_region
        _
      $region16: #{double_conv_forward.7} parent=11 // pred_fallthru
        _
      // Predicated region
      $region17: #{double_conv_forward.7} parent=11 // pred_check
        %p121 = pneg %p77
      $region18: #{double_conv_forward.7} parent=11 // pred_check_branch
        %123 = sbr.rel (%p121) target = $region20
      $region19: #{double_conv_forward.7} parent=11 // pred_region
        _
      $region20: #{double_conv_forward.7} parent=11 // pred_fallthru
        _
    $region12: #{double_conv_forward.7} parent=5 // pred_fallthru
      _
    %p124 = scmp.lt.s32.totalorder %s9, 2
    // Predicated region
    $region21: #{double_conv_forward.7} parent=5 // pred_check
      %p125 = pneg %p124
    $region22: #{double_conv_forward.7} parent=5 // pred_check_branch
      %127 = sbr.rel (%p125) target = $region24
    $region23: #{double_conv_forward.7} parent=5 // pred_region
      // Predicated region
      $region25: #{double_conv_forward.7} parent=23 // pred_check
        %p128 = pneg %p29
      $region26: #{double_conv_forward.7} parent=23 // pred_check_branch
        %130 = sbr.rel (%p128) target = $region28
      $region27: #{double_conv_forward.7} parent=23 // pred_region
        %p131 = scmp.lt.s32.totalorder %s9, 1
        %s132 = scalar_select %p131, %s9, 1
        %s133 = smul.addr %s132, 32
        %s134 = smul.addr %s133, 8
        %s135 = scalar_lea.vmem %s0, %s134
      $region28: #{double_conv_forward.7} parent=23 // pred_fallthru
        _
    $region24: #{double_conv_forward.7} parent=5 // pred_fallthru
      _
    %p136 = scmp.le.s32.totalorder 1, %s9
    %p137 = scmp.lt.s32.totalorder %s9, 3
    %p138 = pnand %p136, %p137
    %p139 = pneg %p138
    // Predicated region
    $region29: #{double_conv_forward.7} parent=5 // pred_check
      _
    $region30: #{double_conv_forward.7} parent=5 // pred_check_branch
      %141 = sbr.rel (%p138) target = $region32
    $region31: #{double_conv_forward.7} parent=5 // pred_region
      %s142 = ssub.s32 %s9, 1
      %p143 = scmp.lt.s32.totalorder %s14, 1
      %s144 = scalar_select %p143, %s14, 1
      %s145 = smul.addr %s144, 32
      %s146 = smul.addr %s145, 8
      %s147 = scalar_lea.vmem %s0, %s146
      %p148 = pneg %p35
      %p149 = pneg %p32
      %p150 = pneg %p56
      %p151 = pneg %p53
      %p152 = pneg %p77
      %p153 = pneg %p74
      %p154 = pneg %p103
      %p155 = pneg %p100
      %p156 = scmp.lt.s32.totalorder %s14, 1
      %s157 = scalar_select %p156, %s14, 1
      %s158 = smul.addr %s157, 32
      %s159 = smul.addr %s158, 8
      %s160 = scalar_lea.vmem %s3, %s159
      %p161 = scmp.lt.s32.totalorder %s14, 1
      %s162 = scalar_select %p161, %s14, 1
      %s163 = smul.addr %s162, 32
      %s164 = smul.addr %s163, 8
      %s165 = scalar_lea.vmem %s0, %s164
      %p166 = scmp.lt.s32.totalorder %s14, 1
      %s167 = scalar_select %p166, %s14, 1
      %s168 = smul.addr %s167, 32
      %s169 = smul.addr %s168, 8
      %s170 = scalar_lea.vmem %s3, %s169
      %v171 = vld [vmem:[%s165] sm:$0xff]
      %v172 = vld [vmem:[%s165 + $0x8] sm:$0xff]
      %v173 = vld [vmem:[%s165 + $0x10] sm:$0xff]
      %v174 = vld [vmem:[%s165 + $0x18] sm:$0xff]
      %v175 = vld [vmem:[%s165 + $0x20] sm:$0xff]
      %v176 = vld [vmem:[%s165 + $0x28] sm:$0xff]
      %v177 = vld [vmem:[%s165 + $0x30] sm:$0xff]
      %v178 = vld [vmem:[%s165 + $0x38] sm:$0xff]
      %v179 = vld [vmem:[%s165 + $0x40] sm:$0xff]
      %v180 = vld [vmem:[%s165 + $0x48] sm:$0xff]
      %v181 = vld [vmem:[%s165 + $0x50] sm:$0xff]
      %v182 = vld [vmem:[%s165 + $0x58] sm:$0xff]
      %v183 = vld [vmem:[%s165 + $0x60] sm:$0xff]
      %v184 = vld [vmem:[%s165 + $0x68] sm:$0xff]
      %v185 = vld [vmem:[%s165 + $0x70] sm:$0xff]
      %v186 = vld [vmem:[%s165 + $0x78] sm:$0xff]
      %v187 = vld [vmem:[%s165 + $0x80] sm:$0xff]
      %v188 = vld [vmem:[%s165 + $0x88] sm:$0xff]
      %v189 = vld [vmem:[%s165 + $0x90] sm:$0xff]
      %v190 = vld [vmem:[%s165 + $0x98] sm:$0xff]
      %v191 = vld [vmem:[%s165 + $0xa0] sm:$0xff]
      %v192 = vld [vmem:[%s165 + $0xa8] sm:$0xff]
      %v193 = vld [vmem:[%s165 + $0xb0] sm:$0xff]
      %v194 = vld [vmem:[%s165 + $0xb8] sm:$0xff]
      %v195 = vld [vmem:[%s165 + $0xc0] sm:$0xff]
      %v196 = vld [vmem:[%s165 + $0xc8] sm:$0xff]
      %v197 = vld [vmem:[%s165 + $0xd0] sm:$0xff]
      %v198 = vld [vmem:[%s165 + $0xd8] sm:$0xff]
      %v199 = vld [vmem:[%s165 + $0xe0] sm:$0xff]
      %v200 = vld [vmem:[%s165 + $0xe8] sm:$0xff]
      %v201 = vld [vmem:[%s165 + $0xf0] sm:$0xff]
      %v202 = vld [vmem:[%s165 + $0xf8] sm:$0xff]
      %v203 = vld [vmem:[%s1] sm:$0x1]
      %v205 = vlaneseq
      %v206 = vshrl.u32 %v205, 7
      %v207 = vsub.s32 0, %v206
      %v208 = vrot.slane %v203, %v207
      %v210 = vmul.f32 %v171, %v208
      %v211 = vmul.f32 %v172, %v208
      %v212 = vmul.f32 %v173, %v208
      %v213 = vmul.f32 %v174, %v208
      %v214 = vmul.f32 %v175, %v208
      %v215 = vmul.f32 %v176, %v208
      %v216 = vmul.f32 %v177, %v208
      %v217 = vmul.f32 %v178, %v208
      %v218 = vmul.f32 %v179, %v208
      %v219 = vmul.f32 %v180, %v208
      %v220 = vmul.f32 %v181, %v208
      %v221 = vmul.f32 %v182, %v208
      %v222 = vmul.f32 %v183, %v208
      %v223 = vmul.f32 %v184, %v208
      %v224 = vmul.f32 %v185, %v208
      %v225 = vmul.f32 %v186, %v208
      %v226 = vmul.f32 %v187, %v208
      %v227 = vmul.f32 %v188, %v208
      %v228 = vmul.f32 %v189, %v208
      %v229 = vmul.f32 %v190, %v208
      %v230 = vmul.f32 %v191, %v208
      %v231 = vmul.f32 %v192, %v208
      %v232 = vmul.f32 %v193, %v208
      %v233 = vmul.f32 %v194, %v208
      %v234 = vmul.f32 %v195, %v208
      %v235 = vmul.f32 %v196, %v208
      %v236 = vmul.f32 %v197, %v208
      %v237 = vmul.f32 %v198, %v208
      %v238 = vmul.f32 %v199, %v208
      %v239 = vmul.f32 %v200, %v208
      %v240 = vmul.f32 %v201, %v208
      %v241 = vmul.f32 %v202, %v208
      %v242 = vld [vmem:[%s2] sm:$0x1]
      %v244 = vlaneseq
      %v245 = vshrl.u32 %v244, 7
      %v246 = vsub.s32 0, %v245
      %v247 = vrot.slane %v242, %v246
      %v249 = vadd.f32 %v210, %v247
      %v250 = vadd.f32 %v211, %v247
      %v251 = vadd.f32 %v212, %v247
      %v252 = vadd.f32 %v213, %v247
      %v253 = vadd.f32 %v214, %v247
      %v254 = vadd.f32 %v215, %v247
      %v255 = vadd.f32 %v216, %v247
      %v256 = vadd.f32 %v217, %v247
      %v257 = vadd.f32 %v218, %v247
      %v258 = vadd.f32 %v219, %v247
      %v259 = vadd.f32 %v220, %v247
      %v260 = vadd.f32 %v221, %v247
      %v261 = vadd.f32 %v222, %v247
      %v262 = vadd.f32 %v223, %v247
      %v263 = vadd.f32 %v224, %v247
      %v264 = vadd.f32 %v225, %v247
      %v265 = vadd.f32 %v226, %v247
      %v266 = vadd.f32 %v227, %v247
      %v267 = vadd.f32 %v228, %v247
      %v268 = vadd.f32 %v229, %v247
      %v269 = vadd.f32 %v230, %v247
      %v270 = vadd.f32 %v231, %v247
      %v271 = vadd.f32 %v232, %v247
      %v272 = vadd.f32 %v233, %v247
      %v273 = vadd.f32 %v234, %v247
      %v274 = vadd.f32 %v235, %v247
      %v275 = vadd.f32 %v236, %v247
      %v276 = vadd.f32 %v237, %v247
      %v277 = vadd.f32 %v238, %v247
      %v278 = vadd.f32 %v239, %v247
      %v279 = vadd.f32 %v240, %v247
      %v280 = vadd.f32 %v241, %v247
      %v281 = vmax.f32 %v249, 0.0
      %v282 = vmax.f32 %v250, 0.0
      %v283 = vmax.f32 %v251, 0.0
      %v284 = vmax.f32 %v252, 0.0
      %v285 = vmax.f32 %v253, 0.0
      %v286 = vmax.f32 %v254, 0.0
      %v287 = vmax.f32 %v255, 0.0
      %v288 = vmax.f32 %v256, 0.0
      %v289 = vmax.f32 %v257, 0.0
      %v290 = vmax.f32 %v258, 0.0
      %v291 = vmax.f32 %v259, 0.0
      %v292 = vmax.f32 %v260, 0.0
      %v293 = vmax.f32 %v261, 0.0
      %v294 = vmax.f32 %v262, 0.0
      %v295 = vmax.f32 %v263, 0.0
      %v296 = vmax.f32 %v264, 0.0
      %v297 = vmax.f32 %v265, 0.0
      %v298 = vmax.f32 %v266, 0.0
      %v299 = vmax.f32 %v267, 0.0
      %v300 = vmax.f32 %v268, 0.0
      %v301 = vmax.f32 %v269, 0.0
      %v302 = vmax.f32 %v270, 0.0
      %v303 = vmax.f32 %v271, 0.0
      %v304 = vmax.f32 %v272, 0.0
      %v305 = vmax.f32 %v273, 0.0
      %v306 = vmax.f32 %v274, 0.0
      %v307 = vmax.f32 %v275, 0.0
      %v308 = vmax.f32 %v276, 0.0
      %v309 = vmax.f32 %v277, 0.0
      %v310 = vmax.f32 %v278, 0.0
      %v311 = vmax.f32 %v279, 0.0
      %v312 = vmax.f32 %v280, 0.0
      %313 = vst [vmem:[%s170] sm:$0xff] %v281
      %314 = vst [vmem:[%s170 + $0x8] sm:$0xff] %v282
      %315 = vst [vmem:[%s170 + $0x10] sm:$0xff] %v283
      %316 = vst [vmem:[%s170 + $0x18] sm:$0xff] %v284
      %317 = vst [vmem:[%s170 + $0x20] sm:$0xff] %v285
      %318 = vst [vmem:[%s170 + $0x28] sm:$0xff] %v286
      %319 = vst [vmem:[%s170 + $0x30] sm:$0xff] %v287
      %320 = vst [vmem:[%s170 + $0x38] sm:$0xff] %v288
      %321 = vst [vmem:[%s170 + $0x40] sm:$0xff] %v289
      %322 = vst [vmem:[%s170 + $0x48] sm:$0xff] %v290
      %323 = vst [vmem:[%s170 + $0x50] sm:$0xff] %v291
      %324 = vst [vmem:[%s170 + $0x58] sm:$0xff] %v292
      %325 = vst [vmem:[%s170 + $0x60] sm:$0xff] %v293
      %326 = vst [vmem:[%s170 + $0x68] sm:$0xff] %v294
      %327 = vst [vmem:[%s170 + $0x70] sm:$0xff] %v295
      %328 = vst [vmem:[%s170 + $0x78] sm:$0xff] %v296
      %329 = vst [vmem:[%s170 + $0x80] sm:$0xff] %v297
      %330 = vst [vmem:[%s170 + $0x88] sm:$0xff] %v298
      %331 = vst [vmem:[%s170 + $0x90] sm:$0xff] %v299
      %332 = vst [vmem:[%s170 + $0x98] sm:$0xff] %v300
      %333 = vst [vmem:[%s170 + $0xa0] sm:$0xff] %v301
      %334 = vst [vmem:[%s170 + $0xa8] sm:$0xff] %v302
      %335 = vst [vmem:[%s170 + $0xb0] sm:$0xff] %v303
      %336 = vst [vmem:[%s170 + $0xb8] sm:$0xff] %v304
      %337 = vst [vmem:[%s170 + $0xc0] sm:$0xff] %v305
      %338 = vst [vmem:[%s170 + $0xc8] sm:$0xff] %v306
      %339 = vst [vmem:[%s170 + $0xd0] sm:$0xff] %v307
      %340 = vst [vmem:[%s170 + $0xd8] sm:$0xff] %v308
      %341 = vst [vmem:[%s170 + $0xe0] sm:$0xff] %v309
      %342 = vst [vmem:[%s170 + $0xe8] sm:$0xff] %v310
      %343 = vst [vmem:[%s170 + $0xf0] sm:$0xff] %v311
      %344 = vst [vmem:[%s170 + $0xf8] sm:$0xff] %v312
      %p345 = scmp.lt.s32.totalorder %s14, 1
      %s346 = scalar_select %p345, %s14, 1
      %s347 = smul.addr %s346, 32
      %s348 = smul.addr %s347, 8
      %s349 = scalar_lea.vmem %s3, %s348
      // Predicated region
      $region33: #{double_conv_forward.7} parent=31 // pred_check
        %p350 = pneg %p100
      $region34: #{double_conv_forward.7} parent=31 // pred_check_branch
        %352 = sbr.rel (%p350) target = $region36
      $region35: #{double_conv_forward.7} parent=31 // pred_region
        _
      $region36: #{double_conv_forward.7} parent=31 // pred_fallthru
        _
    $region32: #{double_conv_forward.7} parent=5 // pred_fallthru
      _
    %p353 = scmp.le.s32.totalorder 2, %s9
    // Predicated region
    $region37: #{double_conv_forward.7} parent=5 // pred_check
      %p354 = pneg %p353
    $region38: #{double_conv_forward.7} parent=5 // pred_check_branch
      %356 = sbr.rel (%p354) target = $region40
    $region39: #{double_conv_forward.7} parent=5 // pred_region
      %s357 = ssub.s32 %s9, 2
      // Predicated region
      $region41: #{double_conv_forward.7} parent=39 // pred_check
        %p358 = pneg %p106
      $region42: #{double_conv_forward.7} parent=39 // pred_check_branch
        %360 = sbr.rel (%p358) target = $region44
      $region43: #{double_conv_forward.7} parent=39 // pred_region
        %p361 = scmp.lt.s32.totalorder %s15, 1
        %s362 = scalar_select %p361, %s15, 1
        %s363 = smul.addr %s362, 32
        %s364 = smul.addr %s363, 8
        %s365 = scalar_lea.vmem %s3, %s364
      $region44: #{double_conv_forward.7} parent=39 // pred_fallthru
        _
    $region40: #{double_conv_forward.7} parent=5 // pred_fallthru
      _
  $region6: #{double_conv_forward.7} parent=0 // loop_footer
    %s13 = sadd.s32 1, %s9
  $region7: #{double_conv_forward.7} parent=0 // loop_footer_branch
    %8 = sbr.rel target = $region3
  $region8: #{double_conv_forward.7} parent=0 // loop_exit
    _

// kernel: double_conv_forward.5
$region0: #{double_conv_forward.5}
  #allocation0 [shape = 'u32[]', space=smem, size = 0x4, offset = 0x4, fixed_abs, tag = 'smem constant byte address 0x4 - core index']
  #allocation1 [shape = 'u32[144,128]{1,0:T(1,128)}', space=vmem, size = 0x12000, scoped, tag = 'internal scratch']
  %s0 = inlined_call_operand.vmem [shape: f32[2,256,128], index: 0, kind: input, shape index: {}]
  %s1 = inlined_call_operand.vmem [shape: f32[1,128], index: 1, kind: input, shape index: {}]
  %s2 = inlined_call_operand.vmem [shape: f32[1,128], index: 2, kind: input, shape index: {}]
  %s3 = inlined_call_operand.vmem [shape: bf16[2,256,128], index: 3, kind: output, shape index: {}]
  %s4 = sld [smem:[#allocation0]]
  $region45: #{double_conv_forward.5} parent=0
    _
  %s6 = ssub.s32 1, %s4
  %s7 = scalar_select 0, %s6, %s4
  loop: start=0, step=1, limit=4
  $region2: #{double_conv_forward.5} parent=0 // loop_pre_header
    _
  $region3: #{double_conv_forward.5} parent=0 // loop_header
    %s9 = sphi 0, %s13
    %p10 = scmp.ge.s32.totalorder %s9, 4
    %s19 = sphi 0, %s21
    %s22 = sphi 0, %s19
    %s23 = sphi 0, %s22
    %s39 = sphi 0, %s23
    %s43 = sphi 0, %s43
    %s45 = sphi 0, %s43
    %s46 = sphi 0, %s45
    %s60 = sphi 0, %s46
    %s64 = sphi 0, %s64
    %s66 = sphi 0, %s64
    %s67 = sphi 0, %s66
    %s81 = sphi 0, %s67
    %s87 = sphi 0, %s89
    %s90 = sphi 0, %s87
    %s91 = sphi 0, %s90
    %s107 = sphi 0, %s91
  $region4: #{double_conv_forward.5} parent=0 // loop_header_branch
    %12 = sbr.rel (%p10) target = $region8
  $region5: #{double_conv_forward.5} parent=0 // loop_body
    %s14 = ssub.s32 %s9, 1
    %s15 = ssub.s32 %s9, 2
    %s16 = sadd.s32 %s9, 1
    %s17 = ssub.s32 %s9, %s16
    %p18 = scmp.eq.s32.totalorder %s17, 0
    %s20 = sadd.s32 %s19, 1
    %s21 = scalar_select %p18, %s19, %s20
    %p24 = pneg %p18
    %p25 = scmp.eq.s32.totalorder %s9, 1
    %p26 = por %p24, %p25
    %p27 = scmp.ne.s32.totalorder %s19, %s22
    %p28 = scmp.eq.s32.totalorder %s9, 0
    %p29 = por %p27, %p28
    %p30 = scmp.ne.s32.totalorder %s19, %s22
    %p31 = scmp.eq.s32.totalorder %s14, 1
    %p32 = por %p30, %p31
    %p33 = scmp.ne.s32.totalorder %s22, %s23
    %p34 = scmp.eq.s32.totalorder %s14, 0
    %p35 = por %p33, %p34
    %p36 = scmp.ne.s32.totalorder %s22, %s23
    %p37 = scmp.eq.s32.totalorder %s15, 1
    %p38 = por %p36, %p37
    %p40 = scmp.ne.s32.totalorder %s23, %s39
    %p41 = scmp.eq.s32.totalorder %s15, 0
    %p42 = por %p40, %p41
    %s44 = sadd.s32 %s43, 1
    %p47 = scmp.eq.s32.totalorder %s9, 1
    %p48 = scmp.ne.s32.totalorder %s43, %s45
    %p49 = scmp.eq.s32.totalorder %s9, 0
    %p50 = por %p48, %p49
    %p51 = scmp.ne.s32.totalorder %s43, %s45
    %p52 = scmp.eq.s32.totalorder %s14, 1
    %p53 = por %p51, %p52
    %p54 = scmp.ne.s32.totalorder %s45, %s46
    %p55 = scmp.eq.s32.totalorder %s14, 0
    %p56 = por %p54, %p55
    %p57 = scmp.ne.s32.totalorder %s45, %s46
    %p58 = scmp.eq.s32.totalorder %s15, 1
    %p59 = por %p57, %p58
    %p61 = scmp.ne.s32.totalorder %s46, %s60
    %p62 = scmp.eq.s32.totalorder %s15, 0
    %p63 = por %p61, %p62
    %s65 = sadd.s32 %s64, 1
    %p68 = scmp.eq.s32.totalorder %s9, 1
    %p69 = scmp.ne.s32.totalorder %s64, %s66
    %p70 = scmp.eq.s32.totalorder %s9, 0
    %p71 = por %p69, %p70
    %p72 = scmp.ne.s32.totalorder %s64, %s66
    %p73 = scmp.eq.s32.totalorder %s14, 1
    %p74 = por %p72, %p73
    %p75 = scmp.ne.s32.totalorder %s66, %s67
    %p76 = scmp.eq.s32.totalorder %s14, 0
    %p77 = por %p75, %p76
    %p78 = scmp.ne.s32.totalorder %s66, %s67
    %p79 = scmp.eq.s32.totalorder %s15, 1
    %p80 = por %p78, %p79
    %p82 = scmp.ne.s32.totalorder %s67, %s81
    %p83 = scmp.eq.s32.totalorder %s15, 0
    %p84 = por %p82, %p83
    %s85 = ssub.s32 %s9, %s16
    %p86 = scmp.eq.s32.totalorder %s85, 0
    %s88 = sadd.s32 %s87, 1
    %s89 = scalar_select %p86, %s87, %s88
    %p92 = pneg %p86
    %p93 = scmp.eq.s32.totalorder %s9, 1
    %p94 = por %p92, %p93
    %p95 = scmp.ne.s32.totalorder %s87, %s90
    %p96 = scmp.eq.s32.totalorder %s9, 0
    %p97 = por %p95, %p96
    %p98 = scmp.ne.s32.totalorder %s87, %s90
    %p99 = scmp.eq.s32.totalorder %s14, 1
    %p100 = por %p98, %p99
    %p101 = scmp.ne.s32.totalorder %s90, %s91
    %p102 = scmp.eq.s32.totalorder %s14, 0
    %p103 = por %p101, %p102
    %p104 = scmp.ne.s32.totalorder %s90, %s91
    %p105 = scmp.eq.s32.totalorder %s15, 1
    %p106 = por %p104, %p105
    %p108 = scmp.ne.s32.totalorder %s91, %s107
    %p109 = scmp.eq.s32.totalorder %s15, 0
    %p110 = por %p108, %p109
    %p111 = scmp.le.s32.totalorder 1, %s9
    %p112 = scmp.lt.s32.totalorder %s9, 3
    %p113 = pnand %p111, %p112
    %p114 = pneg %p113
    // Predicated region
    $region9: #{double_conv_forward.5} parent=5 // pred_check
      _
    $region10: #{double_conv_forward.5} parent=5 // pred_check_branch
      %116 = sbr.rel (%p113) target = $region12
    $region11: #{double_conv_forward.5} parent=5 // pred_region
      %s117 = ssub.s32 %s9, 1
      // Predicated region
      $region13: #{double_conv_forward.5} parent=11 // pred_check
        %p118 = pneg %p56
      $region14: #{double_conv_forward.5} parent=11 // pred_check_branch
        %120 = sbr.rel (%p118) target = $region16
      $region15: #{double_conv_forward.5} parent=11 // pred_region
        _
      $region16: #{double_conv_forward.5} parent=11 // pred_fallthru
        _
      // Predicated region
      $region17: #{double_conv_forward.5} parent=11 // pred_check
        %p121 = pneg %p77
      $region18: #{double_conv_forward.5} parent=11 // pred_check_branch
        %123 = sbr.rel (%p121) target = $region20
      $region19: #{double_conv_forward.5} parent=11 // pred_region
        _
      $region20: #{double_conv_forward.5} parent=11 // pred_fallthru
        _
    $region12: #{double_conv_forward.5} parent=5 // pred_fallthru
      _
    %p124 = scmp.lt.s32.totalorder %s9, 2
    // Predicated region
    $region21: #{double_conv_forward.5} parent=5 // pred_check
      %p125 = pneg %p124
    $region22: #{double_conv_forward.5} parent=5 // pred_check_branch
      %127 = sbr.rel (%p125) target = $region24
    $region23: #{double_conv_forward.5} parent=5 // pred_region
      // Predicated region
      $region25: #{double_conv_forward.5} parent=23 // pred_check
        %p128 = pneg %p29
      $region26: #{double_conv_forward.5} parent=23 // pred_check_branch
        %130 = sbr.rel (%p128) target = $region28
      $region27: #{double_conv_forward.5} parent=23 // pred_region
        %p131 = scmp.lt.s32.totalorder %s9, 1
        %s132 = scalar_select %p131, %s9, 1
        %s133 = smul.addr %s132, 32
        %s134 = smul.addr %s133, 8
        %s135 = scalar_lea.vmem %s0, %s134
      $region28: #{double_conv_forward.5} parent=23 // pred_fallthru
        _
    $region24: #{double_conv_forward.5} parent=5 // pred_fallthru
      _
    %p136 = scmp.le.s32.totalorder 1, %s9
    %p137 = scmp.lt.s32.totalorder %s9, 3
    %p138 = pnand %p136, %p137
    %p139 = pneg %p138
    // Predicated region
    $region29: #{double_conv_forward.5} parent=5 // pred_check
      _
    $region30: #{double_conv_forward.5} parent=5 // pred_check_branch
      %141 = sbr.rel (%p138) target = $region32
    $region31: #{double_conv_forward.5} parent=5 // pred_region
      %s142 = ssub.s32 %s9, 1
      %p143 = scmp.lt.s32.totalorder %s14, 1
      %s144 = scalar_select %p143, %s14, 1
      %s145 = smul.addr %s144, 32
      %s146 = smul.addr %s145, 8
      %s147 = scalar_lea.vmem %s0, %s146
      %p148 = pneg %p35
      %p149 = pneg %p32
      %p150 = pneg %p56
      %p151 = pneg %p53
      %p152 = pneg %p77
      %p153 = pneg %p74
      %p154 = pneg %p103
      %p155 = pneg %p100
      %p156 = scmp.lt.s32.totalorder %s14, 1
      %s157 = scalar_select %p156, %s14, 1
      %s158 = smul.addr %s157, 32
      %s159 = smul.addr %s158, 4
      %s160 = scalar_lea.vmem %s3, %s159
      %p161 = scmp.lt.s32.totalorder %s14, 1
      %s162 = scalar_select %p161, %s14, 1
      %s163 = smul.addr %s162, 32
      %s164 = smul.addr %s163, 8
      %s165 = scalar_lea.vmem %s0, %s164
      %p166 = scmp.lt.s32.totalorder %s14, 1
      %s167 = scalar_select %p166, %s14, 1
      %s168 = smul.addr %s167, 32
      %s169 = smul.addr %s168, 4
      %s170 = scalar_lea.vmem %s3, %s169
      %v171 = vld [vmem:[%s165] sm:$0xff]
      %v172 = vld [vmem:[%s165 + $0x8] sm:$0xff]
      %v173 = vld [vmem:[%s165 + $0x10] sm:$0xff]
      %v174 = vld [vmem:[%s165 + $0x18] sm:$0xff]
      %v175 = vld [vmem:[%s165 + $0x20] sm:$0xff]
      %v176 = vld [vmem:[%s165 + $0x28] sm:$0xff]
      %v177 = vld [vmem:[%s165 + $0x30] sm:$0xff]
      %v178 = vld [vmem:[%s165 + $0x38] sm:$0xff]
      %v179 = vld [vmem:[%s165 + $0x40] sm:$0xff]
      %v180 = vld [vmem:[%s165 + $0x48] sm:$0xff]
      %v181 = vld [vmem:[%s165 + $0x50] sm:$0xff]
      %v182 = vld [vmem:[%s165 + $0x58] sm:$0xff]
      %v183 = vld [vmem:[%s165 + $0x60] sm:$0xff]
      %v184 = vld [vmem:[%s165 + $0x68] sm:$0xff]
      %v185 = vld [vmem:[%s165 + $0x70] sm:$0xff]
      %v186 = vld [vmem:[%s165 + $0x78] sm:$0xff]
      %v187 = vld [vmem:[%s165 + $0x80] sm:$0xff]
      %v188 = vld [vmem:[%s165 + $0x88] sm:$0xff]
      %v189 = vld [vmem:[%s165 + $0x90] sm:$0xff]
      %v190 = vld [vmem:[%s165 + $0x98] sm:$0xff]
      %v191 = vld [vmem:[%s165 + $0xa0] sm:$0xff]
      %v192 = vld [vmem:[%s165 + $0xa8] sm:$0xff]
      %v193 = vld [vmem:[%s165 + $0xb0] sm:$0xff]
      %v194 = vld [vmem:[%s165 + $0xb8] sm:$0xff]
      %v195 = vld [vmem:[%s165 + $0xc0] sm:$0xff]
      %v196 = vld [vmem:[%s165 + $0xc8] sm:$0xff]
      %v197 = vld [vmem:[%s165 + $0xd0] sm:$0xff]
      %v198 = vld [vmem:[%s165 + $0xd8] sm:$0xff]
      %v199 = vld [vmem:[%s165 + $0xe0] sm:$0xff]
      %v200 = vld [vmem:[%s165 + $0xe8] sm:$0xff]
      %v201 = vld [vmem:[%s165 + $0xf0] sm:$0xff]
      %v202 = vld [vmem:[%s165 + $0xf8] sm:$0xff]
      %v203 = vld [vmem:[%s1] sm:$0x1]
      %v205 = vlaneseq
      %v206 = vshrl.u32 %v205, 7
      %v207 = vsub.s32 0, %v206
      %v208 = vrot.slane %v203, %v207
      %v210 = vmul.f32 %v171, %v208
      %v211 = vmul.f32 %v172, %v208
      %v212 = vmul.f32 %v173, %v208
      %v213 = vmul.f32 %v174, %v208
      %v214 = vmul.f32 %v175, %v208
      %v215 = vmul.f32 %v176, %v208
      %v216 = vmul.f32 %v177, %v208
      %v217 = vmul.f32 %v178, %v208
      %v218 = vmul.f32 %v179, %v208
      %v219 = vmul.f32 %v180, %v208
      %v220 = vmul.f32 %v181, %v208
      %v221 = vmul.f32 %v182, %v208
      %v222 = vmul.f32 %v183, %v208
      %v223 = vmul.f32 %v184, %v208
      %v224 = vmul.f32 %v185, %v208
      %v225 = vmul.f32 %v186, %v208
      %v226 = vmul.f32 %v187, %v208
      %v227 = vmul.f32 %v188, %v208
      %v228 = vmul.f32 %v189, %v208
      %v229 = vmul.f32 %v190, %v208
      %v230 = vmul.f32 %v191, %v208
      %v231 = vmul.f32 %v192, %v208
      %v232 = vmul.f32 %v193, %v208
      %v233 = vmul.f32 %v194, %v208
      %v234 = vmul.f32 %v195, %v208
      %v235 = vmul.f32 %v196, %v208
      %v236 = vmul.f32 %v197, %v208
      %v237 = vmul.f32 %v198, %v208
      %v238 = vmul.f32 %v199, %v208
      %v239 = vmul.f32 %v200, %v208
      %v240 = vmul.f32 %v201, %v208
      %v241 = vmul.f32 %v202, %v208
      %v242 = vld [vmem:[%s2] sm:$0x1]
      %v244 = vlaneseq
      %v245 = vshrl.u32 %v244, 7
      %v246 = vsub.s32 0, %v245
      %v247 = vrot.slane %v242, %v246
      %v249 = vadd.f32 %v210, %v247
      %v250 = vadd.f32 %v211, %v247
      %v251 = vadd.f32 %v212, %v247
      %v252 = vadd.f32 %v213, %v247
      %v253 = vadd.f32 %v214, %v247
      %v254 = vadd.f32 %v215, %v247
      %v255 = vadd.f32 %v216, %v247
      %v256 = vadd.f32 %v217, %v247
      %v257 = vadd.f32 %v218, %v247
      %v258 = vadd.f32 %v219, %v247
      %v259 = vadd.f32 %v220, %v247
      %v260 = vadd.f32 %v221, %v247
      %v261 = vadd.f32 %v222, %v247
      %v262 = vadd.f32 %v223, %v247
      %v263 = vadd.f32 %v224, %v247
      %v264 = vadd.f32 %v225, %v247
      %v265 = vadd.f32 %v226, %v247
      %v266 = vadd.f32 %v227, %v247
      %v267 = vadd.f32 %v228, %v247
      %v268 = vadd.f32 %v229, %v247
      %v269 = vadd.f32 %v230, %v247
      %v270 = vadd.f32 %v231, %v247
      %v271 = vadd.f32 %v232, %v247
      %v272 = vadd.f32 %v233, %v247
      %v273 = vadd.f32 %v234, %v247
      %v274 = vadd.f32 %v235, %v247
      %v275 = vadd.f32 %v236, %v247
      %v276 = vadd.f32 %v237, %v247
      %v277 = vadd.f32 %v238, %v247
      %v278 = vadd.f32 %v239, %v247
      %v279 = vadd.f32 %v240, %v247
      %v280 = vadd.f32 %v241, %v247
      %v281 = vmax.f32 %v249, 0.0
      %v282 = vmax.f32 %v250, 0.0
      %v283 = vmax.f32 %v251, 0.0
      %v284 = vmax.f32 %v252, 0.0
      %v285 = vmax.f32 %v253, 0.0
      %v286 = vmax.f32 %v254, 0.0
      %v287 = vmax.f32 %v255, 0.0
      %v288 = vmax.f32 %v256, 0.0
      %v289 = vmax.f32 %v257, 0.0
      %v290 = vmax.f32 %v258, 0.0
      %v291 = vmax.f32 %v259, 0.0
      %v292 = vmax.f32 %v260, 0.0
      %v293 = vmax.f32 %v261, 0.0
      %v294 = vmax.f32 %v262, 0.0
      %v295 = vmax.f32 %v263, 0.0
      %v296 = vmax.f32 %v264, 0.0
      %v297 = vmax.f32 %v265, 0.0
      %v298 = vmax.f32 %v266, 0.0
      %v299 = vmax.f32 %v267, 0.0
      %v300 = vmax.f32 %v268, 0.0
      %v301 = vmax.f32 %v269, 0.0
      %v302 = vmax.f32 %v270, 0.0
      %v303 = vmax.f32 %v271, 0.0
      %v304 = vmax.f32 %v272, 0.0
      %v305 = vmax.f32 %v273, 0.0
      %v306 = vmax.f32 %v274, 0.0
      %v307 = vmax.f32 %v275, 0.0
      %v308 = vmax.f32 %v276, 0.0
      %v309 = vmax.f32 %v277, 0.0
      %v310 = vmax.f32 %v278, 0.0
      %v311 = vmax.f32 %v279, 0.0
      %v312 = vmax.f32 %v280, 0.0
      %v313 = vpack.c.bf16 %v282, %v281
      %v314 = vpack.c.bf16 %v284, %v283
      %v315 = vpack.c.bf16 %v286, %v285
      %v316 = vpack.c.bf16 %v288, %v287
      %v317 = vpack.c.bf16 %v290, %v289
      %v318 = vpack.c.bf16 %v292, %v291
      %v319 = vpack.c.bf16 %v294, %v293
      %v320 = vpack.c.bf16 %v296, %v295
      %v321 = vpack.c.bf16 %v298, %v297
      %v322 = vpack.c.bf16 %v300, %v299
      %v323 = vpack.c.bf16 %v302, %v301
      %v324 = vpack.c.bf16 %v304, %v303
      %v325 = vpack.c.bf16 %v306, %v305
      %v326 = vpack.c.bf16 %v308, %v307
      %v327 = vpack.c.bf16 %v310, %v309
      %v328 = vpack.c.bf16 %v312, %v311
      %v345 = vunpack.c.l.b16 %v313
      %v346 = vunpack.c.h.b16 %v313
      %v347 = vunpack.c.l.b16 %v314
      %v348 = vunpack.c.h.b16 %v314
      %v349 = vunpack.c.l.b16 %v315
      %v350 = vunpack.c.h.b16 %v315
      %v351 = vunpack.c.l.b16 %v316
      %v352 = vunpack.c.h.b16 %v316
      %v353 = vunpack.c.l.b16 %v317
      %v354 = vunpack.c.h.b16 %v317
      %v355 = vunpack.c.l.b16 %v318
      %v356 = vunpack.c.h.b16 %v318
      %v357 = vunpack.c.l.b16 %v319
      %v358 = vunpack.c.h.b16 %v319
      %v359 = vunpack.c.l.b16 %v320
      %v360 = vunpack.c.h.b16 %v320
      %v361 = vunpack.c.l.b16 %v321
      %v362 = vunpack.c.h.b16 %v321
      %v363 = vunpack.c.l.b16 %v322
      %v364 = vunpack.c.h.b16 %v322
      %v365 = vunpack.c.l.b16 %v323
      %v366 = vunpack.c.h.b16 %v323
      %v367 = vunpack.c.l.b16 %v324
      %v368 = vunpack.c.h.b16 %v324
      %v369 = vunpack.c.l.b16 %v325
      %v370 = vunpack.c.h.b16 %v325
      %v371 = vunpack.c.l.b16 %v326
      %v372 = vunpack.c.h.b16 %v326
      %v373 = vunpack.c.l.b16 %v327
      %v374 = vunpack.c.h.b16 %v327
      %v375 = vunpack.c.l.b16 %v328
      %v376 = vunpack.c.h.b16 %v328
      %v377 = vpack.c.b16 %v345, %v345
      %v378 = vpack.c.b16 %v346, %v346
      %v379 = vpack.c.b16 %v347, %v347
      %v380 = vpack.c.b16 %v348, %v348
      %v381 = vpack.c.b16 %v349, %v349
      %v382 = vpack.c.b16 %v350, %v350
      %v383 = vpack.c.b16 %v351, %v351
      %v384 = vpack.c.b16 %v352, %v352
      %v385 = vpack.c.b16 %v353, %v353
      %v386 = vpack.c.b16 %v354, %v354
      %v387 = vpack.c.b16 %v355, %v355
      %v388 = vpack.c.b16 %v356, %v356
      %v389 = vpack.c.b16 %v357, %v357
      %v390 = vpack.c.b16 %v358, %v358
      %v391 = vpack.c.b16 %v359, %v359
      %v392 = vpack.c.b16 %v360, %v360
      %v393 = vpack.c.b16 %v361, %v361
      %v394 = vpack.c.b16 %v362, %v362
      %v395 = vpack.c.b16 %v363, %v363
      %v396 = vpack.c.b16 %v364, %v364
      %v397 = vpack.c.b16 %v365, %v365
      %v398 = vpack.c.b16 %v366, %v366
      %v399 = vpack.c.b16 %v367, %v367
      %v400 = vpack.c.b16 %v368, %v368
      %v401 = vpack.c.b16 %v369, %v369
      %v402 = vpack.c.b16 %v370, %v370
      %v403 = vpack.c.b16 %v371, %v371
      %v404 = vpack.c.b16 %v372, %v372
      %v405 = vpack.c.b16 %v373, %v373
      %v406 = vpack.c.b16 %v374, %v374
      %v407 = vpack.c.b16 %v375, %v375
      %v408 = vpack.c.b16 %v376, %v376
      %441 = vst [vmem:[%s170] sm:$0xf] %v377
      %442 = vst [vmem:[%s170 + $0x4] sm:$0xf] %v378
      %443 = vst [vmem:[%s170 + $0x8] sm:$0xf] %v379
      %444 = vst [vmem:[%s170 + $0xc] sm:$0xf] %v380
      %445 = vst [vmem:[%s170 + $0x10] sm:$0xf] %v381
      %446 = vst [vmem:[%s170 + $0x14] sm:$0xf] %v382
      %447 = vst [vmem:[%s170 + $0x18] sm:$0xf] %v383
      %448 = vst [vmem:[%s170 + $0x1c] sm:$0xf] %v384
      %449 = vst [vmem:[%s170 + $0x20] sm:$0xf] %v385
      %450 = vst [vmem:[%s170 + $0x24] sm:$0xf] %v386
      %451 = vst [vmem:[%s170 + $0x28] sm:$0xf] %v387
      %452 = vst [vmem:[%s170 + $0x2c] sm:$0xf] %v388
      %453 = vst [vmem:[%s170 + $0x30] sm:$0xf] %v389
      %454 = vst [vmem:[%s170 + $0x34] sm:$0xf] %v390
      %455 = vst [vmem:[%s170 + $0x38] sm:$0xf] %v391
      %456 = vst [vmem:[%s170 + $0x3c] sm:$0xf] %v392
      %457 = vst [vmem:[%s170 + $0x40] sm:$0xf] %v393
      %458 = vst [vmem:[%s170 + $0x44] sm:$0xf] %v394
      %459 = vst [vmem:[%s170 + $0x48] sm:$0xf] %v395
      %460 = vst [vmem:[%s170 + $0x4c] sm:$0xf] %v396
      %461 = vst [vmem:[%s170 + $0x50] sm:$0xf] %v397
      %462 = vst [vmem:[%s170 + $0x54] sm:$0xf] %v398
      %463 = vst [vmem:[%s170 + $0x58] sm:$0xf] %v399
      %464 = vst [vmem:[%s170 + $0x5c] sm:$0xf] %v400
      %465 = vst [vmem:[%s170 + $0x60] sm:$0xf] %v401
      %466 = vst [vmem:[%s170 + $0x64] sm:$0xf] %v402
      %467 = vst [vmem:[%s170 + $0x68] sm:$0xf] %v403
      %468 = vst [vmem:[%s170 + $0x6c] sm:$0xf] %v404
      %469 = vst [vmem:[%s170 + $0x70] sm:$0xf] %v405
      %470 = vst [vmem:[%s170 + $0x74] sm:$0xf] %v406
      %471 = vst [vmem:[%s170 + $0x78] sm:$0xf] %v407
      %472 = vst [vmem:[%s170 + $0x7c] sm:$0xf] %v408
      %p473 = scmp.lt.s32.totalorder %s14, 1
      %s474 = scalar_select %p473, %s14, 1
      %s475 = smul.addr %s474, 32
      %s476 = smul.addr %s475, 4
      %s477 = scalar_lea.vmem %s3, %s476
      // Predicated region
      $region33: #{double_conv_forward.5} parent=31 // pred_check
        %p478 = pneg %p100
      $region34: #{double_conv_forward.5} parent=31 // pred_check_branch
        %480 = sbr.rel (%p478) target = $region36
      $region35: #{double_conv_forward.5} parent=31 // pred_region
        _
      $region36: #{double_conv_forward.5} parent=31 // pred_fallthru
        _
    $region32: #{double_conv_forward.5} parent=5 // pred_fallthru
      _
    %p481 = scmp.le.s32.totalorder 2, %s9
    // Predicated region
    $region37: #{double_conv_forward.5} parent=5 // pred_check
      %p482 = pneg %p481
    $region38: #{double_conv_forward.5} parent=5 // pred_check_branch
      %484 = sbr.rel (%p482) target = $region40
    $region39: #{double_conv_forward.5} parent=5 // pred_region
      %s485 = ssub.s32 %s9, 2
      // Predicated region
      $region41: #{double_conv_forward.5} parent=39 // pred_check
        %p486 = pneg %p106
      $region42: #{double_conv_forward.5} parent=39 // pred_check_branch
        %488 = sbr.rel (%p486) target = $region44
      $region43: #{double_conv_forward.5} parent=39 // pred_region
        %p489 = scmp.lt.s32.totalorder %s15, 1
        %s490 = scalar_select %p489, %s15, 1
        %s491 = smul.addr %s490, 32
        %s492 = smul.addr %s491, 4
        %s493 = scalar_lea.vmem %s3, %s492
      $region44: #{double_conv_forward.5} parent=39 // pred_fallthru
        _
    $region40: #{double_conv_forward.5} parent=5 // pred_fallthru
      _
  $region6: #{double_conv_forward.5} parent=0 // loop_footer
    %s13 = sadd.s32 1, %s9
  $region7: #{double_conv_forward.5} parent=0 // loop_footer_branch
    %8 = sbr.rel target = $region3
  $region8: #{double_conv_forward.5} parent=0 // loop_exit
    _

// kernel: double_conv_forward.4
$region0: #{double_conv_forward.4}
  #allocation0 [shape = 'u32[]', space=smem, size = 0x4, offset = 0x4, fixed_abs, tag = 'smem constant byte address 0x4 - core index']
  #allocation1 [shape = 'u32[144,128]{1,0:T(1,128)}', space=vmem, size = 0x12000, scoped, tag = 'internal scratch']
  %s0 = inlined_call_operand.vmem [shape: bf16[2,18,18,128], index: 0, kind: input, shape index: {}]
  %s1 = inlined_call_operand.vmem [shape: bf16[1152,128], index: 1, kind: input, shape index: {}]
  %s2 = inlined_call_operand.vmem [shape: f32[2,256,128], index: 2, kind: output, shape index: {0}]
  %s3 = inlined_call_operand.vmem [shape: f32[2,1,128], index: 3, kind: output, shape index: {1}]
  %s4 = inlined_call_operand.vmem [shape: f32[2,1,128], index: 4, kind: output, shape index: {2}]
  %5 = xla_tuple %s2, %s3, %s4
  %s6 = sld [smem:[#allocation0]]
  $region57: #{double_conv_forward.4} parent=0
    _
  %s8 = ssub.s32 1, %s6
  %s9 = scalar_select 0, %s8, %s6
  loop: start=0, step=1, limit=4
  $region2: #{double_conv_forward.4} parent=0 // loop_pre_header
    _
  $region3: #{double_conv_forward.4} parent=0 // loop_header
    %s11 = sphi 0, %s15
    %p12 = scmp.ge.s32.totalorder %s11, 4
    %s21 = sphi 0, %s23
    %s24 = sphi 0, %s21
    %s25 = sphi 0, %s24
    %s41 = sphi 0, %s25
    %s45 = sphi 0, %s45
    %s47 = sphi 0, %s45
    %s48 = sphi 0, %s47
    %s62 = sphi 0, %s48
    %s68 = sphi 0, %s70
    %s71 = sphi 0, %s68
    %s72 = sphi 0, %s71
    %s88 = sphi 0, %s72
    %s94 = sphi 0, %s96
    %s97 = sphi 0, %s94
    %s98 = sphi 0, %s97
    %s114 = sphi 0, %s98
    %s120 = sphi 0, %s122
    %s123 = sphi 0, %s120
    %s124 = sphi 0, %s123
    %s140 = sphi 0, %s124
  $region4: #{double_conv_forward.4} parent=0 // loop_header_branch
    %14 = sbr.rel (%p12) target = $region8
  $region5: #{double_conv_forward.4} parent=0 // loop_body
    %s16 = ssub.s32 %s11, 1
    %s17 = ssub.s32 %s11, 2
    %s18 = sadd.s32 %s11, 1
    %s19 = ssub.s32 %s11, %s18
    %p20 = scmp.eq.s32.totalorder %s19, 0
    %s22 = sadd.s32 %s21, 1
    %s23 = scalar_select %p20, %s21, %s22
    %p26 = pneg %p20
    %p27 = scmp.eq.s32.totalorder %s11, 1
    %p28 = por %p26, %p27
    %p29 = scmp.ne.s32.totalorder %s21, %s24
    %p30 = scmp.eq.s32.totalorder %s11, 0
    %p31 = por %p29, %p30
    %p32 = scmp.ne.s32.totalorder %s21, %s24
    %p33 = scmp.eq.s32.totalorder %s16, 1
    %p34 = por %p32, %p33
    %p35 = scmp.ne.s32.totalorder %s24, %s25
    %p36 = scmp.eq.s32.totalorder %s16, 0
    %p37 = por %p35, %p36
    %p38 = scmp.ne.s32.totalorder %s24, %s25
    %p39 = scmp.eq.s32.totalorder %s17, 1
    %p40 = por %p38, %p39
    %p42 = scmp.ne.s32.totalorder %s25, %s41
    %p43 = scmp.eq.s32.totalorder %s17, 0
    %p44 = por %p42, %p43
    %s46 = sadd.s32 %s45, 1
    %p49 = scmp.eq.s32.totalorder %s11, 1
    %p50 = scmp.ne.s32.totalorder %s45, %s47
    %p51 = scmp.eq.s32.totalorder %s11, 0
    %p52 = por %p50, %p51
    %p53 = scmp.ne.s32.totalorder %s45, %s47
    %p54 = scmp.eq.s32.totalorder %s16, 1
    %p55 = por %p53, %p54
    %p56 = scmp.ne.s32.totalorder %s47, %s48
    %p57 = scmp.eq.s32.totalorder %s16, 0
    %p58 = por %p56, %p57
    %p59 = scmp.ne.s32.totalorder %s47, %s48
    %p60 = scmp.eq.s32.totalorder %s17, 1
    %p61 = por %p59, %p60
    %p63 = scmp.ne.s32.totalorder %s48, %s62
    %p64 = scmp.eq.s32.totalorder %s17, 0
    %p65 = por %p63, %p64
    %s66 = ssub.s32 %s11, %s18
    %p67 = scmp.eq.s32.totalorder %s66, 0
    %s69 = sadd.s32 %s68, 1
    %s70 = scalar_select %p67, %s68, %s69
    %p73 = pneg %p67
    %p74 = scmp.eq.s32.totalorder %s11, 1
    %p75 = por %p73, %p74
    %p76 = scmp.ne.s32.totalorder %s68, %s71
    %p77 = scmp.eq.s32.totalorder %s11, 0
    %p78 = por %p76, %p77
    %p79 = scmp.ne.s32.totalorder %s68, %s71
    %p80 = scmp.eq.s32.totalorder %s16, 1
    %p81 = por %p79, %p80
    %p82 = scmp.ne.s32.totalorder %s71, %s72
    %p83 = scmp.eq.s32.totalorder %s16, 0
    %p84 = por %p82, %p83
    %p85 = scmp.ne.s32.totalorder %s71, %s72
    %p86 = scmp.eq.s32.totalorder %s17, 1
    %p87 = por %p85, %p86
    %p89 = scmp.ne.s32.totalorder %s72, %s88
    %p90 = scmp.eq.s32.totalorder %s17, 0
    %p91 = por %p89, %p90
    %s92 = ssub.s32 %s11, %s18
    %p93 = scmp.eq.s32.totalorder %s92, 0
    %s95 = sadd.s32 %s94, 1
    %s96 = scalar_select %p93, %s94, %s95
    %p99 = pneg %p93
    %p100 = scmp.eq.s32.totalorder %s11, 1
    %p101 = por %p99, %p100
    %p102 = scmp.ne.s32.totalorder %s94, %s97
    %p103 = scmp.eq.s32.totalorder %s11, 0
    %p104 = por %p102, %p103
    %p105 = scmp.ne.s32.totalorder %s94, %s97
    %p106 = scmp.eq.s32.totalorder %s16, 1
    %p107 = por %p105, %p106
    %p108 = scmp.ne.s32.totalorder %s97, %s98
    %p109 = scmp.eq.s32.totalorder %s16, 0
    %p110 = por %p108, %p109
    %p111 = scmp.ne.s32.totalorder %s97, %s98
    %p112 = scmp.eq.s32.totalorder %s17, 1
    %p113 = por %p111, %p112
    %p115 = scmp.ne.s32.totalorder %s98, %s114
    %p116 = scmp.eq.s32.totalorder %s17, 0
    %p117 = por %p115, %p116
    %s118 = ssub.s32 %s11, %s18
    %p119 = scmp.eq.s32.totalorder %s118, 0
    %s121 = sadd.s32 %s120, 1
    %s122 = scalar_select %p119, %s120, %s121
    %p125 = pneg %p119
    %p126 = scmp.eq.s32.totalorder %s11, 1
    %p127 = por %p125, %p126
    %p128 = scmp.ne.s32.totalorder %s120, %s123
    %p129 = scmp.eq.s32.totalorder %s11, 0
    %p130 = por %p128, %p129
    %p131 = scmp.ne.s32.totalorder %s120, %s123
    %p132 = scmp.eq.s32.totalorder %s16, 1
    %p133 = por %p131, %p132
    %p134 = scmp.ne.s32.totalorder %s123, %s124
    %p135 = scmp.eq.s32.totalorder %s16, 0
    %p136 = por %p134, %p135
    %p137 = scmp.ne.s32.totalorder %s123, %s124
    %p138 = scmp.eq.s32.totalorder %s17, 1
    %p139 = por %p137, %p138
    %p141 = scmp.ne.s32.totalorder %s124, %s140
    %p142 = scmp.eq.s32.totalorder %s17, 0
    %p143 = por %p141, %p142
    %p144 = scmp.le.s32.totalorder 1, %s11
    %p145 = scmp.lt.s32.totalorder %s11, 3
    %p146 = pnand %p144, %p145
    %p147 = pneg %p146
    // Predicated region
    $region9: #{double_conv_forward.4} parent=5 // pred_check
      _
    $region10: #{double_conv_forward.4} parent=5 // pred_check_branch
      %149 = sbr.rel (%p146) target = $region12
    $region11: #{double_conv_forward.4} parent=5 // pred_region
      %s150 = ssub.s32 %s11, 1
      // Predicated region
      $region13: #{double_conv_forward.4} parent=11 // pred_check
        %p151 = pneg %p58
      $region14: #{double_conv_forward.4} parent=11 // pred_check_branch
        %153 = sbr.rel (%p151) target = $region16
      $region15: #{double_conv_forward.4} parent=11 // pred_region
        _
      $region16: #{double_conv_forward.4} parent=11 // pred_fallthru
        _
    $region12: #{double_conv_forward.4} parent=5 // pred_fallthru
      _
    %p154 = scmp.lt.s32.totalorder %s11, 2
    // Predicated region
    $region17: #{double_conv_forward.4} parent=5 // pred_check
      %p155 = pneg %p154
    $region18: #{double_conv_forward.4} parent=5 // pred_check_branch
      %157 = sbr.rel (%p155) target = $region20
    $region19: #{double_conv_forward.4} parent=5 // pred_region
      // Predicated region
      $region21: #{double_conv_forward.4} parent=19 // pred_check
        %p158 = pneg %p31
      $region22: #{double_conv_forward.4} parent=19 // pred_check_branch
        %160 = sbr.rel (%p158) target = $region24
      $region23: #{double_conv_forward.4} parent=19 // pred_region
        %p161 = scmp.lt.s32.totalorder %s11, 1
        %s162 = scalar_select %p161, %s11, 1
        %s163 = smul.addr %s162, 54
        %s164 = smul.addr %s163, 4
        %s165 = scalar_lea.vmem %s0, %s164
      $region24: #{double_conv_forward.4} parent=19 // pred_fallthru
        _
    $region20: #{double_conv_forward.4} parent=5 // pred_fallthru
      _
    %p166 = scmp.le.s32.totalorder 1, %s11
    %p167 = scmp.lt.s32.totalorder %s11, 3
    %p168 = pnand %p166, %p167
    %p169 = pneg %p168
    // Predicated region
    $region25: #{double_conv_forward.4} parent=5 // pred_check
      _
    $region26: #{double_conv_forward.4} parent=5 // pred_check_branch
      %171 = sbr.rel (%p168) target = $region28
    $region27: #{double_conv_forward.4} parent=5 // pred_region
      %s172 = ssub.s32 %s11, 1
      %p173 = scmp.lt.s32.totalorder %s16, 1
      %s174 = scalar_select %p173, %s16, 1
      %s175 = smul.addr %s174, 54
      %s176 = smul.addr %s175, 4
      %s177 = scalar_lea.vmem %s0, %s176
      %p178 = pneg %p37
      %p179 = pneg %p34
      %p180 = pneg %p58
      %p181 = pneg %p55
      %p182 = pneg %p84
      %p183 = pneg %p81
      %p184 = scmp.lt.s32.totalorder %s16, 1
      %s185 = scalar_select %p184, %s16, 1
      %s186 = smul.addr %s185, 32
      %s187 = smul.addr %s186, 8
      %s188 = scalar_lea.vmem %s2, %s187
      %p189 = pneg %p110
      %p190 = pneg %p107
      %p191 = scmp.lt.s32.totalorder %s16, 1
      %s192 = scalar_select %p191, %s16, 1
      %s193 = scalar_lea.vmem %s3, %s192
      %p194 = pneg %p136
      %p195 = pneg %p133
      %p196 = scmp.lt.s32.totalorder %s16, 1
      %s197 = scalar_select %p196, %s16, 1
      %s198 = scalar_lea.vmem %s4, %s197
      %p199 = scmp.lt.s32.totalorder %s16, 1
      %s200 = scalar_select %p199, %s16, 1
      %s201 = smul.addr %s200, 54
      %s202 = smul.addr %s201, 4
      %s203 = scalar_lea.vmem %s0, %s202
      %p204 = scmp.lt.s32.totalorder %s16, 1
      %s205 = scalar_select %p204, %s16, 1
      %s206 = smul.addr %s205, 32
      %s207 = smul.addr %s206, 8
      %s208 = scalar_lea.vmem %s2, %s207
      %p209 = scmp.lt.s32.totalorder %s16, 1
      %s210 = scalar_select %p209, %s16, 1
      %s211 = scalar_lea.vmem %s3, %s210
      %p212 = scmp.lt.s32.totalorder %s16, 1
      %s213 = scalar_select %p212, %s16, 1
      %s214 = scalar_lea.vmem %s4, %s213
      %v216 = vld [vmem:[%s203] sm:$0xf]
      %v217 = vld [vmem:[%s203 + $0x4] sm:$0xf]
      %v218 = vld [vmem:[%s203 + $0x8] sm:$0x1]
      %v219 = vld [vmem:[%s203 + $0xc] sm:$0xf]
      %v220 = vld [vmem:[%s203 + $0x10] sm:$0xf]
      %v221 = vld [vmem:[%s203 + $0x14] sm:$0x1]
      %v222 = vld [vmem:[%s203 + $0x18] sm:$0xf]
      %v223 = vld [vmem:[%s203 + $0x1c] sm:$0xf]
      %v224 = vld [vmem:[%s203 + $0x20] sm:$0x1]
      %v225 = vld [vmem:[%s203 + $0x24] sm:$0xf]
      %v226 = vld [vmem:[%s203 + $0x28] sm:$0xf]
      %v227 = vld [vmem:[%s203 + $0x2c] sm:$0x1]
      %v228 = vld [vmem:[%s203 + $0x30] sm:$0xf]
      %v229 = vld [vmem:[%s203 + $0x34] sm:$0xf]
      %v230 = vld [vmem:[%s203 + $0x38] sm:$0x1]
      %v231 = vld [vmem:[%s203 + $0x3c] sm:$0xf]
      %v232 = vld [vmem:[%s203 + $0x40] sm:$0xf]
      %v233 = vld [vmem:[%s203 + $0x44] sm:$0x1]
      %v234 = vld [vmem:[%s203 + $0x48] sm:$0xf]
      %v235 = vld [vmem:[%s203 + $0x4c] sm:$0xf]
      %v236 = vld [vmem:[%s203 + $0x50] sm:$0x1]
      %v237 = vld [vmem:[%s203 + $0x54] sm:$0xf]
      %v238 = vld [vmem:[%s203 + $0x58] sm:$0xf]
      %v239 = vld [vmem:[%s203 + $0x5c] sm:$0x1]
      %v240 = vld [vmem:[%s203 + $0x60] sm:$0xf]
      %v241 = vld [vmem:[%s203 + $0x64] sm:$0xf]
      %v242 = vld [vmem:[%s203 + $0x68] sm:$0x1]
      %v243 = vld [vmem:[%s203 + $0x6c] sm:$0xf]
      %v244 = vld [vmem:[%s203 + $0x70] sm:$0xf]
      %v245 = vld [vmem:[%s203 + $0x74] sm:$0x1]
      %v246 = vld [vmem:[%s203 + $0x78] sm:$0xf]
      %v247 = vld [vmem:[%s203 + $0x7c] sm:$0xf]
      %v248 = vld [vmem:[%s203 + $0x80] sm:$0x1]
      %v249 = vld [vmem:[%s203 + $0x84] sm:$0xf]
      %v250 = vld [vmem:[%s203 + $0x88] sm:$0xf]
      %v251 = vld [vmem:[%s203 + $0x8c] sm:$0x1]
      %v252 = vld [vmem:[%s203 + $0x90] sm:$0xf]
      %v253 = vld [vmem:[%s203 + $0x94] sm:$0xf]
      %v254 = vld [vmem:[%s203 + $0x98] sm:$0x1]
      %v255 = vld [vmem:[%s203 + $0x9c] sm:$0xf]
      %v256 = vld [vmem:[%s203 + $0xa0] sm:$0xf]
      %v257 = vld [vmem:[%s203 + $0xa4] sm:$0x1]
      %v258 = vld [vmem:[%s203 + $0xa8] sm:$0xf]
      %v259 = vld [vmem:[%s203 + $0xac] sm:$0xf]
      %v260 = vld [vmem:[%s203 + $0xb0] sm:$0x1]
      %v261 = vld [vmem:[%s203 + $0xb4] sm:$0xf]
      %v262 = vld [vmem:[%s203 + $0xb8] sm:$0xf]
      %v263 = vld [vmem:[%s203 + $0xbc] sm:$0x1]
      %v264 = vld [vmem:[%s203 + $0xc0] sm:$0xf]
      %v265 = vld [vmem:[%s203 + $0xc4] sm:$0xf]
      %v266 = vld [vmem:[%s203 + $0xc8] sm:$0x1]
      %v267 = vld [vmem:[%s203 + $0xcc] sm:$0xf]
      %v268 = vld [vmem:[%s203 + $0xd0] sm:$0xf]
      %v269 = vld [vmem:[%s203 + $0xd4] sm:$0x1]
      %v302 = vunpack.c.l.b16 %v216
      %v303 = vunpack.c.l.b16 %v217
      %v304 = vunpack.c.l.b16 %v219
      %v305 = vunpack.c.l.b16 %v220
      %v306 = vunpack.c.l.b16 %v222
      %v307 = vunpack.c.l.b16 %v223
      %v308 = vunpack.c.l.b16 %v225
      %v309 = vunpack.c.l.b16 %v226
      %v310 = vunpack.c.l.b16 %v228
      %v311 = vunpack.c.l.b16 %v229
      %v312 = vunpack.c.l.b16 %v231
      %v313 = vunpack.c.l.b16 %v232
      %v314 = vunpack.c.l.b16 %v234
      %v315 = vunpack.c.l.b16 %v235
      %v316 = vunpack.c.l.b16 %v237
      %v317 = vunpack.c.l.b16 %v238
      %v318 = vunpack.c.l.b16 %v240
      %v319 = vunpack.c.l.b16 %v241
      %v320 = vunpack.c.l.b16 %v243
      %v321 = vunpack.c.l.b16 %v244
      %v322 = vunpack.c.l.b16 %v246
      %v323 = vunpack.c.l.b16 %v247
      %v324 = vunpack.c.l.b16 %v249
      %v325 = vunpack.c.l.b16 %v250
      %v326 = vunpack.c.l.b16 %v252
      %v327 = vunpack.c.l.b16 %v253
      %v328 = vunpack.c.l.b16 %v255
      %v329 = vunpack.c.l.b16 %v256
      %v330 = vunpack.c.l.b16 %v258
      %v331 = vunpack.c.l.b16 %v259
      %v332 = vunpack.c.l.b16 %v261
      %v333 = vunpack.c.l.b16 %v262
      %v334 = vpack.c.b16 %v303, %v302
      %v335 = vpack.c.b16 %v305, %v304
      %v336 = vpack.c.b16 %v307, %v306
      %v337 = vpack.c.b16 %v309, %v308
      %v338 = vpack.c.b16 %v311, %v310
      %v339 = vpack.c.b16 %v313, %v312
      %v340 = vpack.c.b16 %v315, %v314
      %v341 = vpack.c.b16 %v317, %v316
      %v342 = vpack.c.b16 %v319, %v318
      %v343 = vpack.c.b16 %v321, %v320
      %v344 = vpack.c.b16 %v323, %v322
      %v345 = vpack.c.b16 %v325, %v324
      %v346 = vpack.c.b16 %v327, %v326
      %v347 = vpack.c.b16 %v329, %v328
      %v348 = vpack.c.b16 %v331, %v330
      %v349 = vpack.c.b16 %v333, %v332
      %v382 = vunpack.c.l.b16 %v218
      %v383 = vunpack.c.l.b16 %v221
      %v384 = vunpack.c.l.b16 %v224
      %v385 = vunpack.c.l.b16 %v227
      %v386 = vunpack.c.l.b16 %v230
      %v387 = vunpack.c.l.b16 %v233
      %v388 = vunpack.c.l.b16 %v236
      %v389 = vunpack.c.l.b16 %v239
      %v390 = vunpack.c.l.b16 %v242
      %v391 = vunpack.c.l.b16 %v245
      %v392 = vunpack.c.l.b16 %v248
      %v393 = vunpack.c.l.b16 %v251
      %v394 = vunpack.c.l.b16 %v254
      %v395 = vunpack.c.l.b16 %v257
      %v396 = vunpack.c.l.b16 %v260
      %v397 = vunpack.c.l.b16 %v263
      %v398 = vpack.c.b16 %v382, %v382
      %v399 = vpack.c.b16 %v383, %v383
      %v400 = vpack.c.b16 %v384, %v384
      %v401 = vpack.c.b16 %v385, %v385
      %v402 = vpack.c.b16 %v386, %v386
      %v403 = vpack.c.b16 %v387, %v387
      %v404 = vpack.c.b16 %v388, %v388
      %v405 = vpack.c.b16 %v389, %v389
      %v406 = vpack.c.b16 %v390, %v390
      %v407 = vpack.c.b16 %v391, %v391
      %v408 = vpack.c.b16 %v392, %v392
      %v409 = vpack.c.b16 %v393, %v393
      %v410 = vpack.c.b16 %v394, %v394
      %v411 = vpack.c.b16 %v395, %v395
      %v412 = vpack.c.b16 %v396, %v396
      %v413 = vpack.c.b16 %v397, %v397
      %vm414 = vsmask.f32 7424
      %v416 = vshrl.u32 %v334, 16
      %v418 = vshll.u32 %v334, 16
      %v420 = vrot.slane %v418, 1
      %v421 = vor.u32 %v416, %v420
      %v423 = vshll.u32 %v398, 16
      %v425 = vrot.slane %v423, 1
      %v426 = vsel %vm414, %v421, %v425
      %v428 = vshrl.u32 %v335, 16
      %v430 = vshll.u32 %v335, 16
      %v432 = vrot.slane %v430, 1
      %v433 = vor.u32 %v428, %v432
      %v435 = vshll.u32 %v399, 16
      %v437 = vrot.slane %v435, 1
      %v438 = vsel %vm414, %v433, %v437
      %v440 = vshrl.u32 %v336, 16
      %v442 = vshll.u32 %v336, 16
      %v444 = vrot.slane %v442, 1
      %v445 = vor.u32 %v440, %v444
      %v447 = vshll.u32 %v400, 16
      %v449 = vrot.slane %v447, 1
      %v450 = vsel %vm414, %v445, %v449
      %v452 = vshrl.u32 %v337, 16
      %v454 = vshll.u32 %v337, 16
      %v456 = vrot.slane %v454, 1
      %v457 = vor.u32 %v452, %v456
      %v459 = vshll.u32 %v401, 16
      %v461 = vrot.slane %v459, 1
      %v462 = vsel %vm414, %v457, %v461
      %v464 = vshrl.u32 %v338, 16
      %v466 = vshll.u32 %v338, 16
      %v468 = vrot.slane %v466, 1
      %v469 = vor.u32 %v464, %v468
      %v471 = vshll.u32 %v402, 16
      %v473 = vrot.slane %v471, 1
      %v474 = vsel %vm414, %v469, %v473
      %v476 = vshrl.u32 %v339, 16
      %v478 = vshll.u32 %v339, 16
      %v480 = vrot.slane %v478, 1
      %v481 = vor.u32 %v476, %v480
      %v483 = vshll.u32 %v403, 16
      %v485 = vrot.slane %v483, 1
      %v486 = vsel %vm414, %v481, %v485
      %v488 = vshrl.u32 %v340, 16
      %v490 = vshll.u32 %v340, 16
      %v492 = vrot.slane %v490, 1
      %v493 = vor.u32 %v488, %v492
      %v495 = vshll.u32 %v404, 16
      %v497 = vrot.slane %v495, 1
      %v498 = vsel %vm414, %v493, %v497
      %v500 = vshrl.u32 %v341, 16
      %v502 = vshll.u32 %v341, 16
      %v504 = vrot.slane %v502, 1
      %v505 = vor.u32 %v500, %v504
      %v507 = vshll.u32 %v405, 16
      %v509 = vrot.slane %v507, 1
      %v510 = vsel %vm414, %v505, %v509
      %v512 = vshrl.u32 %v342, 16
      %v514 = vshll.u32 %v342, 16
      %v516 = vrot.slane %v514, 1
      %v517 = vor.u32 %v512, %v516
      %v519 = vshll.u32 %v406, 16
      %v521 = vrot.slane %v519, 1
      %v522 = vsel %vm414, %v517, %v521
      %v524 = vshrl.u32 %v343, 16
      %v526 = vshll.u32 %v343, 16
      %v528 = vrot.slane %v526, 1
      %v529 = vor.u32 %v524, %v528
      %v531 = vshll.u32 %v407, 16
      %v533 = vrot.slane %v531, 1
      %v534 = vsel %vm414, %v529, %v533
      %v536 = vshrl.u32 %v344, 16
      %v538 = vshll.u32 %v344, 16
      %v540 = vrot.slane %v538, 1
      %v541 = vor.u32 %v536, %v540
      %v543 = vshll.u32 %v408, 16
      %v545 = vrot.slane %v543, 1
      %v546 = vsel %vm414, %v541, %v545
      %v548 = vshrl.u32 %v345, 16
      %v550 = vshll.u32 %v345, 16
      %v552 = vrot.slane %v550, 1
      %v553 = vor.u32 %v548, %v552
      %v555 = vshll.u32 %v409, 16
      %v557 = vrot.slane %v555, 1
      %v558 = vsel %vm414, %v553, %v557
      %v560 = vshrl.u32 %v346, 16
      %v562 = vshll.u32 %v346, 16
      %v564 = vrot.slane %v562, 1
      %v565 = vor.u32 %v560, %v564
      %v567 = vshll.u32 %v410, 16
      %v569 = vrot.slane %v567, 1
      %v570 = vsel %vm414, %v565, %v569
      %v572 = vshrl.u32 %v347, 16
      %v574 = vshll.u32 %v347, 16
      %v576 = vrot.slane %v574, 1
      %v577 = vor.u32 %v572, %v576
      %v579 = vshll.u32 %v411, 16
      %v581 = vrot.slane %v579, 1
      %v582 = vsel %vm414, %v577, %v581
      %v584 = vshrl.u32 %v348, 16
      %v586 = vshll.u32 %v348, 16
      %v588 = vrot.slane %v586, 1
      %v589 = vor.u32 %v584, %v588
      %v591 = vshll.u32 %v412, 16
      %v593 = vrot.slane %v591, 1
      %v594 = vsel %vm414, %v589, %v593
      %v596 = vshrl.u32 %v349, 16
      %v598 = vshll.u32 %v349, 16
      %v600 = vrot.slane %v598, 1
      %v601 = vor.u32 %v596, %v600
      %v603 = vshll.u32 %v413, 16
      %v605 = vrot.slane %v603, 1
      %v606 = vsel %vm414, %v601, %v605
      %vm623 = vcmask 1046528
      %v624 = vrot.slane %v334, 1
      %v625 = vrot.slane %v398, 1
      %v626 = vsel %vm623, %v624, %v625
      %v627 = vrot.slane %v335, 1
      %v628 = vrot.slane %v399, 1
      %v629 = vsel %vm623, %v627, %v628
      %v630 = vrot.slane %v336, 1
      %v631 = vrot.slane %v400, 1
      %v632 = vsel %vm623, %v630, %v631
      %v633 = vrot.slane %v337, 1
      %v634 = vrot.slane %v401, 1
      %v635 = vsel %vm623, %v633, %v634
      %v636 = vrot.slane %v338, 1
      %v637 = vrot.slane %v402, 1
      %v638 = vsel %vm623, %v636, %v637
      %v639 = vrot.slane %v339, 1
      %v640 = vrot.slane %v403, 1
      %v641 = vsel %vm623, %v639, %v640
      %v642 = vrot.slane %v340, 1
      %v643 = vrot.slane %v404, 1
      %v644 = vsel %vm623, %v642, %v643
      %v645 = vrot.slane %v341, 1
      %v646 = vrot.slane %v405, 1
      %v647 = vsel %vm623, %v645, %v646
      %v648 = vrot.slane %v342, 1
      %v649 = vrot.slane %v406, 1
      %v650 = vsel %vm623, %v648, %v649
      %v651 = vrot.slane %v343, 1
      %v652 = vrot.slane %v407, 1
      %v653 = vsel %vm623, %v651, %v652
      %v654 = vrot.slane %v344, 1
      %v655 = vrot.slane %v408, 1
      %v656 = vsel %vm623, %v654, %v655
      %v657 = vrot.slane %v345, 1
      %v658 = vrot.slane %v409, 1
      %v659 = vsel %vm623, %v657, %v658
      %v660 = vrot.slane %v346, 1
      %v661 = vrot.slane %v410, 1
      %v662 = vsel %vm623, %v660, %v661
      %v663 = vrot.slane %v347, 1
      %v664 = vrot.slane %v411, 1
      %v665 = vsel %vm623, %v663, %v664
      %v666 = vrot.slane %v348, 1
      %v667 = vrot.slane %v412, 1
      %v668 = vsel %vm623, %v666, %v667
      %v669 = vrot.slane %v349, 1
      %v670 = vrot.slane %v413, 1
      %v671 = vsel %vm623, %v669, %v670
      %v690 = vunpack.c.l.b16 %v264
      %v691 = vunpack.c.l.b16 %v265
      %v692 = vpack.c.b16 %v691, %v690
      %v695 = vunpack.c.l.b16 %v266
      %v696 = vpack.c.b16 %v695, %v695
      %v698 = vshrl.u32 %v692, 16
      %v700 = vshll.u32 %v692, 16
      %v702 = vrot.slane %v700, 1
      %v703 = vor.u32 %v698, %v702
      %v705 = vshll.u32 %v696, 16
      %v707 = vrot.slane %v705, 1
      %v708 = vsel %vm414, %v703, %v707
      %v710 = vrot.slane %v692, 1
      %v711 = vrot.slane %v696, 1
      %v712 = vsel %vm623, %v710, %v711
      %v716 = vunpack.c.l.b16 %v267
      %v717 = vunpack.c.l.b16 %v268
      %v718 = vpack.c.b16 %v717, %v716
      %v721 = vunpack.c.l.b16 %v269
      %v722 = vpack.c.b16 %v721, %v721
      %v724 = vshrl.u32 %v718, 16
      %v726 = vshll.u32 %v718, 16
      %v728 = vrot.slane %v726, 1
      %v729 = vor.u32 %v724, %v728
      %v731 = vshll.u32 %v722, 16
      %v733 = vrot.slane %v731, 1
      %v734 = vsel %vm414, %v729, %v733
      %v736 = vrot.slane %v718, 1
      %v737 = vrot.slane %v722, 1
      %v738 = vsel %vm623, %v736, %v737
      %v740 = vld [vmem:[%s1] sm:$0xf]
      %v741 = vld [vmem:[%s1 + $0x4] sm:$0xf]
      %v742 = vld [vmem:[%s1 + $0x8] sm:$0xf]
      %v743 = vld [vmem:[%s1 + $0xc] sm:$0xf]
      %v744 = vld [vmem:[%s1 + $0x10] sm:$0xf]
      %v745 = vld [vmem:[%s1 + $0x14] sm:$0xf]
      %v746 = vld [vmem:[%s1 + $0x18] sm:$0xf]
      %v747 = vld [vmem:[%s1 + $0x1c] sm:$0xf]
      %v748 = vld [vmem:[%s1 + $0x20] sm:$0xf]
      %v749 = vld [vmem:[%s1 + $0x24] sm:$0xf]
      %v750 = vld [vmem:[%s1 + $0x28] sm:$0xf]
      %v751 = vld [vmem:[%s1 + $0x2c] sm:$0xf]
      %v752 = vld [vmem:[%s1 + $0x30] sm:$0xf]
      %v753 = vld [vmem:[%s1 + $0x34] sm:$0xf]
      %v754 = vld [vmem:[%s1 + $0x38] sm:$0xf]
      %v755 = vld [vmem:[%s1 + $0x3c] sm:$0xf]
      %v756 = vld [vmem:[%s1 + $0x40] sm:$0xf]
      %v757 = vld [vmem:[%s1 + $0x44] sm:$0xf]
      %v758 = vld [vmem:[%s1 + $0x48] sm:$0xf]
      %v759 = vld [vmem:[%s1 + $0x4c] sm:$0xf]
      %v760 = vld [vmem:[%s1 + $0x50] sm:$0xf]
      %v761 = vld [vmem:[%s1 + $0x54] sm:$0xf]
      %v762 = vld [vmem:[%s1 + $0x58] sm:$0xf]
      %v763 = vld [vmem:[%s1 + $0x5c] sm:$0xf]
      %v764 = vld [vmem:[%s1 + $0x60] sm:$0xf]
      %v765 = vld [vmem:[%s1 + $0x64] sm:$0xf]
      %v766 = vld [vmem:[%s1 + $0x68] sm:$0xf]
      %v767 = vld [vmem:[%s1 + $0x6c] sm:$0xf]
      %v768 = vld [vmem:[%s1 + $0x70] sm:$0xf]
      %v769 = vld [vmem:[%s1 + $0x74] sm:$0xf]
      %v770 = vld [vmem:[%s1 + $0x78] sm:$0xf]
      %v771 = vld [vmem:[%s1 + $0x7c] sm:$0xf]
      %v772 = vld [vmem:[%s1 + $0x80] sm:$0xf]
      %v773 = vld [vmem:[%s1 + $0x84] sm:$0xf]
      %v774 = vld [vmem:[%s1 + $0x88] sm:$0xf]
      %v775 = vld [vmem:[%s1 + $0x8c] sm:$0xf]
      %v776 = vld [vmem:[%s1 + $0x90] sm:$0xf]
      %v777 = vld [vmem:[%s1 + $0x94] sm:$0xf]
      %v778 = vld [vmem:[%s1 + $0x98] sm:$0xf]
      %v779 = vld [vmem:[%s1 + $0x9c] sm:$0xf]
      %v780 = vld [vmem:[%s1 + $0xa0] sm:$0xf]
      %v781 = vld [vmem:[%s1 + $0xa4] sm:$0xf]
      %v782 = vld [vmem:[%s1 + $0xa8] sm:$0xf]
      %v783 = vld [vmem:[%s1 + $0xac] sm:$0xf]
      %v784 = vld [vmem:[%s1 + $0xb0] sm:$0xf]
      %v785 = vld [vmem:[%s1 + $0xb4] sm:$0xf]
      %v786 = vld [vmem:[%s1 + $0xb8] sm:$0xf]
      %v787 = vld [vmem:[%s1 + $0xbc] sm:$0xf]
      %v788 = vld [vmem:[%s1 + $0xc0] sm:$0xf]
      %v789 = vld [vmem:[%s1 + $0xc4] sm:$0xf]
      %v790 = vld [vmem:[%s1 + $0xc8] sm:$0xf]
      %v791 = vld [vmem:[%s1 + $0xcc] sm:$0xf]
      %v792 = vld [vmem:[%s1 + $0xd0] sm:$0xf]
      %v793 = vld [vmem:[%s1 + $0xd4] sm:$0xf]
      %v794 = vld [vmem:[%s1 + $0xd8] sm:$0xf]
      %v795 = vld [vmem:[%s1 + $0xdc] sm:$0xf]
      %v796 = vld [vmem:[%s1 + $0xe0] sm:$0xf]
      %v797 = vld [vmem:[%s1 + $0xe4] sm:$0xf]
      %v798 = vld [vmem:[%s1 + $0xe8] sm:$0xf]
      %v799 = vld [vmem:[%s1 + $0xec] sm:$0xf]
      %v800 = vld [vmem:[%s1 + $0xf0] sm:$0xf]
      %v801 = vld [vmem:[%s1 + $0xf4] sm:$0xf]
      %v802 = vld [vmem:[%s1 + $0xf8] sm:$0xf]
      %v803 = vld [vmem:[%s1 + $0xfc] sm:$0xf]
      %v804 = vld [vmem:[%s1 + $0x100] sm:$0xf]
      %v805 = vld [vmem:[%s1 + $0x104] sm:$0xf]
      %v806 = vld [vmem:[%s1 + $0x108] sm:$0xf]
      %v807 = vld [vmem:[%s1 + $0x10c] sm:$0xf]
      %v808 = vld [vmem:[%s1 + $0x110] sm:$0xf]
      %v809 = vld [vmem:[%s1 + $0x114] sm:$0xf]
      %v810 = vld [vmem:[%s1 + $0x118] sm:$0xf]
      %v811 = vld [vmem:[%s1 + $0x11c] sm:$0xf]
      %v812 = vld [vmem:[%s1 + $0x120] sm:$0xf]
      %v813 = vld [vmem:[%s1 + $0x124] sm:$0xf]
      %v814 = vld [vmem:[%s1 + $0x128] sm:$0xf]
      %v815 = vld [vmem:[%s1 + $0x12c] sm:$0xf]
      %v816 = vld [vmem:[%s1 + $0x130] sm:$0xf]
      %v817 = vld [vmem:[%s1 + $0x134] sm:$0xf]
      %v818 = vld [vmem:[%s1 + $0x138] sm:$0xf]
      %v819 = vld [vmem:[%s1 + $0x13c] sm:$0xf]
      %v820 = vld [vmem:[%s1 + $0x140] sm:$0xf]
      %v821 = vld [vmem:[%s1 + $0x144] sm:$0xf]
      %v822 = vld [vmem:[%s1 + $0x148] sm:$0xf]
      %v823 = vld [vmem:[%s1 + $0x14c] sm:$0xf]
      %v824 = vld [vmem:[%s1 + $0x150] sm:$0xf]
      %v825 = vld [vmem:[%s1 + $0x154] sm:$0xf]
      %v826 = vld [vmem:[%s1 + $0x158] sm:$0xf]
      %v827 = vld [vmem:[%s1 + $0x15c] sm:$0xf]
      %v828 = vld [vmem:[%s1 + $0x160] sm:$0xf]
      %v829 = vld [vmem:[%s1 + $0x164] sm:$0xf]
      %v830 = vld [vmem:[%s1 + $0x168] sm:$0xf]
      %v831 = vld [vmem:[%s1 + $0x16c] sm:$0xf]
      %v832 = vld [vmem:[%s1 + $0x170] sm:$0xf]
      %v833 = vld [vmem:[%s1 + $0x174] sm:$0xf]
      %v834 = vld [vmem:[%s1 + $0x178] sm:$0xf]
      %v835 = vld [vmem:[%s1 + $0x17c] sm:$0xf]
      %v836 = vld [vmem:[%s1 + $0x180] sm:$0xf]
      %v837 = vld [vmem:[%s1 + $0x184] sm:$0xf]
      %v838 = vld [vmem:[%s1 + $0x188] sm:$0xf]
      %v839 = vld [vmem:[%s1 + $0x18c] sm:$0xf]
      %v840 = vld [vmem:[%s1 + $0x190] sm:$0xf]
      %v841 = vld [vmem:[%s1 + $0x194] sm:$0xf]
      %v842 = vld [vmem:[%s1 + $0x198] sm:$0xf]
      %v843 = vld [vmem:[%s1 + $0x19c] sm:$0xf]
      %v844 = vld [vmem:[%s1 + $0x1a0] sm:$0xf]
      %v845 = vld [vmem:[%s1 + $0x1a4] sm:$0xf]
      %v846 = vld [vmem:[%s1 + $0x1a8] sm:$0xf]
      %v847 = vld [vmem:[%s1 + $0x1ac] sm:$0xf]
      %v848 = vld [vmem:[%s1 + $0x1b0] sm:$0xf]
      %v849 = vld [vmem:[%s1 + $0x1b4] sm:$0xf]
      %v850 = vld [vmem:[%s1 + $0x1b8] sm:$0xf]
      %v851 = vld [vmem:[%s1 + $0x1bc] sm:$0xf]
      %v852 = vld [vmem:[%s1 + $0x1c0] sm:$0xf]
      %v853 = vld [vmem:[%s1 + $0x1c4] sm:$0xf]
      %v854 = vld [vmem:[%s1 + $0x1c8] sm:$0xf]
      %v855 = vld [vmem:[%s1 + $0x1cc] sm:$0xf]
      %v856 = vld [vmem:[%s1 + $0x1d0] sm:$0xf]
      %v857 = vld [vmem:[%s1 + $0x1d4] sm:$0xf]
      %v858 = vld [vmem:[%s1 + $0x1d8] sm:$0xf]
      %v859 = vld [vmem:[%s1 + $0x1dc] sm:$0xf]
      %v860 = vld [vmem:[%s1 + $0x1e0] sm:$0xf]
      %v861 = vld [vmem:[%s1 + $0x1e4] sm:$0xf]
      %v862 = vld [vmem:[%s1 + $0x1e8] sm:$0xf]
      %v863 = vld [vmem:[%s1 + $0x1ec] sm:$0xf]
      %v864 = vld [vmem:[%s1 + $0x1f0] sm:$0xf]
      %v865 = vld [vmem:[%s1 + $0x1f4] sm:$0xf]
      %v866 = vld [vmem:[%s1 + $0x1f8] sm:$0xf]
      %v867 = vld [vmem:[%s1 + $0x1fc] sm:$0xf]
      %v868 = vld [vmem:[%s1 + $0x200] sm:$0xf]
      %v869 = vld [vmem:[%s1 + $0x204] sm:$0xf]
      %v870 = vld [vmem:[%s1 + $0x208] sm:$0xf]
      %v871 = vld [vmem:[%s1 + $0x20c] sm:$0xf]
      %v872 = vld [vmem:[%s1 + $0x210] sm:$0xf]
      %v873 = vld [vmem:[%s1 + $0x214] sm:$0xf]
      %v874 = vld [vmem:[%s1 + $0x218] sm:$0xf]
      %v875 = vld [vmem:[%s1 + $0x21c] sm:$0xf]
      %v876 = vld [vmem:[%s1 + $0x220] sm:$0xf]
      %v877 = vld [vmem:[%s1 + $0x224] sm:$0xf]
      %v878 = vld [vmem:[%s1 + $0x228] sm:$0xf]
      %v879 = vld [vmem:[%s1 + $0x22c] sm:$0xf]
      %v880 = vld [vmem:[%s1 + $0x230] sm:$0xf]
      %v881 = vld [vmem:[%s1 + $0x234] sm:$0xf]
      %v882 = vld [vmem:[%s1 + $0x238] sm:$0xf]
      %v883 = vld [vmem:[%s1 + $0x23c] sm:$0xf]
      %v1028 = vunpack.c.l.b16 %v740
      %v1029 = vunpack.c.l.b16 %v741
      %v1030 = vunpack.c.l.b16 %v742
      %v1031 = vunpack.c.l.b16 %v743
      %v1032 = vunpack.c.l.b16 %v744
      %v1033 = vunpack.c.l.b16 %v745
      %v1034 = vunpack.c.l.b16 %v746
      %v1035 = vunpack.c.l.b16 %v747
      %v1036 = vunpack.c.l.b16 %v748
      %v1037 = vunpack.c.l.b16 %v749
      %v1038 = vunpack.c.l.b16 %v750
      %v1039 = vunpack.c.l.b16 %v751
      %v1040 = vunpack.c.l.b16 %v752
      %v1041 = vunpack.c.l.b16 %v753
      %v1042 = vunpack.c.l.b16 %v754
      %v1043 = vunpack.c.l.b16 %v755
      %v1044 = vunpack.c.l.b16 %v756
      %v1045 = vunpack.c.l.b16 %v757
      %v1046 = vunpack.c.l.b16 %v758
      %v1047 = vunpack.c.l.b16 %v759
      %v1048 = vunpack.c.l.b16 %v760
      %v1049 = vunpack.c.l.b16 %v761
      %v1050 = vunpack.c.l.b16 %v762
      %v1051 = vunpack.c.l.b16 %v763
      %v1052 = vunpack.c.l.b16 %v764
      %v1053 = vunpack.c.l.b16 %v765
      %v1054 = vunpack.c.l.b16 %v766
      %v1055 = vunpack.c.l.b16 %v767
      %v1056 = vunpack.c.l.b16 %v768
      %v1057 = vunpack.c.l.b16 %v769
      %v1058 = vunpack.c.l.b16 %v770
      %v1059 = vunpack.c.l.b16 %v771
      %v1060 = vunpack.c.l.b16 %v772
      %v1061 = vunpack.c.l.b16 %v773
      %v1062 = vunpack.c.l.b16 %v774
      %v1063 = vunpack.c.l.b16 %v775
      %v1064 = vunpack.c.l.b16 %v776
      %v1065 = vunpack.c.l.b16 %v777
      %v1066 = vunpack.c.l.b16 %v778
      %v1067 = vunpack.c.l.b16 %v779
      %v1068 = vunpack.c.l.b16 %v780
      %v1069 = vunpack.c.l.b16 %v781
      %v1070 = vunpack.c.l.b16 %v782
      %v1071 = vunpack.c.l.b16 %v783
      %v1072 = vunpack.c.l.b16 %v784
      %v1073 = vunpack.c.l.b16 %v785
      %v1074 = vunpack.c.l.b16 %v786
      %v1075 = vunpack.c.l.b16 %v787
      %v1076 = vunpack.c.l.b16 %v788
      %v1077 = vunpack.c.l.b16 %v789
      %v1078 = vunpack.c.l.b16 %v790
      %v1079 = vunpack.c.l.b16 %v791
      %v1080 = vunpack.c.l.b16 %v792
      %v1081 = vunpack.c.l.b16 %v793
      %v1082 = vunpack.c.l.b16 %v794
      %v1083 = vunpack.c.l.b16 %v795
      %v1084 = vunpack.c.l.b16 %v796
      %v1085 = vunpack.c.l.b16 %v797
      %v1086 = vunpack.c.l.b16 %v798
      %v1087 = vunpack.c.l.b16 %v799
      %v1088 = vunpack.c.l.b16 %v800
      %v1089 = vunpack.c.l.b16 %v801
      %v1090 = vunpack.c.l.b16 %v802
      %v1091 = vunpack.c.l.b16 %v803
      %v1092 = vunpack.c.l.b16 %v804
      %v1093 = vunpack.c.l.b16 %v805
      %v1094 = vunpack.c.l.b16 %v806
      %v1095 = vunpack.c.l.b16 %v807
      %v1096 = vunpack.c.l.b16 %v808
      %v1097 = vunpack.c.l.b16 %v809
      %v1098 = vunpack.c.l.b16 %v810
      %v1099 = vunpack.c.l.b16 %v811
      %v1100 = vunpack.c.l.b16 %v812
      %v1101 = vunpack.c.l.b16 %v813
      %v1102 = vunpack.c.l.b16 %v814
      %v1103 = vunpack.c.l.b16 %v815
      %v1104 = vunpack.c.l.b16 %v816
      %v1105 = vunpack.c.l.b16 %v817
      %v1106 = vunpack.c.l.b16 %v818
      %v1107 = vunpack.c.l.b16 %v819
      %v1108 = vunpack.c.l.b16 %v820
      %v1109 = vunpack.c.l.b16 %v821
      %v1110 = vunpack.c.l.b16 %v822
      %v1111 = vunpack.c.l.b16 %v823
      %v1112 = vunpack.c.l.b16 %v824
      %v1113 = vunpack.c.l.b16 %v825
      %v1114 = vunpack.c.l.b16 %v826
      %v1115 = vunpack.c.l.b16 %v827
      %v1116 = vunpack.c.l.b16 %v828
      %v1117 = vunpack.c.l.b16 %v829
      %v1118 = vunpack.c.l.b16 %v830
      %v1119 = vunpack.c.l.b16 %v831
      %v1120 = vunpack.c.l.b16 %v832
      %v1121 = vunpack.c.l.b16 %v833
      %v1122 = vunpack.c.l.b16 %v834
      %v1123 = vunpack.c.l.b16 %v835
      %v1124 = vunpack.c.l.b16 %v836
      %v1125 = vunpack.c.l.b16 %v837
      %v1126 = vunpack.c.l.b16 %v838
      %v1127 = vunpack.c.l.b16 %v839
      %v1128 = vunpack.c.l.b16 %v840
      %v1129 = vunpack.c.l.b16 %v841
      %v1130 = vunpack.c.l.b16 %v842
      %v1131 = vunpack.c.l.b16 %v843
      %v1132 = vunpack.c.l.b16 %v844
      %v1133 = vunpack.c.l.b16 %v845
      %v1134 = vunpack.c.l.b16 %v846
      %v1135 = vunpack.c.l.b16 %v847
      %v1136 = vunpack.c.l.b16 %v848
      %v1137 = vunpack.c.l.b16 %v849
      %v1138 = vunpack.c.l.b16 %v850
      %v1139 = vunpack.c.l.b16 %v851
      %v1140 = vunpack.c.l.b16 %v852
      %v1141 = vunpack.c.l.b16 %v853
      %v1142 = vunpack.c.l.b16 %v854
      %v1143 = vunpack.c.l.b16 %v855
      %v1144 = vunpack.c.l.b16 %v856
      %v1145 = vunpack.c.l.b16 %v857
      %v1146 = vunpack.c.l.b16 %v858
      %v1147 = vunpack.c.l.b16 %v859
      %v1148 = vunpack.c.l.b16 %v860
      %v1149 = vunpack.c.l.b16 %v861
      %v1150 = vunpack.c.l.b16 %v862
      %v1151 = vunpack.c.l.b16 %v863
      %v1152 = vunpack.c.l.b16 %v864
      %v1153 = vunpack.c.l.b16 %v865
      %v1154 = vunpack.c.l.b16 %v866
      %v1155 = vunpack.c.l.b16 %v867
      %v1156 = vunpack.c.l.b16 %v868
      %v1157 = vunpack.c.l.b16 %v869
      %v1158 = vunpack.c.l.b16 %v870
      %v1159 = vunpack.c.l.b16 %v871
      %v1160 = vunpack.c.l.b16 %v872
      %v1161 = vunpack.c.l.b16 %v873
      %v1162 = vunpack.c.l.b16 %v874
      %v1163 = vunpack.c.l.b16 %v875
      %v1164 = vunpack.c.l.b16 %v876
      %v1165 = vunpack.c.l.b16 %v877
      %v1166 = vunpack.c.l.b16 %v878
      %v1167 = vunpack.c.l.b16 %v879
      %v1168 = vunpack.c.l.b16 %v880
      %v1169 = vunpack.c.l.b16 %v881
      %v1170 = vunpack.c.l.b16 %v882
      %v1171 = vunpack.c.l.b16 %v883
      %v1172 = vpack.c.b16 %v1029, %v1028
      %v1173 = vpack.c.b16 %v1031, %v1030
      %v1174 = vpack.c.b16 %v1033, %v1032
      %v1175 = vpack.c.b16 %v1035, %v1034
      %v1176 = vpack.c.b16 %v1037, %v1036
      %v1177 = vpack.c.b16 %v1039, %v1038
      %v1178 = vpack.c.b16 %v1041, %v1040
      %v1179 = vpack.c.b16 %v1043, %v1042
      %v1180 = vpack.c.b16 %v1045, %v1044
      %v1181 = vpack.c.b16 %v1047, %v1046
      %v1182 = vpack.c.b16 %v1049, %v1048
      %v1183 = vpack.c.b16 %v1051, %v1050
      %v1184 = vpack.c.b16 %v1053, %v1052
      %v1185 = vpack.c.b16 %v1055, %v1054
      %v1186 = vpack.c.b16 %v1057, %v1056
      %v1187 = vpack.c.b16 %v1059, %v1058
      %v1188 = vpack.c.b16 %v1061, %v1060
      %v1189 = vpack.c.b16 %v1063, %v1062
      %v1190 = vpack.c.b16 %v1065, %v1064
      %v1191 = vpack.c.b16 %v1067, %v1066
      %v1192 = vpack.c.b16 %v1069, %v1068
      %v1193 = vpack.c.b16 %v1071, %v1070
      %v1194 = vpack.c.b16 %v1073, %v1072
      %v1195 = vpack.c.b16 %v1075, %v1074
      %v1196 = vpack.c.b16 %v1077, %v1076
      %v1197 = vpack.c.b16 %v1079, %v1078
      %v1198 = vpack.c.b16 %v1081, %v1080
      %v1199 = vpack.c.b16 %v1083, %v1082
      %v1200 = vpack.c.b16 %v1085, %v1084
      %v1201 = vpack.c.b16 %v1087, %v1086
      %v1202 = vpack.c.b16 %v1089, %v1088
      %v1203 = vpack.c.b16 %v1091, %v1090
      %v1204 = vpack.c.b16 %v1093, %v1092
      %v1205 = vpack.c.b16 %v1095, %v1094
      %v1206 = vpack.c.b16 %v1097, %v1096
      %v1207 = vpack.c.b16 %v1099, %v1098
      %v1208 = vpack.c.b16 %v1101, %v1100
      %v1209 = vpack.c.b16 %v1103, %v1102
      %v1210 = vpack.c.b16 %v1105, %v1104
      %v1211 = vpack.c.b16 %v1107, %v1106
      %v1212 = vpack.c.b16 %v1109, %v1108
      %v1213 = vpack.c.b16 %v1111, %v1110
      %v1214 = vpack.c.b16 %v1113, %v1112
      %v1215 = vpack.c.b16 %v1115, %v1114
      %v1216 = vpack.c.b16 %v1117, %v1116
      %v1217 = vpack.c.b16 %v1119, %v1118
      %v1218 = vpack.c.b16 %v1121, %v1120
      %v1219 = vpack.c.b16 %v1123, %v1122
      %v1220 = vpack.c.b16 %v1125, %v1124
      %v1221 = vpack.c.b16 %v1127, %v1126
      %v1222 = vpack.c.b16 %v1129, %v1128
      %v1223 = vpack.c.b16 %v1131, %v1130
      %v1224 = vpack.c.b16 %v1133, %v1132
      %v1225 = vpack.c.b16 %v1135, %v1134
      %v1226 = vpack.c.b16 %v1137, %v1136
      %v1227 = vpack.c.b16 %v1139, %v1138
      %v1228 = vpack.c.b16 %v1141, %v1140
      %v1229 = vpack.c.b16 %v1143, %v1142
      %v1230 = vpack.c.b16 %v1145, %v1144
      %v1231 = vpack.c.b16 %v1147, %v1146
      %v1232 = vpack.c.b16 %v1149, %v1148
      %v1233 = vpack.c.b16 %v1151, %v1150
      %v1234 = vpack.c.b16 %v1153, %v1152
      %v1235 = vpack.c.b16 %v1155, %v1154
      %v1236 = vpack.c.b16 %v1157, %v1156
      %v1237 = vpack.c.b16 %v1159, %v1158
      %v1238 = vpack.c.b16 %v1161, %v1160
      %v1239 = vpack.c.b16 %v1163, %v1162
      %v1240 = vpack.c.b16 %v1165, %v1164
      %v1241 = vpack.c.b16 %v1167, %v1166
      %v1242 = vpack.c.b16 %v1169, %v1168
      %v1243 = vpack.c.b16 %v1171, %v1170
      %1316 = vmatprep.subr.bf16.mxu0 0
      %1317 = vmatpush1.bf16.msra.mxu0 %v1172
      %1318 = vmatprep.subr.bf16.mxu0 0
      %1319 = vmatpush1.bf16.msra.mxu0 %v1173
      %1320 = vmatprep.subr.bf16.mxu0 0
      %1321 = vmatpush1.bf16.msra.mxu0 %v1174
      %1322 = vmatprep.subr.bf16.mxu0 0
      %1323 = vmatpush1.bf16.msra.mxu0 %v1175
      %1324 = vmatprep.subr.bf16.mxu0 0
      %1325 = vmatpush1.bf16.msra.mxu0 %v1176
      %1326 = vmatprep.subr.bf16.mxu0 0
      %1327 = vmatpush1.bf16.msra.mxu0 %v1177
      %1328 = vmatprep.subr.bf16.mxu0 0
      %1329 = vmatpush1.bf16.msra.mxu0 %v1178
      %1330 = vmatprep.subr.bf16.mxu0 0
      %1331 = vmatpush1.bf16.msra.mxu0 %v1179
      %1332 = vmatprep.subr.bf16.mxu0 0
      %1333 = vmatpush1.bf16.msra.mxu0 %v1180
      %1334 = vmatprep.subr.bf16.mxu0 0
      %1335 = vmatpush1.bf16.msra.mxu0 %v1181
      %1336 = vmatprep.subr.bf16.mxu0 0
      %1337 = vmatpush1.bf16.msra.mxu0 %v1182
      %1338 = vmatprep.subr.bf16.mxu0 0
      %1339 = vmatpush1.bf16.msra.mxu0 %v1183
      %1340 = vmatprep.subr.bf16.mxu0 0
      %1341 = vmatpush1.bf16.msra.mxu0 %v1184
      %1342 = vmatprep.subr.bf16.mxu0 0
      %1343 = vmatpush1.bf16.msra.mxu0 %v1185
      %1344 = vmatprep.subr.bf16.mxu0 0
      %1345 = vmatpush1.bf16.msra.mxu0 %v1186
      %1346 = vmatprep.subr.bf16.mxu0 0
      %1347 = vmatpush1.bf16.msra.mxu0 %v1187
      %1348 = vmatprep.mubr.bf16.mxu0 %v426
      %1349 = vmatmul.mubr.bf16.gmra.mrb[0].mxu0 %v334
      %v1350 = vpop.f32.mrb[0].mxu0
      %v1351 = vadd.f32 0.0, %v1350
      %v1352 = vpop.f32.mrb[0].mxu0
      %v1353 = vpop.f32.mrb[0].mxu0
      %v1354 = vadd.f32 0.0, %v1353
      %v1355 = vpop.f32.mrb[0].mxu0
      %1356 = vmatprep.mubr.bf16.mxu0 %v438
      %1357 = vmatmul.mubr.bf16.gmra.mrb[0].mxu0 %v335
      %v1358 = vpop.f32.mrb[0].mxu0
      %v1359 = vadd.f32 0.0, %v1358
      %v1360 = vpop.f32.mrb[0].mxu0
      %v1361 = vpop.f32.mrb[0].mxu0
      %v1362 = vadd.f32 0.0, %v1361
      %v1363 = vpop.f32.mrb[0].mxu0
      %1364 = vmatprep.mubr.bf16.mxu0 %v450
      %1365 = vmatmul.mubr.bf16.gmra.mrb[0].mxu0 %v336
      %v1366 = vpop.f32.mrb[0].mxu0
      %v1367 = vadd.f32 0.0, %v1366
      %v1368 = vpop.f32.mrb[0].mxu0
      %v1369 = vpop.f32.mrb[0].mxu0
      %v1370 = vadd.f32 0.0, %v1369
      %v1371 = vpop.f32.mrb[0].mxu0
      %1372 = vmatprep.mubr.bf16.mxu0 %v462
      %1373 = vmatmul.mubr.bf16.gmra.mrb[0].mxu0 %v337
      %v1374 = vpop.f32.mrb[0].mxu0
      %v1375 = vadd.f32 0.0, %v1374
      %v1376 = vpop.f32.mrb[0].mxu0
      %v1377 = vpop.f32.mrb[0].mxu0
      %v1378 = vadd.f32 0.0, %v1377
      %v1379 = vpop.f32.mrb[0].mxu0
      %1380 = vmatprep.mubr.bf16.mxu0 %v474
      %1381 = vmatmul.mubr.bf16.gmra.mrb[0].mxu0 %v338
      %v1382 = vpop.f32.mrb[0].mxu0
      %v1383 = vadd.f32 0.0, %v1382
      %v1384 = vpop.f32.mrb[0].mxu0
      %v1385 = vpop.f32.mrb[0].mxu0
      %v1386 = vadd.f32 0.0, %v1385
      %v1387 = vpop.f32.mrb[0].mxu0
      %1388 = vmatprep.mubr.bf16.mxu0 %v486
      %1389 = vmatmul.mubr.bf16.gmra.mrb[0].mxu0 %v339
      %v1390 = vpop.f32.mrb[0].mxu0
      %v1391 = vadd.f32 0.0, %v1390
      %v1392 = vpop.f32.mrb[0].mxu0
      %v1393 = vpop.f32.mrb[0].mxu0
      %v1394 = vadd.f32 0.0, %v1393
      %v1395 = vpop.f32.mrb[0].mxu0
      %1396 = vmatprep.mubr.bf16.mxu0 %v498
      %1397 = vmatmul.mubr.bf16.gmra.mrb[0].mxu0 %v340
      %v1398 = vpop.f32.mrb[0].mxu0
      %v1399 = vadd.f32 0.0, %v1398
      %v1400 = vpop.f32.mrb[0].mxu0
      %v1401 = vpop.f32.mrb[0].mxu0
      %v1402 = vadd.f32 0.0, %v1401
      %v1403 = vpop.f32.mrb[0].mxu0
      %1404 = vmatprep.mubr.bf16.mxu0 %v510
      %1405 = vmatmul.mubr.bf16.gmra.mrb[0].mxu0 %v341
      %v1406 = vpop.f32.mrb[0].mxu0
      %v1407 = vadd.f32 0.0, %v1406
      %v1408 = vpop.f32.mrb[0].mxu0
      %v1409 = vpop.f32.mrb[0].mxu0
      %v1410 = vadd.f32 0.0, %v1409
      %v1411 = vpop.f32.mrb[0].mxu0
      %1412 = vmatprep.mubr.bf16.mxu0 %v522
      %1413 = vmatmul.mubr.bf16.gmra.mrb[0].mxu0 %v342
      %v1414 = vpop.f32.mrb[0].mxu0
      %v1415 = vadd.f32 0.0, %v1414
      %v1416 = vpop.f32.mrb[0].mxu0
      %v1417 = vpop.f32.mrb[0].mxu0
      %v1418 = vadd.f32 0.0, %v1417
      %v1419 = vpop.f32.mrb[0].mxu0
      %1420 = vmatprep.mubr.bf16.mxu0 %v534
      %1421 = vmatmul.mubr.bf16.gmra.mrb[0].mxu0 %v343
      %v1422 = vpop.f32.mrb[0].mxu0
      %v1423 = vadd.f32 0.0, %v1422
      %v1424 = vpop.f32.mrb[0].mxu0
      %v1425 = vpop.f32.mrb[0].mxu0
      %v1426 = vadd.f32 0.0, %v1425
      %v1427 = vpop.f32.mrb[0].mxu0
      %1428 = vmatprep.mubr.bf16.mxu0 %v546
      %1429 = vmatmul.mubr.bf16.gmra.mrb[0].mxu0 %v344
      %v1430 = vpop.f32.mrb[0].mxu0
      %v1431 = vadd.f32 0.0, %v1430
      %v1432 = vpop.f32.mrb[0].mxu0
      %v1433 = vpop.f32.mrb[0].mxu0
      %v1434 = vadd.f32 0.0, %v1433
      %v1435 = vpop.f32.mrb[0].mxu0
      %1436 = vmatprep.mubr.bf16.mxu0 %v558
      %1437 = vmatmul.mubr.bf16.gmra.mrb[0].mxu0 %v345
      %v1438 = vpop.f32.mrb[0].mxu0
      %v1439 = vadd.f32 0.0, %v1438
      %v1440 = vpop.f32.mrb[0].mxu0
      %v1441 = vpop.f32.mrb[0].mxu0
      %v1442 = vadd.f32 0.0, %v1441
      %v1443 = vpop.f32.mrb[0].mxu0
      %1444 = vmatprep.mubr.bf16.mxu0 %v570
      %1445 = vmatmul.mubr.bf16.gmra.mrb[0].mxu0 %v346
      %v1446 = vpop.f32.mrb[0].mxu0
      %v1447 = vadd.f32 0.0, %v1446
      %v1448 = vpop.f32.mrb[0].mxu0
      %v1449 = vpop.f32.mrb[0].mxu0
      %v1450 = vadd.f32 0.0, %v1449
      %v1451 = vpop.f32.mrb[0].mxu0
      %1452 = vmatprep.mubr.bf16.mxu0 %v582
      %1453 = vmatmul.mubr.bf16.gmra.mrb[0].mxu0 %v347
      %v1454 = vpop.f32.mrb[0].mxu0
      %v1455 = vadd.f32 0.0, %v1454
      %v1456 = vpop.f32.mrb[0].mxu0
      %v1457 = vpop.f32.mrb[0].mxu0
      %v1458 = vadd.f32 0.0, %v1457
      %v1459 = vpop.f32.mrb[0].mxu0
      %1460 = vmatprep.mubr.bf16.mxu0 %v594
      %1461 = vmatmul.mubr.bf16.gmra.mrb[0].mxu0 %v348
      %v1462 = vpop.f32.mrb[0].mxu0
      %v1463 = vadd.f32 0.0, %v1462
      %v1464 = vpop.f32.mrb[0].mxu0
      %v1465 = vpop.f32.mrb[0].mxu0
      %v1466 = vadd.f32 0.0, %v1465
      %v1467 = vpop.f32.mrb[0].mxu0
      %1468 = vmatprep.mubr.bf16.mxu0 %v606
      %1469 = vmatmul.mubr.bf16.gmra.mrb[0].mxu0 %v349
      %v1470 = vpop.f32.mrb[0].mxu0
      %v1471 = vadd.f32 0.0, %v1470
      %v1472 = vpop.f32.mrb[0].mxu0
      %v1473 = vpop.f32.mrb[0].mxu0
      %v1474 = vadd.f32 0.0, %v1473
      %v1475 = vpop.f32.mrb[0].mxu0
      %1476 = vdwg.mxu0
      %1477 = vmatprep.subr.bf16.mxu0 0
      %1478 = vmatpush1.bf16.msra.mxu0 %v1188
      %1479 = vmatprep.subr.bf16.mxu0 0
      %1480 = vmatpush1.bf16.msra.mxu0 %v1189
      %1481 = vmatprep.subr.bf16.mxu0 0
      %1482 = vmatpush1.bf16.msra.mxu0 %v1190
      %1483 = vmatprep.subr.bf16.mxu0 0
      %1484 = vmatpush1.bf16.msra.mxu0 %v1191
      %1485 = vmatprep.subr.bf16.mxu0 0
      %1486 = vmatpush1.bf16.msra.mxu0 %v1192
      %1487 = vmatprep.subr.bf16.mxu0 0
      %1488 = vmatpush1.bf16.msra.mxu0 %v1193
      %1489 = vmatprep.subr.bf16.mxu0 0
      %1490 = vmatpush1.bf16.msra.mxu0 %v1194
      %1491 = vmatprep.subr.bf16.mxu0 0
      %1492 = vmatpush1.bf16.msra.mxu0 %v1195
      %1493 = vmatprep.subr.bf16.mxu0 0
      %1494 = vmatpush1.bf16.msra.mxu0 %v1196
      %1495 = vmatprep.subr.bf16.mxu0 0
      %1496 = vmatpush1.bf16.msra.mxu0 %v1197
      %1497 = vmatprep.subr.bf16.mxu0 0
      %1498 = vmatpush1.bf16.msra.mxu0 %v1198
      %1499 = vmatprep.subr.bf16.mxu0 0
      %1500 = vmatpush1.bf16.msra.mxu0 %v1199
      %1501 = vmatprep.subr.bf16.mxu0 0
      %1502 = vmatpush1.bf16.msra.mxu0 %v1200
      %1503 = vmatprep.subr.bf16.mxu0 0
      %1504 = vmatpush1.bf16.msra.mxu0 %v1201
      %1505 = vmatprep.subr.bf16.mxu0 0
      %1506 = vmatpush1.bf16.msra.mxu0 %v1202
      %1507 = vmatprep.subr.bf16.mxu0 0
      %1508 = vmatpush1.bf16.msra.mxu0 %v1203
      %1509 = vmatprep.mubr.bf16.mxu0 %v335
      %1510 = vmatmul.mubr.bf16.gmra.mrb[0].mxu0 %v626
      %v1511 = vpop.f32.mrb[0].mxu0
      %v1512 = vadd.f32 %v1351, %v1511
      %v1513 = vpop.f32.mrb[0].mxu0
      %v1514 = vpop.f32.mrb[0].mxu0
      %v1515 = vadd.f32 %v1354, %v1514
      %v1516 = vpop.f32.mrb[0].mxu0
      %1517 = vmatprep.mubr.bf16.mxu0 %v336
      %1518 = vmatmul.mubr.bf16.gmra.mrb[0].mxu0 %v629
      %v1519 = vpop.f32.mrb[0].mxu0
      %v1520 = vadd.f32 %v1359, %v1519
      %v1521 = vpop.f32.mrb[0].mxu0
      %v1522 = vpop.f32.mrb[0].mxu0
      %v1523 = vadd.f32 %v1362, %v1522
      %v1524 = vpop.f32.mrb[0].mxu0
      %1525 = vmatprep.mubr.bf16.mxu0 %v337
      %1526 = vmatmul.mubr.bf16.gmra.mrb[0].mxu0 %v632
      %v1527 = vpop.f32.mrb[0].mxu0
      %v1528 = vadd.f32 %v1367, %v1527
      %v1529 = vpop.f32.mrb[0].mxu0
      %v1530 = vpop.f32.mrb[0].mxu0
      %v1531 = vadd.f32 %v1370, %v1530
      %v1532 = vpop.f32.mrb[0].mxu0
      %1533 = vmatprep.mubr.bf16.mxu0 %v338
      %1534 = vmatmul.mubr.bf16.gmra.mrb[0].mxu0 %v635
      %v1535 = vpop.f32.mrb[0].mxu0
      %v1536 = vadd.f32 %v1375, %v1535
      %v1537 = vpop.f32.mrb[0].mxu0
      %v1538 = vpop.f32.mrb[0].mxu0
      %v1539 = vadd.f32 %v1378, %v1538
      %v1540 = vpop.f32.mrb[0].mxu0
      %1541 = vmatprep.mubr.bf16.mxu0 %v339
      %1542 = vmatmul.mubr.bf16.gmra.mrb[0].mxu0 %v638
      %v1543 = vpop.f32.mrb[0].mxu0
      %v1544 = vadd.f32 %v1383, %v1543
      %v1545 = vpop.f32.mrb[0].mxu0
      %v1546 = vpop.f32.mrb[0].mxu0
      %v1547 = vadd.f32 %v1386, %v1546
      %v1548 = vpop.f32.mrb[0].mxu0
      %1549 = vmatprep.mubr.bf16.mxu0 %v340
      %1550 = vmatmul.mubr.bf16.gmra.mrb[0].mxu0 %v641
      %v1551 = vpop.f32.mrb[0].mxu0
      %v1552 = vadd.f32 %v1391, %v1551
      %v1553 = vpop.f32.mrb[0].mxu0
      %v1554 = vpop.f32.mrb[0].mxu0
      %v1555 = vadd.f32 %v1394, %v1554
      %v1556 = vpop.f32.mrb[0].mxu0
      %1557 = vmatprep.mubr.bf16.mxu0 %v341
      %1558 = vmatmul.mubr.bf16.gmra.mrb[0].mxu0 %v644
      %v1559 = vpop.f32.mrb[0].mxu0
      %v1560 = vadd.f32 %v1399, %v1559
      %v1561 = vpop.f32.mrb[0].mxu0
      %v1562 = vpop.f32.mrb[0].mxu0
      %v1563 = vadd.f32 %v1402, %v1562
      %v1564 = vpop.f32.mrb[0].mxu0
      %1565 = vmatprep.mubr.bf16.mxu0 %v342
      %1566 = vmatmul.mubr.bf16.gmra.mrb[0].mxu0 %v647
      %v1567 = vpop.f32.mrb[0].mxu0
      %v1568 = vadd.f32 %v1407, %v1567
      %v1569 = vpop.f32.mrb[0].mxu0
      %v1570 = vpop.f32.mrb[0].mxu0
      %v1571 = vadd.f32 %v1410, %v1570
      %v1572 = vpop.f32.mrb[0].mxu0
      %1573 = vmatprep.mubr.bf16.mxu0 %v343
      %1574 = vmatmul.mubr.bf16.gmra.mrb[0].mxu0 %v650
      %v1575 = vpop.f32.mrb[0].mxu0
      %v1576 = vadd.f32 %v1415, %v1575
      %v1577 = vpop.f32.mrb[0].mxu0
      %v1578 = vpop.f32.mrb[0].mxu0
      %v1579 = vadd.f32 %v1418, %v1578
      %v1580 = vpop.f32.mrb[0].mxu0
      %1581 = vmatprep.mubr.bf16.mxu0 %v344
      %1582 = vmatmul.mubr.bf16.gmra.mrb[0].mxu0 %v653
      %v1583 = vpop.f32.mrb[0].mxu0
      %v1584 = vadd.f32 %v1423, %v1583
      %v1585 = vpop.f32.mrb[0].mxu0
      %v1586 = vpop.f32.mrb[0].mxu0
      %v1587 = vadd.f32 %v1426, %v1586
      %v1588 = vpop.f32.mrb[0].mxu0
      %1589 = vmatprep.mubr.bf16.mxu0 %v345
      %1590 = vmatmul.mubr.bf16.gmra.mrb[0].mxu0 %v656
      %v1591 = vpop.f32.mrb[0].mxu0
      %v1592 = vadd.f32 %v1431, %v1591
      %v1593 = vpop.f32.mrb[0].mxu0
      %v1594 = vpop.f32.mrb[0].mxu0
      %v1595 = vadd.f32 %v1434, %v1594
      %v1596 = vpop.f32.mrb[0].mxu0
      %1597 = vmatprep.mubr.bf16.mxu0 %v346
      %1598 = vmatmul.mubr.bf16.gmra.mrb[0].mxu0 %v659
      %v1599 = vpop.f32.mrb[0].mxu0
      %v1600 = vadd.f32 %v1439, %v1599
      %v1601 = vpop.f32.mrb[0].mxu0
      %v1602 = vpop.f32.mrb[0].mxu0
      %v1603 = vadd.f32 %v1442, %v1602
      %v1604 = vpop.f32.mrb[0].mxu0
      %1605 = vmatprep.mubr.bf16.mxu0 %v347
      %1606 = vmatmul.mubr.bf16.gmra.mrb[0].mxu0 %v662
      %v1607 = vpop.f32.mrb[0].mxu0
      %v1608 = vadd.f32 %v1447, %v1607
      %v1609 = vpop.f32.mrb[0].mxu0
      %v1610 = vpop.f32.mrb[0].mxu0
      %v1611 = vadd.f32 %v1450, %v1610
      %v1612 = vpop.f32.mrb[0].mxu0
      %1613 = vmatprep.mubr.bf16.mxu0 %v348
      %1614 = vmatmul.mubr.bf16.gmra.mrb[0].mxu0 %v665
      %v1615 = vpop.f32.mrb[0].mxu0
      %v1616 = vadd.f32 %v1455, %v1615
      %v1617 = vpop.f32.mrb[0].mxu0
      %v1618 = vpop.f32.mrb[0].mxu0
      %v1619 = vadd.f32 %v1458, %v1618
      %v1620 = vpop.f32.mrb[0].mxu0
      %1621 = vmatprep.mubr.bf16.mxu0 %v349
      %1622 = vmatmul.mubr.bf16.gmra.mrb[0].mxu0 %v668
      %v1623 = vpop.f32.mrb[0].mxu0
      %v1624 = vadd.f32 %v1463, %v1623
      %v1625 = vpop.f32.mrb[0].mxu0
      %v1626 = vpop.f32.mrb[0].mxu0
      %v1627 = vadd.f32 %v1466, %v1626
      %v1628 = vpop.f32.mrb[0].mxu0
      %1629 = vmatprep.mubr.bf16.mxu0 %v692
      %1630 = vmatmul.mubr.bf16.gmra.mrb[0].mxu0 %v671
      %v1631 = vpop.f32.mrb[0].mxu0
      %v1632 = vadd.f32 %v1471, %v1631
      %v1633 = vpop.f32.mrb[0].mxu0
      %v1634 = vpop.f32.mrb[0].mxu0
      %v1635 = vadd.f32 %v1474, %v1634
      %v1636 = vpop.f32.mrb[0].mxu0
      %1637 = vdwg.mxu0
      %1638 = vmatprep.subr.bf16.mxu0 0
      %1639 = vmatpush1.bf16.msra.mxu0 %v1204
      %1640 = vmatprep.subr.bf16.mxu0 0
      %1641 = vmatpush1.bf16.msra.mxu0 %v1205
      %1642 = vmatprep.subr.bf16.mxu0 0
      %1643 = vmatpush1.bf16.msra.mxu0 %v1206
      %1644 = vmatprep.subr.bf16.mxu0 0
      %1645 = vmatpush1.bf16.msra.mxu0 %v1207
      %1646 = vmatprep.subr.bf16.mxu0 0
      %1647 = vmatpush1.bf16.msra.mxu0 %v1208
      %1648 = vmatprep.subr.bf16.mxu0 0
      %1649 = vmatpush1.bf16.msra.mxu0 %v1209
      %1650 = vmatprep.subr.bf16.mxu0 0
      %1651 = vmatpush1.bf16.msra.mxu0 %v1210
      %1652 = vmatprep.subr.bf16.mxu0 0
      %1653 = vmatpush1.bf16.msra.mxu0 %v1211
      %1654 = vmatprep.subr.bf16.mxu0 0
      %1655 = vmatpush1.bf16.msra.mxu0 %v1212
      %1656 = vmatprep.subr.bf16.mxu0 0
      %1657 = vmatpush1.bf16.msra.mxu0 %v1213
      %1658 = vmatprep.subr.bf16.mxu0 0
      %1659 = vmatpush1.bf16.msra.mxu0 %v1214
      %1660 = vmatprep.subr.bf16.mxu0 0
      %1661 = vmatpush1.bf16.msra.mxu0 %v1215
      %1662 = vmatprep.subr.bf16.mxu0 0
      %1663 = vmatpush1.bf16.msra.mxu0 %v1216
      %1664 = vmatprep.subr.bf16.mxu0 0
      %1665 = vmatpush1.bf16.msra.mxu0 %v1217
      %1666 = vmatprep.subr.bf16.mxu0 0
      %1667 = vmatpush1.bf16.msra.mxu0 %v1218
      %1668 = vmatprep.subr.bf16.mxu0 0
      %1669 = vmatpush1.bf16.msra.mxu0 %v1219
      %1670 = vmatprep.mubr.bf16.mxu0 %v629
      %1671 = vmatmul.mubr.bf16.gmra.mrb[0].mxu0 %v438
      %v1672 = vpop.f32.mrb[0].mxu0
      %v1673 = vadd.f32 %v1512, %v1672
      %v1674 = vpop.f32.mrb[0].mxu0
      %v1675 = vpop.f32.mrb[0].mxu0
      %v1676 = vadd.f32 %v1515, %v1675
      %v1677 = vpop.f32.mrb[0].mxu0
      %1678 = vmatprep.mubr.bf16.mxu0 %v632
      %1679 = vmatmul.mubr.bf16.gmra.mrb[0].mxu0 %v450
      %v1680 = vpop.f32.mrb[0].mxu0
      %v1681 = vadd.f32 %v1520, %v1680
      %v1682 = vpop.f32.mrb[0].mxu0
      %v1683 = vpop.f32.mrb[0].mxu0
      %v1684 = vadd.f32 %v1523, %v1683
      %v1685 = vpop.f32.mrb[0].mxu0
      %1686 = vmatprep.mubr.bf16.mxu0 %v635
      %1687 = vmatmul.mubr.bf16.gmra.mrb[0].mxu0 %v462
      %v1688 = vpop.f32.mrb[0].mxu0
      %v1689 = vadd.f32 %v1528, %v1688
      %v1690 = vpop.f32.mrb[0].mxu0
      %v1691 = vpop.f32.mrb[0].mxu0
      %v1692 = vadd.f32 %v1531, %v1691
      %v1693 = vpop.f32.mrb[0].mxu0
      %1694 = vmatprep.mubr.bf16.mxu0 %v638
      %1695 = vmatmul.mubr.bf16.gmra.mrb[0].mxu0 %v474
      %v1696 = vpop.f32.mrb[0].mxu0
      %v1697 = vadd.f32 %v1536, %v1696
      %v1698 = vpop.f32.mrb[0].mxu0
      %v1699 = vpop.f32.mrb[0].mxu0
      %v1700 = vadd.f32 %v1539, %v1699
      %v1701 = vpop.f32.mrb[0].mxu0
      %1702 = vmatprep.mubr.bf16.mxu0 %v641
      %1703 = vmatmul.mubr.bf16.gmra.mrb[0].mxu0 %v486
      %v1704 = vpop.f32.mrb[0].mxu0
      %v1705 = vadd.f32 %v1544, %v1704
      %v1706 = vpop.f32.mrb[0].mxu0
      %v1707 = vpop.f32.mrb[0].mxu0
      %v1708 = vadd.f32 %v1547, %v1707
      %v1709 = vpop.f32.mrb[0].mxu0
      %1710 = vmatprep.mubr.bf16.mxu0 %v644
      %1711 = vmatmul.mubr.bf16.gmra.mrb[0].mxu0 %v498
      %v1712 = vpop.f32.mrb[0].mxu0
      %v1713 = vadd.f32 %v1552, %v1712
      %v1714 = vpop.f32.mrb[0].mxu0
      %v1715 = vpop.f32.mrb[0].mxu0
      %v1716 = vadd.f32 %v1555, %v1715
      %v1717 = vpop.f32.mrb[0].mxu0
      %1718 = vmatprep.mubr.bf16.mxu0 %v647
      %1719 = vmatmul.mubr.bf16.gmra.mrb[0].mxu0 %v510
      %v1720 = vpop.f32.mrb[0].mxu0
      %v1721 = vadd.f32 %v1560, %v1720
      %v1722 = vpop.f32.mrb[0].mxu0
      %v1723 = vpop.f32.mrb[0].mxu0
      %v1724 = vadd.f32 %v1563, %v1723
      %v1725 = vpop.f32.mrb[0].mxu0
      %1726 = vmatprep.mubr.bf16.mxu0 %v650
      %1727 = vmatmul.mubr.bf16.gmra.mrb[0].mxu0 %v522
      %v1728 = vpop.f32.mrb[0].mxu0
      %v1729 = vadd.f32 %v1568, %v1728
      %v1730 = vpop.f32.mrb[0].mxu0
      %v1731 = vpop.f32.mrb[0].mxu0
      %v1732 = vadd.f32 %v1571, %v1731
      %v1733 = vpop.f32.mrb[0].mxu0
      %1734 = vmatprep.mubr.bf16.mxu0 %v653
      %1735 = vmatmul.mubr.bf16.gmra.mrb[0].mxu0 %v534
      %v1736 = vpop.f32.mrb[0].mxu0
      %v1737 = vadd.f32 %v1576, %v1736
      %v1738 = vpop.f32.mrb[0].mxu0
      %v1739 = vpop.f32.mrb[0].mxu0
      %v1740 = vadd.f32 %v1579, %v1739
      %v1741 = vpop.f32.mrb[0].mxu0
      %1742 = vmatprep.mubr.bf16.mxu0 %v656
      %1743 = vmatmul.mubr.bf16.gmra.mrb[0].mxu0 %v546
      %v1744 = vpop.f32.mrb[0].mxu0
      %v1745 = vadd.f32 %v1584, %v1744
      %v1746 = vpop.f32.mrb[0].mxu0
      %v1747 = vpop.f32.mrb[0].mxu0
      %v1748 = vadd.f32 %v1587, %v1747
      %v1749 = vpop.f32.mrb[0].mxu0
      %1750 = vmatprep.mubr.bf16.mxu0 %v659
      %1751 = vmatmul.mubr.bf16.gmra.mrb[0].mxu0 %v558
      %v1752 = vpop.f32.mrb[0].mxu0
      %v1753 = vadd.f32 %v1592, %v1752
      %v1754 = vpop.f32.mrb[0].mxu0
      %v1755 = vpop.f32.mrb[0].mxu0
      %v1756 = vadd.f32 %v1595, %v1755
      %v1757 = vpop.f32.mrb[0].mxu0
      %1758 = vmatprep.mubr.bf16.mxu0 %v662
      %1759 = vmatmul.mubr.bf16.gmra.mrb[0].mxu0 %v570
      %v1760 = vpop.f32.mrb[0].mxu0
      %v1761 = vadd.f32 %v1600, %v1760
      %v1762 = vpop.f32.mrb[0].mxu0
      %v1763 = vpop.f32.mrb[0].mxu0
      %v1764 = vadd.f32 %v1603, %v1763
      %v1765 = vpop.f32.mrb[0].mxu0
      %1766 = vmatprep.mubr.bf16.mxu0 %v665
      %1767 = vmatmul.mubr.bf16.gmra.mrb[0].mxu0 %v582
      %v1768 = vpop.f32.mrb[0].mxu0
      %v1769 = vadd.f32 %v1608, %v1768
      %v1770 = vpop.f32.mrb[0].mxu0
      %v1771 = vpop.f32.mrb[0].mxu0
      %v1772 = vadd.f32 %v1611, %v1771
      %v1773 = vpop.f32.mrb[0].mxu0
      %1774 = vmatprep.mubr.bf16.mxu0 %v668
      %1775 = vmatmul.mubr.bf16.gmra.mrb[0].mxu0 %v594
      %v1776 = vpop.f32.mrb[0].mxu0
      %v1777 = vadd.f32 %v1616, %v1776
      %v1778 = vpop.f32.mrb[0].mxu0
      %v1779 = vpop.f32.mrb[0].mxu0
      %v1780 = vadd.f32 %v1619, %v1779
      %v1781 = vpop.f32.mrb[0].mxu0
      %1782 = vmatprep.mubr.bf16.mxu0 %v671
      %1783 = vmatmul.mubr.bf16.gmra.mrb[0].mxu0 %v606
      %v1784 = vpop.f32.mrb[0].mxu0
      %v1785 = vadd.f32 %v1624, %v1784
      %v1786 = vpop.f32.mrb[0].mxu0
      %v1787 = vpop.f32.mrb[0].mxu0
      %v1788 = vadd.f32 %v1627, %v1787
      %v1789 = vpop.f32.mrb[0].mxu0
      %1790 = vmatprep.mubr.bf16.mxu0 %v712
      %1791 = vmatmul.mubr.bf16.gmra.mrb[0].mxu0 %v708
      %v1792 = vpop.f32.mrb[0].mxu0
      %v1793 = vadd.f32 %v1632, %v1792
      %v1794 = vpop.f32.mrb[0].mxu0
      %v1795 = vpop.f32.mrb[0].mxu0
      %v1796 = vadd.f32 %v1635, %v1795
      %v1797 = vpop.f32.mrb[0].mxu0
      %1798 = vdwg.mxu0
      %1799 = vmatprep.subr.bf16.mxu0 0
      %1800 = vmatpush1.bf16.msra.mxu0 %v1220
      %1801 = vmatprep.subr.bf16.mxu0 0
      %1802 = vmatpush1.bf16.msra.mxu0 %v1221
      %1803 = vmatprep.subr.bf16.mxu0 0
      %1804 = vmatpush1.bf16.msra.mxu0 %v1222
      %1805 = vmatprep.subr.bf16.mxu0 0
      %1806 = vmatpush1.bf16.msra.mxu0 %v1223
      %1807 = vmatprep.subr.bf16.mxu0 0
      %1808 = vmatpush1.bf16.msra.mxu0 %v1224
      %1809 = vmatprep.subr.bf16.mxu0 0
      %1810 = vmatpush1.bf16.msra.mxu0 %v1225
      %1811 = vmatprep.subr.bf16.mxu0 0
      %1812 = vmatpush1.bf16.msra.mxu0 %v1226
      %1813 = vmatprep.subr.bf16.mxu0 0
      %1814 = vmatpush1.bf16.msra.mxu0 %v1227
      %1815 = vmatprep.subr.bf16.mxu0 0
      %1816 = vmatpush1.bf16.msra.mxu0 %v1228
      %1817 = vmatprep.subr.bf16.mxu0 0
      %1818 = vmatpush1.bf16.msra.mxu0 %v1229
      %1819 = vmatprep.subr.bf16.mxu0 0
      %1820 = vmatpush1.bf16.msra.mxu0 %v1230
      %1821 = vmatprep.subr.bf16.mxu0 0
      %1822 = vmatpush1.bf16.msra.mxu0 %v1231
      %1823 = vmatprep.subr.bf16.mxu0 0
      %1824 = vmatpush1.bf16.msra.mxu0 %v1232
      %1825 = vmatprep.subr.bf16.mxu0 0
      %1826 = vmatpush1.bf16.msra.mxu0 %v1233
      %1827 = vmatprep.subr.bf16.mxu0 0
      %1828 = vmatpush1.bf16.msra.mxu0 %v1234
      %1829 = vmatprep.subr.bf16.mxu0 0
      %1830 = vmatpush1.bf16.msra.mxu0 %v1235
      %1831 = vmatprep.mubr.bf16.mxu0 %v450
      %1832 = vmatmul.mubr.bf16.gmra.mrb[0].mxu0 %v336
      %v1833 = vpop.f32.mrb[0].mxu0
      %v1834 = vadd.f32 %v1673, %v1833
      %v1835 = vpop.f32.mrb[0].mxu0
      %v1836 = vpop.f32.mrb[0].mxu0
      %v1837 = vadd.f32 %v1676, %v1836
      %v1838 = vpop.f32.mrb[0].mxu0
      %1839 = vmatprep.mubr.bf16.mxu0 %v462
      %1840 = vmatmul.mubr.bf16.gmra.mrb[0].mxu0 %v337
      %v1841 = vpop.f32.mrb[0].mxu0
      %v1842 = vadd.f32 %v1681, %v1841
      %v1843 = vpop.f32.mrb[0].mxu0
      %v1844 = vpop.f32.mrb[0].mxu0
      %v1845 = vadd.f32 %v1684, %v1844
      %v1846 = vpop.f32.mrb[0].mxu0
      %1847 = vmatprep.mubr.bf16.mxu0 %v474
      %1848 = vmatmul.mubr.bf16.gmra.mrb[0].mxu0 %v338
      %v1849 = vpop.f32.mrb[0].mxu0
      %v1850 = vadd.f32 %v1689, %v1849
      %v1851 = vpop.f32.mrb[0].mxu0
      %v1852 = vpop.f32.mrb[0].mxu0
      %v1853 = vadd.f32 %v1692, %v1852
      %v1854 = vpop.f32.mrb[0].mxu0
      %1855 = vmatprep.mubr.bf16.mxu0 %v486
      %1856 = vmatmul.mubr.bf16.gmra.mrb[0].mxu0 %v339
      %v1857 = vpop.f32.mrb[0].mxu0
      %v1858 = vadd.f32 %v1697, %v1857
      %v1859 = vpop.f32.mrb[0].mxu0
      %v1860 = vpop.f32.mrb[0].mxu0
      %v1861 = vadd.f32 %v1700, %v1860
      %v1862 = vpop.f32.mrb[0].mxu0
      %1863 = vmatprep.mubr.bf16.mxu0 %v498
      %1864 = vmatmul.mubr.bf16.gmra.mrb[0].mxu0 %v340
      %v1865 = vpop.f32.mrb[0].mxu0
      %v1866 = vadd.f32 %v1705, %v1865
      %v1867 = vpop.f32.mrb[0].mxu0
      %v1868 = vpop.f32.mrb[0].mxu0
      %v1869 = vadd.f32 %v1708, %v1868
      %v1870 = vpop.f32.mrb[0].mxu0
      %1871 = vmatprep.mubr.bf16.mxu0 %v510
      %1872 = vmatmul.mubr.bf16.gmra.mrb[0].mxu0 %v341
      %v1873 = vpop.f32.mrb[0].mxu0
      %v1874 = vadd.f32 %v1713, %v1873
      %v1875 = vpop.f32.mrb[0].mxu0
      %v1876 = vpop.f32.mrb[0].mxu0
      %v1877 = vadd.f32 %v1716, %v1876
      %v1878 = vpop.f32.mrb[0].mxu0
      %1879 = vmatprep.mubr.bf16.mxu0 %v522
      %1880 = vmatmul.mubr.bf16.gmra.mrb[0].mxu0 %v342
      %v1881 = vpop.f32.mrb[0].mxu0
      %v1882 = vadd.f32 %v1721, %v1881
      %v1883 = vpop.f32.mrb[0].mxu0
      %v1884 = vpop.f32.mrb[0].mxu0
      %v1885 = vadd.f32 %v1724, %v1884
      %v1886 = vpop.f32.mrb[0].mxu0
      %1887 = vmatprep.mubr.bf16.mxu0 %v534
      %1888 = vmatmul.mubr.bf16.gmra.mrb[0].mxu0 %v343
      %v1889 = vpop.f32.mrb[0].mxu0
      %v1890 = vadd.f32 %v1729, %v1889
      %v1891 = vpop.f32.mrb[0].mxu0
      %v1892 = vpop.f32.mrb[0].mxu0
      %v1893 = vadd.f32 %v1732, %v1892
      %v1894 = vpop.f32.mrb[0].mxu0
      %1895 = vmatprep.mubr.bf16.mxu0 %v546
      %1896 = vmatmul.mubr.bf16.gmra.mrb[0].mxu0 %v344
      %v1897 = vpop.f32.mrb[0].mxu0
      %v1898 = vadd.f32 %v1737, %v1897
      %v1899 = vpop.f32.mrb[0].mxu0
      %v1900 = vpop.f32.mrb[0].mxu0
      %v1901 = vadd.f32 %v1740, %v1900
      %v1902 = vpop.f32.mrb[0].mxu0
      %1903 = vmatprep.mubr.bf16.mxu0 %v558
      %1904 = vmatmul.mubr.bf16.gmra.mrb[0].mxu0 %v345
      %v1905 = vpop.f32.mrb[0].mxu0
      %v1906 = vadd.f32 %v1745, %v1905
      %v1907 = vpop.f32.mrb[0].mxu0
      %v1908 = vpop.f32.mrb[0].mxu0
      %v1909 = vadd.f32 %v1748, %v1908
      %v1910 = vpop.f32.mrb[0].mxu0
      %1911 = vmatprep.mubr.bf16.mxu0 %v570
      %1912 = vmatmul.mubr.bf16.gmra.mrb[0].mxu0 %v346
      %v1913 = vpop.f32.mrb[0].mxu0
      %v1914 = vadd.f32 %v1753, %v1913
      %v1915 = vpop.f32.mrb[0].mxu0
      %v1916 = vpop.f32.mrb[0].mxu0
      %v1917 = vadd.f32 %v1756, %v1916
      %v1918 = vpop.f32.mrb[0].mxu0
      %1919 = vmatprep.mubr.bf16.mxu0 %v582
      %1920 = vmatmul.mubr.bf16.gmra.mrb[0].mxu0 %v347
      %v1921 = vpop.f32.mrb[0].mxu0
      %v1922 = vadd.f32 %v1761, %v1921
      %v1923 = vpop.f32.mrb[0].mxu0
      %v1924 = vpop.f32.mrb[0].mxu0
      %v1925 = vadd.f32 %v1764, %v1924
      %v1926 = vpop.f32.mrb[0].mxu0
      %1927 = vmatprep.mubr.bf16.mxu0 %v594
      %1928 = vmatmul.mubr.bf16.gmra.mrb[0].mxu0 %v348
      %v1929 = vpop.f32.mrb[0].mxu0
      %v1930 = vadd.f32 %v1769, %v1929
      %v1931 = vpop.f32.mrb[0].mxu0
      %v1932 = vpop.f32.mrb[0].mxu0
      %v1933 = vadd.f32 %v1772, %v1932
      %v1934 = vpop.f32.mrb[0].mxu0
      %1935 = vmatprep.mubr.bf16.mxu0 %v606
      %1936 = vmatmul.mubr.bf16.gmra.mrb[0].mxu0 %v349
      %v1937 = vpop.f32.mrb[0].mxu0
      %v1938 = vadd.f32 %v1777, %v1937
      %v1939 = vpop.f32.mrb[0].mxu0
      %v1940 = vpop.f32.mrb[0].mxu0
      %v1941 = vadd.f32 %v1780, %v1940
      %v1942 = vpop.f32.mrb[0].mxu0
      %1943 = vmatprep.mubr.bf16.mxu0 %v708
      %1944 = vmatmul.mubr.bf16.gmra.mrb[0].mxu0 %v692
      %v1945 = vpop.f32.mrb[0].mxu0
      %v1946 = vadd.f32 %v1785, %v1945
      %v1947 = vpop.f32.mrb[0].mxu0
      %v1948 = vpop.f32.mrb[0].mxu0
      %v1949 = vadd.f32 %v1788, %v1948
      %v1950 = vpop.f32.mrb[0].mxu0
      %1951 = vmatprep.mubr.bf16.mxu0 %v734
      %1952 = vmatmul.mubr.bf16.gmra.mrb[0].mxu0 %v718
      %v1953 = vpop.f32.mrb[0].mxu0
      %v1954 = vadd.f32 %v1793, %v1953
      %v1955 = vpop.f32.mrb[0].mxu0
      %v1956 = vpop.f32.mrb[0].mxu0
      %v1957 = vadd.f32 %v1796, %v1956
      %v1958 = vpop.f32.mrb[0].mxu0
      %1959 = vdwg.mxu0
      %1960 = vmatprep.subr.bf16.mxu0 0
      %1961 = vmatpush1.bf16.msra.mxu0 %v1236
      %1962 = vmatprep.subr.bf16.mxu0 0
      %1963 = vmatpush1.bf16.msra.mxu0 %v1237
      %1964 = vmatprep.subr.bf16.mxu0 0
      %1965 = vmatpush1.bf16.msra.mxu0 %v1238
      %1966 = vmatprep.subr.bf16.mxu0 0
      %1967 = vmatpush1.bf16.msra.mxu0 %v1239
      %1968 = vmatprep.subr.bf16.mxu0 0
      %1969 = vmatpush1.bf16.msra.mxu0 %v1240
      %1970 = vmatprep.subr.bf16.mxu0 0
      %1971 = vmatpush1.bf16.msra.mxu0 %v1241
      %1972 = vmatprep.subr.bf16.mxu0 0
      %1973 = vmatpush1.bf16.msra.mxu0 %v1242
      %1974 = vmatprep.subr.bf16.mxu0 0
      %1975 = vmatpush1.bf16.msra.mxu0 %v1243
      %1976 = vmatprep.subr.bf16.mxu0 0
      %1977 = vmatpush1.bf16.msra.mxu0 0
      %1978 = vmatprep.subr.bf16.mxu0 0
      %1979 = vmatpush1.bf16.msra.mxu0 0
      %1980 = vmatprep.subr.bf16.mxu0 0
      %1981 = vmatpush1.bf16.msra.mxu0 0
      %1982 = vmatprep.subr.bf16.mxu0 0
      %1983 = vmatpush1.bf16.msra.mxu0 0
      %1984 = vmatprep.subr.bf16.mxu0 0
      %1985 = vmatpush1.bf16.msra.mxu0 0
      %1986 = vmatprep.subr.bf16.mxu0 0
      %1987 = vmatpush1.bf16.msra.mxu0 0
      %1988 = vmatprep.subr.bf16.mxu0 0
      %1989 = vmatpush1.bf16.msra.mxu0 0
      %1990 = vmatprep.subr.bf16.mxu0 0
      %1991 = vmatpush1.bf16.msra.mxu0 0
      %1992 = vmatprep.mubr.bf16.mxu0 0
      %1993 = vmatmul.mubr.bf16.gmra.mrb[0].mxu0 %v632
      %v1994 = vpop.f32.mrb[0].mxu0
      %v1995 = vadd.f32 %v1834, %v1994
      %v1996 = vpop.f32.mrb[0].mxu0
      %v1997 = vpop.f32.mrb[0].mxu0
      %v1998 = vadd.f32 %v1837, %v1997
      %v1999 = vpop.f32.mrb[0].mxu0
      %2000 = vmatprep.mubr.bf16.mxu0 0
      %2001 = vmatmul.mubr.bf16.gmra.mrb[0].mxu0 %v635
      %v2002 = vpop.f32.mrb[0].mxu0
      %v2003 = vadd.f32 %v1842, %v2002
      %v2004 = vpop.f32.mrb[0].mxu0
      %v2005 = vpop.f32.mrb[0].mxu0
      %v2006 = vadd.f32 %v1845, %v2005
      %v2007 = vpop.f32.mrb[0].mxu0
      %2008 = vmatprep.mubr.bf16.mxu0 0
      %2009 = vmatmul.mubr.bf16.gmra.mrb[0].mxu0 %v638
      %v2010 = vpop.f32.mrb[0].mxu0
      %v2011 = vadd.f32 %v1850, %v2010
      %v2012 = vpop.f32.mrb[0].mxu0
      %v2013 = vpop.f32.mrb[0].mxu0
      %v2014 = vadd.f32 %v1853, %v2013
      %v2015 = vpop.f32.mrb[0].mxu0
      %2016 = vmatprep.mubr.bf16.mxu0 0
      %2017 = vmatmul.mubr.bf16.gmra.mrb[0].mxu0 %v641
      %v2018 = vpop.f32.mrb[0].mxu0
      %v2019 = vadd.f32 %v1858, %v2018
      %v2020 = vpop.f32.mrb[0].mxu0
      %v2021 = vpop.f32.mrb[0].mxu0
      %v2022 = vadd.f32 %v1861, %v2021
      %v2023 = vpop.f32.mrb[0].mxu0
      %2024 = vmatprep.mubr.bf16.mxu0 0
      %2025 = vmatmul.mubr.bf16.gmra.mrb[0].mxu0 %v644
      %v2026 = vpop.f32.mrb[0].mxu0
      %v2027 = vadd.f32 %v1866, %v2026
      %v2028 = vpop.f32.mrb[0].mxu0
      %v2029 = vpop.f32.mrb[0].mxu0
      %v2030 = vadd.f32 %v1869, %v2029
      %v2031 = vpop.f32.mrb[0].mxu0
      %2032 = vmatprep.mubr.bf16.mxu0 0
      %2033 = vmatmul.mubr.bf16.gmra.mrb[0].mxu0 %v647
      %v2034 = vpop.f32.mrb[0].mxu0
      %v2035 = vadd.f32 %v1874, %v2034
      %v2036 = vpop.f32.mrb[0].mxu0
      %v2037 = vpop.f32.mrb[0].mxu0
      %v2038 = vadd.f32 %v1877, %v2037
      %v2039 = vpop.f32.mrb[0].mxu0
      %2040 = vmatprep.mubr.bf16.mxu0 0
      %2041 = vmatmul.mubr.bf16.gmra.mrb[0].mxu0 %v650
      %v2042 = vpop.f32.mrb[0].mxu0
      %v2043 = vadd.f32 %v1882, %v2042
      %v2044 = vpop.f32.mrb[0].mxu0
      %v2045 = vpop.f32.mrb[0].mxu0
      %v2046 = vadd.f32 %v1885, %v2045
      %v2047 = vpop.f32.mrb[0].mxu0
      %2048 = vmatprep.mubr.bf16.mxu0 0
      %2049 = vmatmul.mubr.bf16.gmra.mrb[0].mxu0 %v653
      %v2050 = vpop.f32.mrb[0].mxu0
      %v2051 = vadd.f32 %v1890, %v2050
      %v2052 = vpop.f32.mrb[0].mxu0
      %v2053 = vpop.f32.mrb[0].mxu0
      %v2054 = vadd.f32 %v1893, %v2053
      %v2055 = vpop.f32.mrb[0].mxu0
      %2056 = vmatprep.mubr.bf16.mxu0 0
      %2057 = vmatmul.mubr.bf16.gmra.mrb[0].mxu0 %v656
      %v2058 = vpop.f32.mrb[0].mxu0
      %v2059 = vadd.f32 %v1898, %v2058
      %v2060 = vpop.f32.mrb[0].mxu0
      %v2061 = vpop.f32.mrb[0].mxu0
      %v2062 = vadd.f32 %v1901, %v2061
      %v2063 = vpop.f32.mrb[0].mxu0
      %2064 = vmatprep.mubr.bf16.mxu0 0
      %2065 = vmatmul.mubr.bf16.gmra.mrb[0].mxu0 %v659
      %v2066 = vpop.f32.mrb[0].mxu0
      %v2067 = vadd.f32 %v1906, %v2066
      %v2068 = vpop.f32.mrb[0].mxu0
      %v2069 = vpop.f32.mrb[0].mxu0
      %v2070 = vadd.f32 %v1909, %v2069
      %v2071 = vpop.f32.mrb[0].mxu0
      %2072 = vmatprep.mubr.bf16.mxu0 0
      %2073 = vmatmul.mubr.bf16.gmra.mrb[0].mxu0 %v662
      %v2074 = vpop.f32.mrb[0].mxu0
      %v2075 = vadd.f32 %v1914, %v2074
      %v2076 = vpop.f32.mrb[0].mxu0
      %v2077 = vpop.f32.mrb[0].mxu0
      %v2078 = vadd.f32 %v1917, %v2077
      %v2079 = vpop.f32.mrb[0].mxu0
      %2080 = vmatprep.mubr.bf16.mxu0 0
      %2081 = vmatmul.mubr.bf16.gmra.mrb[0].mxu0 %v665
      %v2082 = vpop.f32.mrb[0].mxu0
      %v2083 = vadd.f32 %v1922, %v2082
      %v2084 = vpop.f32.mrb[0].mxu0
      %v2085 = vpop.f32.mrb[0].mxu0
      %v2086 = vadd.f32 %v1925, %v2085
      %v2087 = vpop.f32.mrb[0].mxu0
      %2088 = vmatprep.mubr.bf16.mxu0 0
      %2089 = vmatmul.mubr.bf16.gmra.mrb[0].mxu0 %v668
      %v2090 = vpop.f32.mrb[0].mxu0
      %v2091 = vadd.f32 %v1930, %v2090
      %v2092 = vpop.f32.mrb[0].mxu0
      %v2093 = vpop.f32.mrb[0].mxu0
      %v2094 = vadd.f32 %v1933, %v2093
      %v2095 = vpop.f32.mrb[0].mxu0
      %2096 = vmatprep.mubr.bf16.mxu0 0
      %2097 = vmatmul.mubr.bf16.gmra.mrb[0].mxu0 %v671
      %v2098 = vpop.f32.mrb[0].mxu0
      %v2099 = vadd.f32 %v1938, %v2098
      %v2100 = vpop.f32.mrb[0].mxu0
      %v2101 = vpop.f32.mrb[0].mxu0
      %v2102 = vadd.f32 %v1941, %v2101
      %v2103 = vpop.f32.mrb[0].mxu0
      %2104 = vmatprep.mubr.bf16.mxu0 0
      %2105 = vmatmul.mubr.bf16.gmra.mrb[0].mxu0 %v712
      %v2106 = vpop.f32.mrb[0].mxu0
      %v2107 = vadd.f32 %v1946, %v2106
      %v2108 = vpop.f32.mrb[0].mxu0
      %v2109 = vpop.f32.mrb[0].mxu0
      %v2110 = vadd.f32 %v1949, %v2109
      %v2111 = vpop.f32.mrb[0].mxu0
      %2112 = vmatprep.mubr.bf16.mxu0 0
      %2113 = vmatmul.mubr.bf16.gmra.mrb[0].mxu0 %v738
      %v2114 = vpop.f32.mrb[0].mxu0
      %v2115 = vadd.f32 %v1954, %v2114
      %v2116 = vpop.f32.mrb[0].mxu0
      %v2117 = vpop.f32.mrb[0].mxu0
      %v2118 = vadd.f32 %v1957, %v2117
      %v2119 = vpop.f32.mrb[0].mxu0
      %2120 = vdwg.mxu0
      %2121 = vst [vmem:[%s208] sm:$0xff] %v1995
      %2122 = vst [vmem:[%s208 + $0x8] sm:$0xff] %v1998
      %2123 = vst [vmem:[%s208 + $0x10] sm:$0xff] %v2003
      %2124 = vst [vmem:[%s208 + $0x18] sm:$0xff] %v2006
      %2125 = vst [vmem:[%s208 + $0x20] sm:$0xff] %v2011
      %2126 = vst [vmem:[%s208 + $0x28] sm:$0xff] %v2014
      %2127 = vst [vmem:[%s208 + $0x30] sm:$0xff] %v2019
      %2128 = vst [vmem:[%s208 + $0x38] sm:$0xff] %v2022
      %2129 = vst [vmem:[%s208 + $0x40] sm:$0xff] %v2027
      %2130 = vst [vmem:[%s208 + $0x48] sm:$0xff] %v2030
      %2131 = vst [vmem:[%s208 + $0x50] sm:$0xff] %v2035
      %2132 = vst [vmem:[%s208 + $0x58] sm:$0xff] %v2038
      %2133 = vst [vmem:[%s208 + $0x60] sm:$0xff] %v2043
      %2134 = vst [vmem:[%s208 + $0x68] sm:$0xff] %v2046
      %2135 = vst [vmem:[%s208 + $0x70] sm:$0xff] %v2051
      %2136 = vst [vmem:[%s208 + $0x78] sm:$0xff] %v2054
      %2137 = vst [vmem:[%s208 + $0x80] sm:$0xff] %v2059
      %2138 = vst [vmem:[%s208 + $0x88] sm:$0xff] %v2062
      %2139 = vst [vmem:[%s208 + $0x90] sm:$0xff] %v2067
      %2140 = vst [vmem:[%s208 + $0x98] sm:$0xff] %v2070
      %2141 = vst [vmem:[%s208 + $0xa0] sm:$0xff] %v2075
      %2142 = vst [vmem:[%s208 + $0xa8] sm:$0xff] %v2078
      %2143 = vst [vmem:[%s208 + $0xb0] sm:$0xff] %v2083
      %2144 = vst [vmem:[%s208 + $0xb8] sm:$0xff] %v2086
      %2145 = vst [vmem:[%s208 + $0xc0] sm:$0xff] %v2091
      %2146 = vst [vmem:[%s208 + $0xc8] sm:$0xff] %v2094
      %2147 = vst [vmem:[%s208 + $0xd0] sm:$0xff] %v2099
      %2148 = vst [vmem:[%s208 + $0xd8] sm:$0xff] %v2102
      %2149 = vst [vmem:[%s208 + $0xe0] sm:$0xff] %v2107
      %2150 = vst [vmem:[%s208 + $0xe8] sm:$0xff] %v2110
      %2151 = vst [vmem:[%s208 + $0xf0] sm:$0xff] %v2115
      %2152 = vst [vmem:[%s208 + $0xf8] sm:$0xff] %v2118
      %v2153 = vadd.f32 %v1995, %v1998
      %v2154 = vadd.f32 %v2153, %v2003
      %v2155 = vadd.f32 %v2154, %v2006
      %v2156 = vadd.f32 %v2155, %v2011
      %v2157 = vadd.f32 %v2156, %v2014
      %v2158 = vadd.f32 %v2157, %v2019
      %v2159 = vadd.f32 %v2158, %v2022
      %v2160 = vadd.f32 %v2159, %v2027
      %v2161 = vadd.f32 %v2160, %v2030
      %v2162 = vadd.f32 %v2161, %v2035
      %v2163 = vadd.f32 %v2162, %v2038
      %v2164 = vadd.f32 %v2163, %v2043
      %v2165 = vadd.f32 %v2164, %v2046
      %v2166 = vadd.f32 %v2165, %v2051
      %v2167 = vadd.f32 %v2166, %v2054
      %v2168 = vadd.f32 %v2167, %v2059
      %v2169 = vadd.f32 %v2168, %v2062
      %v2170 = vadd.f32 %v2169, %v2067
      %v2171 = vadd.f32 %v2170, %v2070
      %v2172 = vadd.f32 %v2171, %v2075
      %v2173 = vadd.f32 %v2172, %v2078
      %v2174 = vadd.f32 %v2173, %v2083
      %v2175 = vadd.f32 %v2174, %v2086
      %v2176 = vadd.f32 %v2175, %v2091
      %v2177 = vadd.f32 %v2176, %v2094
      %v2178 = vadd.f32 %v2177, %v2099
      %v2179 = vadd.f32 %v2178, %v2102
      %v2180 = vadd.f32 %v2179, %v2107
      %v2181 = vadd.f32 %v2180, %v2110
      %v2182 = vadd.f32 %v2181, %v2115
      %v2183 = vadd.f32 %v2182, %v2118
      %v2184 = vrot.slane %v2183, 4
      %v2185 = vadd.f32 %v2183, %v2184
      %v2186 = vrot.slane %v2185, 2
      %v2187 = vadd.f32 %v2185, %v2186
      %v2188 = vrot.slane %v2187, 1
      %v2189 = vadd.f32 %v2187, %v2188
      %2190 = vst [vmem:[%s211] sm:$0x1] %v2189
      %v2191 = vmul.f32 %v1995, %v1995
      %v2192 = vmul.f32 %v1998, %v1998
      %v2193 = vmul.f32 %v2003, %v2003
      %v2194 = vmul.f32 %v2006, %v2006
      %v2195 = vmul.f32 %v2011, %v2011
      %v2196 = vmul.f32 %v2014, %v2014
      %v2197 = vmul.f32 %v2019, %v2019
      %v2198 = vmul.f32 %v2022, %v2022
      %v2199 = vmul.f32 %v2027, %v2027
      %v2200 = vmul.f32 %v2030, %v2030
      %v2201 = vmul.f32 %v2035, %v2035
      %v2202 = vmul.f32 %v2038, %v2038
      %v2203 = vmul.f32 %v2043, %v2043
      %v2204 = vmul.f32 %v2046, %v2046
      %v2205 = vmul.f32 %v2051, %v2051
      %v2206 = vmul.f32 %v2054, %v2054
      %v2207 = vmul.f32 %v2059, %v2059
      %v2208 = vmul.f32 %v2062, %v2062
      %v2209 = vmul.f32 %v2067, %v2067
      %v2210 = vmul.f32 %v2070, %v2070
      %v2211 = vmul.f32 %v2075, %v2075
      %v2212 = vmul.f32 %v2078, %v2078
      %v2213 = vmul.f32 %v2083, %v2083
      %v2214 = vmul.f32 %v2086, %v2086
      %v2215 = vmul.f32 %v2091, %v2091
      %v2216 = vmul.f32 %v2094, %v2094
      %v2217 = vmul.f32 %v2099, %v2099
      %v2218 = vmul.f32 %v2102, %v2102
      %v2219 = vmul.f32 %v2107, %v2107
      %v2220 = vmul.f32 %v2110, %v2110
      %v2221 = vmul.f32 %v2115, %v2115
      %v2222 = vmul.f32 %v2118, %v2118
      %v2223 = vadd.f32 %v2191, %v2192
      %v2224 = vadd.f32 %v2223, %v2193
      %v2225 = vadd.f32 %v2224, %v2194
      %v2226 = vadd.f32 %v2225, %v2195
      %v2227 = vadd.f32 %v2226, %v2196
      %v2228 = vadd.f32 %v2227, %v2197
      %v2229 = vadd.f32 %v2228, %v2198
      %v2230 = vadd.f32 %v2229, %v2199
      %v2231 = vadd.f32 %v2230, %v2200
      %v2232 = vadd.f32 %v2231, %v2201
      %v2233 = vadd.f32 %v2232, %v2202
      %v2234 = vadd.f32 %v2233, %v2203
      %v2235 = vadd.f32 %v2234, %v2204
      %v2236 = vadd.f32 %v2235, %v2205
      %v2237 = vadd.f32 %v2236, %v2206
      %v2238 = vadd.f32 %v2237, %v2207
      %v2239 = vadd.f32 %v2238, %v2208
      %v2240 = vadd.f32 %v2239, %v2209
      %v2241 = vadd.f32 %v2240, %v2210
      %v2242 = vadd.f32 %v2241, %v2211
      %v2243 = vadd.f32 %v2242, %v2212
      %v2244 = vadd.f32 %v2243, %v2213
      %v2245 = vadd.f32 %v2244, %v2214
      %v2246 = vadd.f32 %v2245, %v2215
      %v2247 = vadd.f32 %v2246, %v2216
      %v2248 = vadd.f32 %v2247, %v2217
      %v2249 = vadd.f32 %v2248, %v2218
      %v2250 = vadd.f32 %v2249, %v2219
      %v2251 = vadd.f32 %v2250, %v2220
      %v2252 = vadd.f32 %v2251, %v2221
      %v2253 = vadd.f32 %v2252, %v2222
      %v2254 = vrot.slane %v2253, 4
      %v2255 = vadd.f32 %v2253, %v2254
      %v2256 = vrot.slane %v2255, 2
      %v2257 = vadd.f32 %v2255, %v2256
      %v2258 = vrot.slane %v2257, 1
      %v2259 = vadd.f32 %v2257, %v2258
      %2260 = vst [vmem:[%s214] sm:$0x1] %v2259
      %p2261 = scmp.lt.s32.totalorder %s16, 1
      %s2262 = scalar_select %p2261, %s16, 1
      %s2263 = smul.addr %s2262, 32
      %s2264 = smul.addr %s2263, 8
      %s2265 = scalar_lea.vmem %s2, %s2264
      %p2266 = scmp.lt.s32.totalorder %s16, 1
      %s2267 = scalar_select %p2266, %s16, 1
      %s2268 = scalar_lea.vmem %s3, %s2267
      %p2269 = scmp.lt.s32.totalorder %s16, 1
      %s2270 = scalar_select %p2269, %s16, 1
      %s2271 = scalar_lea.vmem %s4, %s2270
      // Predicated region
      $region29: #{double_conv_forward.4} parent=27 // pred_check
        %p2272 = pneg %p81
      $region30: #{double_conv_forward.4} parent=27 // pred_check_branch
        %2274 = sbr.rel (%p2272) target = $region32
      $region31: #{double_conv_forward.4} parent=27 // pred_region
        _
      $region32: #{double_conv_forward.4} parent=27 // pred_fallthru
        _
      // Predicated region
      $region33: #{double_conv_forward.4} parent=27 // pred_check
        %p2275 = pneg %p107
      $region34: #{double_conv_forward.4} parent=27 // pred_check_branch
        %2277 = sbr.rel (%p2275) target = $region36
      $region35: #{double_conv_forward.4} parent=27 // pred_region
        _
      $region36: #{double_conv_forward.4} parent=27 // pred_fallthru
        _
      // Predicated region
      $region37: #{double_conv_forward.4} parent=27 // pred_check
        %p2278 = pneg %p133
      $region38: #{double_conv_forward.4} parent=27 // pred_check_branch
        %2280 = sbr.rel (%p2278) target = $region40
      $region39: #{double_conv_forward.4} parent=27 // pred_region
        _
      $region40: #{double_conv_forward.4} parent=27 // pred_fallthru
        _
    $region28: #{double_conv_forward.4} parent=5 // pred_fallthru
      _
    %p2281 = scmp.le.s32.totalorder 2, %s11
    // Predicated region
    $region41: #{double_conv_forward.4} parent=5 // pred_check
      %p2282 = pneg %p2281
    $region42: #{double_conv_forward.4} parent=5 // pred_check_branch
      %2284 = sbr.rel (%p2282) target = $region44
    $region43: #{double_conv_forward.4} parent=5 // pred_region
      %s2285 = ssub.s32 %s11, 2
      // Predicated region
      $region45: #{double_conv_forward.4} parent=43 // pred_check
        %p2286 = pneg %p87
      $region46: #{double_conv_forward.4} parent=43 // pred_check_branch
        %2288 = sbr.rel (%p2286) target = $region48
      $region47: #{double_conv_forward.4} parent=43 // pred_region
        %p2289 = scmp.lt.s32.totalorder %s17, 1
        %s2290 = scalar_select %p2289, %s17, 1
        %s2291 = smul.addr %s2290, 32
        %s2292 = smul.addr %s2291, 8
        %s2293 = scalar_lea.vmem %s2, %s2292
      $region48: #{double_conv_forward.4} parent=43 // pred_fallthru
        _
      // Predicated region
      $region49: #{double_conv_forward.4} parent=43 // pred_check
        %p2294 = pneg %p113
      $region50: #{double_conv_forward.4} parent=43 // pred_check_branch
        %2296 = sbr.rel (%p2294) target = $region52
      $region51: #{double_conv_forward.4} parent=43 // pred_region
        %p2297 = scmp.lt.s32.totalorder %s17, 1
        %s2298 = scalar_select %p2297, %s17, 1
        %s2299 = scalar_lea.vmem %s3, %s2298
      $region52: #{double_conv_forward.4} parent=43 // pred_fallthru
        _
      // Predicated region
      $region53: #{double_conv_forward.4} parent=43 // pred_check
        %p2300 = pneg %p139
      $region54: #{double_conv_forward.4} parent=43 // pred_check_branch
        %2302 = sbr.rel (%p2300) target = $region56
      $region55: #{double_conv_forward.4} parent=43 // pred_region
        %p2303 = scmp.lt.s32.totalorder %s17, 1
        %s2304 = scalar_select %p2303, %s17, 1
        %s2305 = scalar_lea.vmem %s4, %s2304
      $region56: #{double_conv_forward.4} parent=43 // pred_fallthru
        _
    $region44: #{double_conv_forward.4} parent=5 // pred_fallthru
      _
  $region6: #{double_conv_forward.4} parent=0 // loop_footer
    %s15 = sadd.s32 1, %s11
  $region7: #{double_conv_forward.4} parent=0 // loop_footer_branch
    %10 = sbr.rel target = $region3
  $region8: #{double_conv_forward.4} parent=0 // loop_exit
    _

</llo_original>
